<compile_context>
chip_gen: v6e
topology: v6e:2x2x1
jax: 0.10.0
libtpu: 0.0.40
codegen_flags: <defaults>
</compile_context>

<pallas_src>
import functools

import jax
import jax.numpy as jnp
from jax.experimental import pallas as pl
from jax.experimental.pallas import tpu as pltpu


# ---------------------------------------------------------------------------
# Constant transform matrices (built once, outside the kernel, exactly).
# ---------------------------------------------------------------------------

def _plane_transform_matrices(H, W, factor):
    """Fold fftshift / ifft scale / ::factor into the DFT matrices.

    Per (H, W) plane the PyTorch forward equals
        X   = AH @ x @ AW          (fft2 of the pre-shifted plane)
        K   = AH @ k @ AW          (OTF of the pre-shifted padded PSF)
        out = Re(BH @ (X * K) @ BW)
    with
        AH = F_H @ S_H                        (pre-shift of rows)
        AW = S_W^T @ F_W                      (pre-shift of cols)
        BH = (S_H @ conj(F_H) / H)[::f, :]    (row IDFT + post-shift + stride + 1/H)
        BW = (conj(F_W) @ S_W^T / W)[:, ::f]  (col IDFT + post-shift + stride + 1/W)
    The S (fftshift) permutations are applied as exact index rolls, so the
    matrices keep full f32 accuracy (no wrapper matmuls).
    """
    kh = jnp.arange(H, dtype=jnp.float32)
    kw = jnp.arange(W, dtype=jnp.float32)
    fh = jnp.exp((-2j * jnp.pi / H) * jnp.outer(kh, kh)).astype(jnp.complex64)
    fw = jnp.exp((-2j * jnp.pi / W) * jnp.outer(kw, kw)).astype(jnp.complex64)
    sh, sw = H // 2, W // 2

    ah = jnp.roll(fh, -sh, axis=1)                            # F_H @ S_H
    aw = jnp.roll(fw, -sw, axis=0)                            # S_W^T @ F_W
    bh = (jnp.roll(jnp.conj(fh), sh, axis=0) / H)[::factor, :]
    bw = (jnp.roll(jnp.conj(fw), sw, axis=1) / W)[:, ::factor]
    return ah, aw, bh, bw


def _block_diag(m, reps):
    """Block-diagonal replication diag(m, ..., m) (`reps` copies) — exact."""
    return jnp.kron(jnp.eye(reps, dtype=m.dtype), m)


def _zero_pad_psf(psf, B, C, H, W):
    """ZeroPad(sr, psf): centered zero-pad of the PSF up to sr's HxW."""
    # TODO(synk): `ZeroPad` is not defined in the provided spec; centered
    # zero-padding (the usual psf->otf convention) is assumed here.
    psf = jnp.asarray(psf, jnp.float32)
    if psf.ndim == 2:
        psf = jnp.broadcast_to(psf, (B, C) + psf.shape)
    elif psf.ndim == 3:
        psf = jnp.broadcast_to(psf[None], (B,) + psf.shape)
    kh, kw = psf.shape[-2], psf.shape[-1]
    top, left = (H - kh) // 2, (W - kw) // 2
    return jnp.pad(psf, ((0, 0), (0, 0),
                         (top, H - kh - top), (left, W - kw - left)))


# ---------------------------------------------------------------------------
# Kernel.
# ---------------------------------------------------------------------------

def _make_kernel():
    def _split(x):
        # f32 -> (hi, lo) bf16 pair, hi + lo ~= x to ~16 mantissa bits.
        hi = x.astype(jnp.bfloat16)
        lo = (x - hi.astype(jnp.float32)).astype(jnp.bfloat16)
        return hi, lo

    def _mm3(a, b):
        # ~f32-accurate matmul from 3 bf16 MXU passes (== lax.Precision.HIGH),
        # half the MXU cost of Precision.HIGHEST, f32 accumulation.
        ah, al = a
        bh, bl = b
        dot = lambda x, y: jnp.dot(x, y, preferred_element_type=jnp.float32)
        return dot(ah, bh) + dot(ah, bl) + dot(al, bh)

    def kernel(sr_ref, psf_ref, ahr_ref, ahi_ref, awr_ref, awi_ref,
               bhr_ref, bhi_ref, bwr_ref, bwi_ref, out_ref):
        # Grid-invariant transform matrices: split to bf16 hi/lo once per step.
        ahr, ahi = _split(ahr_ref[...]), _split(ahi_ref[...])
        awr, awi = _split(awr_ref[...]), _split(awi_ref[...])
        bhr, bhi = _split(bhr_ref[...]), _split(bhi_ref[...])
        bwr, bwi = _split(bwr_ref[...]), _split(bwi_ref[...])

        def fwd(x):
            # (AHr + i AHi) @ x @ (AW_bd_r + i AW_bd_i) over the whole real
            # (H, P*W) slab: plane-batched 2-D matmuls, no per-plane loop.
            xs = _split(x)
            tr = _split(_mm3(ahr, xs))
            ti = _split(_mm3(ahi, xs))
            re = _mm3(tr, awr) - _mm3(ti, awi)
            im = _mm3(tr, awi) + _mm3(ti, awr)
            return re, im

        xr, xi = fwd(sr_ref[0])        # spectrum of the sr slab
        kr, ki = fwd(psf_ref[0])       # OTF of the padded-PSF slab
        # NOTE: if the PSF is shared across planes the OTF could be computed
        # once and passed in; kept per-plane here (general case, as in the test).

        yr = _split(xr * kr - xi * ki)  # frequency-domain product (VPU)
        yi = _split(xr * ki + xi * kr)

        # Inverse transform: post-shift, ::factor downsample and 1/(H*W) are
        # folded into BH / BW_bd, so this directly emits the (Ho, P*Wo) slab.
        vr = _split(_mm3(bhr, yr) - _mm3(bhi, yi))
        vi = _split(_mm3(bhr, yi) + _mm3(bhi, yr))
        out_ref[0] = (_mm3(vr, bwr) - _mm3(vi, bwi)).astype(out_ref.dtype)

    return kernel


# ---------------------------------------------------------------------------
# Plane-block sizing (VMEM model).
# ---------------------------------------------------------------------------

def _pick_plane_block(n_planes, H, W, Ho, Wo, budget_bytes=16 << 20):
    """Planes per grid step.

    Footprint model: double-buffered sr/psf/out blocks + (double-buffered)
    constant matrices + live complex intermediates.  Capped so (a) the grid
    has >= 2 steps (keeps both v7x TensorCores busy via the 'parallel' axis)
    and (b) the block-diagonal right-hand matrices stay near one MXU tile
    (P*W <= 256) so their zero blocks don't waste MXU passes.
    """
    if n_planes <= 1:
        return 1
    max_p = max(1, min(n_planes // 2, max(1, 256 // W)))
    best = 1
    for p in range(1, max_p + 1):
        if n_planes % p:
            continue
        io_blk = 2 * 4 * p * (2 * H * W + Ho * Wo)                 # double-buffered I/O
        consts = 2 * 4 * (2 * H * H + 2 * Ho * H
                          + 2 * (p * W) ** 2 + 2 * (p * W) * (p * Wo))
        interm = 16 * 4 * H * p * W                                # live complex temps
        if io_blk + consts + interm <= budget_bytes:
            best = p
    return best


# ---------------------------------------------------------------------------
# Wrapper.
# ---------------------------------------------------------------------------

@functools.partial(jax.jit, static_argnames=("factor",))
def conv_projection_pallas(sr, psf, factor=1):
    """Pallas implementation of ConvProjection.forward(sr, psf)."""
    B, C, H, W = sr.shape
    in_dtype = sr.dtype
    n = B * C
    Ho = -(-H // factor)                 # rows kept by out[..., ::factor, :]
    Wo = -(-W // factor)

    pad_psf = _zero_pad_psf(psf, B, C, H, W)
    sr_planes = sr.astype(jnp.float32).reshape(n, H, W)
    psf_planes = pad_psf.reshape(n, H, W)

    P = _pick_plane_block(n, H, W, Ho, Wo)
    G = n // P
    PW, PWo = P * W, P * Wo

    # Lane-concatenated slab layout: each grid block is one (H, P*W) slab with
    # P planes side by side in lanes -> every kernel matmul is one big 2-D MXU
    # op and both input and output blocks' minor dims are full array dims.
    def to_slab(x):
        return x.reshape(G, P, H, W).transpose(0, 2, 1, 3).reshape(G, H, PW)

    sr_slab = to_slab(sr_planes)
    psf_slab = to_slab(psf_planes)

    ah, aw, bh, bw = _plane_transform_matrices(H, W, factor)
    aw_bd = _block_diag(aw, P)           # (P*W, P*W)  per-plane column DFT
    bw_bd = _block_diag(bw, P)           # (P*W, P*Wo) per-plane inverse cols

    consts = []
    for m in (ah, aw_bd, bh, bw_bd):
        consts += [jnp.real(m).astype(jnp.float32), jnp.imag(m).astype(jnp.float32)]
    ahr, ahi, awr, awi, bhr, bhi, bwr, bwi = consts

    # Advisory cost for XLA's scheduler (3 bf16 passes per f32-accurate matmul).
    mm_macs = (2 * (2 * H * H * PW + 4 * H * PW * PW)   # two forward transforms
               + 4 * Ho * H * PW + 2 * Ho * PW * PWo)   # inverse transform
    cost = pl.CostEstimate(
        flops=int(G * 3 * 2 * mm_macs),
        transcendentals=0,
        bytes_accessed=int(4 * (2 * n * H * W + n * Ho * Wo
                                + 2 * H * H + 2 * Ho * H
                                + 2 * PW * PW + 2 * PW * PWo)),
    )

    const_spec = lambda r, c: pl.BlockSpec((r, c), lambda i: (0, 0))
    # NOTE: the 8 constant matrices never change across grid steps; they could
    # be single-buffered (pl.Buffered(1)); default double buffering is kept and
    # its footprint is charged in _pick_plane_block instead.

    out_slab = pl.pallas_call(
        _make_kernel(),
        out_shape=jax.ShapeDtypeStruct((G, Ho, PWo), jnp.float32),
        grid_spec=pltpu.PrefetchScalarGridSpec(
            num_scalar_prefetch=0,
            grid=(G,),
            in_specs=[
                pl.BlockSpec((1, H, PW), lambda i: (i, 0, 0)),    # sr slab
                pl.BlockSpec((1, H, PW), lambda i: (i, 0, 0)),    # psf slab
                const_spec(H, H), const_spec(H, H),               # AH  re/im
                const_spec(PW, PW), const_spec(PW, PW),           # AW_bd re/im
                const_spec(Ho, H), const_spec(Ho, H),             # BH  re/im
                const_spec(PW, PWo), const_spec(PW, PWo),         # BW_bd re/im
            ],
            out_specs=pl.BlockSpec((1, Ho, PWo), lambda i: (i, 0, 0)),
        ),
        compiler_params=pltpu.CompilerParams(
            dimension_semantics=("parallel",),      # independent plane blocks
            vmem_limit_bytes=32 * 1024 * 1024,
        ),
        cost_estimate=cost,
    )(sr_slab, psf_slab, ahr, ahi, awr, awi, bhr, bhi, bwr, bwi)

    out = (out_slab.reshape(G, Ho, P, Wo).transpose(0, 2, 1, 3)
           .reshape(B, C, Ho, Wo))

    # torch.fft.fftshift with no `dim` also shifts the batch/channel axes; the
    # pre- and post-shifts compose to a pure roll of the plane indices, which
    # is the identity whenever B and C are even.
    rb, rc = (2 * (B // 2)) % B, (2 * (C // 2)) % C
    if rb or rc:
        out = jnp.roll(out, shift=(rb, rc), axis=(0, 1))
    return out.astype(in_dtype)


# ---------------------------------------------------------------------------
# Pure-JAX reference mirroring the PyTorch module line by line.
# ---------------------------------------------------------------------------

def conv_projection_ref(sr, psf, factor=1):
    B, C, H, W = sr.shape
    pad_psf = _zero_pad_psf(psf, B, C, H, W)
    sr_fft = jnp.fft.fft2(jnp.fft.fftshift(sr.astype(jnp.float32)))
    otf = jnp.fft.fft2(jnp.fft.fftshift(pad_psf))
    out = jnp.fft.fftshift(jnp.fft.ifft2(sr_fft * otf)).real
    return out[:, :, ::factor, ::factor].astype(sr.dtype)


if __name__ == "__main__":
    key = jax.random.PRNGKey(0)
    k1, k2 = jax.random.split(key)

    B, C, H, W = 2, 4, 16, 16
    factor = 2
    sr = jax.random.normal(k1, (B, C, H, W), dtype=jnp.float32)
    psf = jax.random.uniform(k2, (B, C, 5, 5), dtype=jnp.float32)
    psf = psf / jnp.sum(psf, axis=(-2, -1), keepdims=True)

    out = jax.block_until_ready(conv_projection_pallas(sr, psf, factor=factor))
    ref = jax.block_until_ready(conv_projection_ref(sr, psf, factor))
    assert out.shape == ref.shape, (out.shape, ref.shape)
    max_err = float(jnp.max(jnp.abs(out - ref)))
    assert max_err < 5e-3, f"max abs error {max_err}"
    print("KERNEL_OK")
</pallas_src>

<mosaic_0001>
module attributes {stable_mosaic.version = 11 : i64} {
  func.func @kernel(%arg0: i32, %arg1: memref<1x16x64xf32, #tpu.memory_space<vmem>>, %arg2: memref<1x16x64xf32, #tpu.memory_space<vmem>>, %arg3: memref<16x16xf32, #tpu.memory_space<vmem>>, %arg4: memref<16x16xf32, #tpu.memory_space<vmem>>, %arg5: memref<64x64xf32, #tpu.memory_space<vmem>>, %arg6: memref<64x64xf32, #tpu.memory_space<vmem>>, %arg7: memref<8x16xf32, #tpu.memory_space<vmem>>, %arg8: memref<8x16xf32, #tpu.memory_space<vmem>>, %arg9: memref<64x32xf32, #tpu.memory_space<vmem>>, %arg10: memref<64x32xf32, #tpu.memory_space<vmem>>, %arg11: memref<1x8x32xf32, #tpu.memory_space<vmem>>) attributes {dimension_semantics = [#tpu.dimension_semantics<parallel>], iteration_bounds = array<i64: 2>, scalar_prefetch = 0 : i64, scratch_operands = 0 : i64, tpu.core_type = #tpu.core_type<tc>, window_params = [{transform_indices = @transform_0, window_bounds = array<i64: 1, 16, 64>}, {transform_indices = @transform_1, window_bounds = array<i64: 1, 16, 64>}, {pipeline_mode = #tpu.pipeline_mode<synchronous>, transform_indices = @transform_2, window_bounds = array<i64: 16, 16>}, {pipeline_mode = #tpu.pipeline_mode<synchronous>, transform_indices = @transform_3, window_bounds = array<i64: 16, 16>}, {pipeline_mode = #tpu.pipeline_mode<synchronous>, transform_indices = @transform_4, window_bounds = array<i64: 64, 64>}, {pipeline_mode = #tpu.pipeline_mode<synchronous>, transform_indices = @transform_5, window_bounds = array<i64: 64, 64>}, {pipeline_mode = #tpu.pipeline_mode<synchronous>, transform_indices = @transform_6, window_bounds = array<i64: 8, 16>}, {pipeline_mode = #tpu.pipeline_mode<synchronous>, transform_indices = @transform_7, window_bounds = array<i64: 8, 16>}, {pipeline_mode = #tpu.pipeline_mode<synchronous>, transform_indices = @transform_8, window_bounds = array<i64: 64, 32>}, {pipeline_mode = #tpu.pipeline_mode<synchronous>, transform_indices = @transform_9, window_bounds = array<i64: 64, 32>}, {transform_indices = @transform_10, window_bounds = array<i64: 1, 8, 32>}]} {
    %c0 = arith.constant 0 : index
    %c0_0 = arith.constant 0 : index
    %0 = vector.load %arg3[%c0, %c0_0] : memref<16x16xf32, #tpu.memory_space<vmem>>, vector<16x16xf32>
    %1 = arith.truncf %0 : vector<16x16xf32> to vector<16x16xbf16>
    %2 = arith.extf %1 : vector<16x16xbf16> to vector<16x16xf32>
    %3 = arith.subf %0, %2 : vector<16x16xf32>
    %4 = arith.truncf %3 : vector<16x16xf32> to vector<16x16xbf16>
    %c0_1 = arith.constant 0 : index
    %c0_2 = arith.constant 0 : index
    %5 = vector.load %arg4[%c0_1, %c0_2] : memref<16x16xf32, #tpu.memory_space<vmem>>, vector<16x16xf32>
    %6 = arith.truncf %5 : vector<16x16xf32> to vector<16x16xbf16>
    %7 = arith.extf %6 : vector<16x16xbf16> to vector<16x16xf32>
    %8 = arith.subf %5, %7 : vector<16x16xf32>
    %9 = arith.truncf %8 : vector<16x16xf32> to vector<16x16xbf16>
    %c0_3 = arith.constant 0 : index
    %c0_4 = arith.constant 0 : index
    %10 = vector.load %arg5[%c0_3, %c0_4] : memref<64x64xf32, #tpu.memory_space<vmem>>, vector<64x64xf32>
    %11 = arith.truncf %10 : vector<64x64xf32> to vector<64x64xbf16>
    %12 = arith.extf %11 : vector<64x64xbf16> to vector<64x64xf32>
    %13 = arith.subf %10, %12 : vector<64x64xf32>
    %14 = arith.truncf %13 : vector<64x64xf32> to vector<64x64xbf16>
    %c0_5 = arith.constant 0 : index
    %c0_6 = arith.constant 0 : index
    %15 = vector.load %arg6[%c0_5, %c0_6] : memref<64x64xf32, #tpu.memory_space<vmem>>, vector<64x64xf32>
    %16 = arith.truncf %15 : vector<64x64xf32> to vector<64x64xbf16>
    %17 = arith.extf %16 : vector<64x64xbf16> to vector<64x64xf32>
    %18 = arith.subf %15, %17 : vector<64x64xf32>
    %19 = arith.truncf %18 : vector<64x64xf32> to vector<64x64xbf16>
    %c0_7 = arith.constant 0 : index
    %c0_8 = arith.constant 0 : index
    %20 = vector.load %arg7[%c0_7, %c0_8] : memref<8x16xf32, #tpu.memory_space<vmem>>, vector<8x16xf32>
    %21 = arith.truncf %20 : vector<8x16xf32> to vector<8x16xbf16>
    %22 = arith.extf %21 : vector<8x16xbf16> to vector<8x16xf32>
    %23 = arith.subf %20, %22 : vector<8x16xf32>
    %24 = arith.truncf %23 : vector<8x16xf32> to vector<8x16xbf16>
    %c0_9 = arith.constant 0 : index
    %c0_10 = arith.constant 0 : index
    %25 = vector.load %arg8[%c0_9, %c0_10] : memref<8x16xf32, #tpu.memory_space<vmem>>, vector<8x16xf32>
    %26 = arith.truncf %25 : vector<8x16xf32> to vector<8x16xbf16>
    %27 = arith.extf %26 : vector<8x16xbf16> to vector<8x16xf32>
    %28 = arith.subf %25, %27 : vector<8x16xf32>
    %29 = arith.truncf %28 : vector<8x16xf32> to vector<8x16xbf16>
    %c0_11 = arith.constant 0 : index
    %c0_12 = arith.constant 0 : index
    %30 = vector.load %arg9[%c0_11, %c0_12] : memref<64x32xf32, #tpu.memory_space<vmem>>, vector<64x32xf32>
    %31 = arith.truncf %30 : vector<64x32xf32> to vector<64x32xbf16>
    %32 = arith.extf %31 : vector<64x32xbf16> to vector<64x32xf32>
    %33 = arith.subf %30, %32 : vector<64x32xf32>
    %34 = arith.truncf %33 : vector<64x32xf32> to vector<64x32xbf16>
    %c0_13 = arith.constant 0 : index
    %c0_14 = arith.constant 0 : index
    %35 = vector.load %arg10[%c0_13, %c0_14] : memref<64x32xf32, #tpu.memory_space<vmem>>, vector<64x32xf32>
    %36 = arith.truncf %35 : vector<64x32xf32> to vector<64x32xbf16>
    %37 = arith.extf %36 : vector<64x32xbf16> to vector<64x32xf32>
    %38 = arith.subf %35, %37 : vector<64x32xf32>
    %39 = arith.truncf %38 : vector<64x32xf32> to vector<64x32xbf16>
    %c0_15 = arith.constant 0 : index
    %c0_16 = arith.constant 0 : index
    %c0_17 = arith.constant 0 : index
    %40 = vector.load %arg1[%c0_15, %c0_16, %c0_17] : memref<1x16x64xf32, #tpu.memory_space<vmem>>, vector<1x16x64xf32>
    %41 = vector.shape_cast %40 : vector<1x16x64xf32> to vector<16x64xf32>
    %42 = arith.truncf %41 : vector<16x64xf32> to vector<16x64xbf16>
    %43 = arith.extf %42 : vector<16x64xbf16> to vector<16x64xf32>
    %44 = arith.subf %41, %43 : vector<16x64xf32>
    %45 = arith.truncf %44 : vector<16x64xf32> to vector<16x64xbf16>
    %cst = arith.constant dense<0.000000e+00> : vector<16x64xf32>
    %46 = tpu.matmul %1, %42, %cst {dimension_numbers = #tpu.dot_dimension_numbers<[1], [0], [0], [1], [0, 0, 1, 1], [], []>} : vector<16x16xbf16>, vector<16x64xbf16>, vector<16x64xf32> -> vector<16x64xf32>
    %cst_18 = arith.constant dense<0.000000e+00> : vector<16x64xf32>
    %47 = tpu.matmul %1, %45, %cst_18 {dimension_numbers = #tpu.dot_dimension_numbers<[1], [0], [0], [1], [0, 0, 1, 1], [], []>} : vector<16x16xbf16>, vector<16x64xbf16>, vector<16x64xf32> -> vector<16x64xf32>
    %48 = arith.addf %46, %47 : vector<16x64xf32>
    %cst_19 = arith.constant dense<0.000000e+00> : vector<16x64xf32>
    %49 = tpu.matmul %4, %42, %cst_19 {dimension_numbers = #tpu.dot_dimension_numbers<[1], [0], [0], [1], [0, 0, 1, 1], [], []>} : vector<16x16xbf16>, vector<16x64xbf16>, vector<16x64xf32> -> vector<16x64xf32>
    %50 = arith.addf %48, %49 : vector<16x64xf32>
    %51 = arith.truncf %50 : vector<16x64xf32> to vector<16x64xbf16>
    %52 = arith.extf %51 : vector<16x64xbf16> to vector<16x64xf32>
    %53 = arith.subf %50, %52 : vector<16x64xf32>
    %54 = arith.truncf %53 : vector<16x64xf32> to vector<16x64xbf16>
    %cst_20 = arith.constant dense<0.000000e+00> : vector<16x64xf32>
    %55 = tpu.matmul %6, %42, %cst_20 {dimension_numbers = #tpu.dot_dimension_numbers<[1], [0], [0], [1], [0, 0, 1, 1], [], []>} : vector<16x16xbf16>, vector<16x64xbf16>, vector<16x64xf32> -> vector<16x64xf32>
    %cst_21 = arith.constant dense<0.000000e+00> : vector<16x64xf32>
    %56 = tpu.matmul %6, %45, %cst_21 {dimension_numbers = #tpu.dot_dimension_numbers<[1], [0], [0], [1], [0, 0, 1, 1], [], []>} : vector<16x16xbf16>, vector<16x64xbf16>, vector<16x64xf32> -> vector<16x64xf32>
    %57 = arith.addf %55, %56 : vector<16x64xf32>
    %cst_22 = arith.constant dense<0.000000e+00> : vector<16x64xf32>
    %58 = tpu.matmul %9, %42, %cst_22 {dimension_numbers = #tpu.dot_dimension_numbers<[1], [0], [0], [1], [0, 0, 1, 1], [], []>} : vector<16x16xbf16>, vector<16x64xbf16>, vector<16x64xf32> -> vector<16x64xf32>
    %59 = arith.addf %57, %58 : vector<16x64xf32>
    %60 = arith.truncf %59 : vector<16x64xf32> to vector<16x64xbf16>
    %61 = arith.extf %60 : vector<16x64xbf16> to vector<16x64xf32>
    %62 = arith.subf %59, %61 : vector<16x64xf32>
    %63 = arith.truncf %62 : vector<16x64xf32> to vector<16x64xbf16>
    %cst_23 = arith.constant dense<0.000000e+00> : vector<16x64xf32>
    %64 = tpu.matmul %51, %11, %cst_23 {dimension_numbers = #tpu.dot_dimension_numbers<[1], [0], [0], [1], [0, 0, 1, 1], [], []>} : vector<16x64xbf16>, vector<64x64xbf16>, vector<16x64xf32> -> vector<16x64xf32>
    %cst_24 = arith.constant dense<0.000000e+00> : vector<16x64xf32>
    %65 = tpu.matmul %51, %14, %cst_24 {dimension_numbers = #tpu.dot_dimension_numbers<[1], [0], [0], [1], [0, 0, 1, 1], [], []>} : vector<16x64xbf16>, vector<64x64xbf16>, vector<16x64xf32> -> vector<16x64xf32>
    %66 = arith.addf %64, %65 : vector<16x64xf32>
    %cst_25 = arith.constant dense<0.000000e+00> : vector<16x64xf32>
    %67 = tpu.matmul %54, %11, %cst_25 {dimension_numbers = #tpu.dot_dimension_numbers<[1], [0], [0], [1], [0, 0, 1, 1], [], []>} : vector<16x64xbf16>, vector<64x64xbf16>, vector<16x64xf32> -> vector<16x64xf32>
    %68 = arith.addf %66, %67 : vector<16x64xf32>
    %cst_26 = arith.constant dense<0.000000e+00> : vector<16x64xf32>
    %69 = tpu.matmul %60, %16, %cst_26 {dimension_numbers = #tpu.dot_dimension_numbers<[1], [0], [0], [1], [0, 0, 1, 1], [], []>} : vector<16x64xbf16>, vector<64x64xbf16>, vector<16x64xf32> -> vector<16x64xf32>
    %cst_27 = arith.constant dense<0.000000e+00> : vector<16x64xf32>
    %70 = tpu.matmul %60, %19, %cst_27 {dimension_numbers = #tpu.dot_dimension_numbers<[1], [0], [0], [1], [0, 0, 1, 1], [], []>} : vector<16x64xbf16>, vector<64x64xbf16>, vector<16x64xf32> -> vector<16x64xf32>
    %71 = arith.addf %69, %70 : vector<16x64xf32>
    %cst_28 = arith.constant dense<0.000000e+00> : vector<16x64xf32>
    %72 = tpu.matmul %63, %16, %cst_28 {dimension_numbers = #tpu.dot_dimension_numbers<[1], [0], [0], [1], [0, 0, 1, 1], [], []>} : vector<16x64xbf16>, vector<64x64xbf16>, vector<16x64xf32> -> vector<16x64xf32>
    %73 = arith.addf %71, %72 : vector<16x64xf32>
    %74 = arith.subf %68, %73 : vector<16x64xf32>
    %cst_29 = arith.constant dense<0.000000e+00> : vector<16x64xf32>
    %75 = tpu.matmul %51, %16, %cst_29 {dimension_numbers = #tpu.dot_dimension_numbers<[1], [0], [0], [1], [0, 0, 1, 1], [], []>} : vector<16x64xbf16>, vector<64x64xbf16>, vector<16x64xf32> -> vector<16x64xf32>
    %cst_30 = arith.constant dense<0.000000e+00> : vector<16x64xf32>
    %76 = tpu.matmul %51, %19, %cst_30 {dimension_numbers = #tpu.dot_dimension_numbers<[1], [0], [0], [1], [0, 0, 1, 1], [], []>} : vector<16x64xbf16>, vector<64x64xbf16>, vector<16x64xf32> -> vector<16x64xf32>
    %77 = arith.addf %75, %76 : vector<16x64xf32>
    %cst_31 = arith.constant dense<0.000000e+00> : vector<16x64xf32>
    %78 = tpu.matmul %54, %16, %cst_31 {dimension_numbers = #tpu.dot_dimension_numbers<[1], [0], [0], [1], [0, 0, 1, 1], [], []>} : vector<16x64xbf16>, vector<64x64xbf16>, vector<16x64xf32> -> vector<16x64xf32>
    %79 = arith.addf %77, %78 : vector<16x64xf32>
    %cst_32 = arith.constant dense<0.000000e+00> : vector<16x64xf32>
    %80 = tpu.matmul %60, %11, %cst_32 {dimension_numbers = #tpu.dot_dimension_numbers<[1], [0], [0], [1], [0, 0, 1, 1], [], []>} : vector<16x64xbf16>, vector<64x64xbf16>, vector<16x64xf32> -> vector<16x64xf32>
    %cst_33 = arith.constant dense<0.000000e+00> : vector<16x64xf32>
    %81 = tpu.matmul %60, %14, %cst_33 {dimension_numbers = #tpu.dot_dimension_numbers<[1], [0], [0], [1], [0, 0, 1, 1], [], []>} : vector<16x64xbf16>, vector<64x64xbf16>, vector<16x64xf32> -> vector<16x64xf32>
    %82 = arith.addf %80, %81 : vector<16x64xf32>
    %cst_34 = arith.constant dense<0.000000e+00> : vector<16x64xf32>
    %83 = tpu.matmul %63, %11, %cst_34 {dimension_numbers = #tpu.dot_dimension_numbers<[1], [0], [0], [1], [0, 0, 1, 1], [], []>} : vector<16x64xbf16>, vector<64x64xbf16>, vector<16x64xf32> -> vector<16x64xf32>
    %84 = arith.addf %82, %83 : vector<16x64xf32>
    %85 = arith.addf %79, %84 : vector<16x64xf32>
    %c0_35 = arith.constant 0 : index
    %c0_36 = arith.constant 0 : index
    %c0_37 = arith.constant 0 : index
    %86 = vector.load %arg2[%c0_35, %c0_36, %c0_37] : memref<1x16x64xf32, #tpu.memory_space<vmem>>, vector<1x16x64xf32>
    %87 = vector.shape_cast %86 : vector<1x16x64xf32> to vector<16x64xf32>
    %88 = arith.truncf %87 : vector<16x64xf32> to vector<16x64xbf16>
    %89 = arith.extf %88 : vector<16x64xbf16> to vector<16x64xf32>
    %90 = arith.subf %87, %89 : vector<16x64xf32>
    %91 = arith.truncf %90 : vector<16x64xf32> to vector<16x64xbf16>
    %cst_38 = arith.constant dense<0.000000e+00> : vector<16x64xf32>
    %92 = tpu.matmul %1, %88, %cst_38 {dimension_numbers = #tpu.dot_dimension_numbers<[1], [0], [0], [1], [0, 0, 1, 1], [], []>} : vector<16x16xbf16>, vector<16x64xbf16>, vector<16x64xf32> -> vector<16x64xf32>
    %cst_39 = arith.constant dense<0.000000e+00> : vector<16x64xf32>
    %93 = tpu.matmul %1, %91, %cst_39 {dimension_numbers = #tpu.dot_dimension_numbers<[1], [0], [0], [1], [0, 0, 1, 1], [], []>} : vector<16x16xbf16>, vector<16x64xbf16>, vector<16x64xf32> -> vector<16x64xf32>
    %94 = arith.addf %92, %93 : vector<16x64xf32>
    %cst_40 = arith.constant dense<0.000000e+00> : vector<16x64xf32>
    %95 = tpu.matmul %4, %88, %cst_40 {dimension_numbers = #tpu.dot_dimension_numbers<[1], [0], [0], [1], [0, 0, 1, 1], [], []>} : vector<16x16xbf16>, vector<16x64xbf16>, vector<16x64xf32> -> vector<16x64xf32>
    %96 = arith.addf %94, %95 : vector<16x64xf32>
    %97 = arith.truncf %96 : vector<16x64xf32> to vector<16x64xbf16>
    %98 = arith.extf %97 : vector<16x64xbf16> to vector<16x64xf32>
    %99 = arith.subf %96, %98 : vector<16x64xf32>
    %100 = arith.truncf %99 : vector<16x64xf32> to vector<16x64xbf16>
    %cst_41 = arith.constant dense<0.000000e+00> : vector<16x64xf32>
    %101 = tpu.matmul %6, %88, %cst_41 {dimension_numbers = #tpu.dot_dimension_numbers<[1], [0], [0], [1], [0, 0, 1, 1], [], []>} : vector<16x16xbf16>, vector<16x64xbf16>, vector<16x64xf32> -> vector<16x64xf32>
    %cst_42 = arith.constant dense<0.000000e+00> : vector<16x64xf32>
    %102 = tpu.matmul %6, %91, %cst_42 {dimension_numbers = #tpu.dot_dimension_numbers<[1], [0], [0], [1], [0, 0, 1, 1], [], []>} : vector<16x16xbf16>, vector<16x64xbf16>, vector<16x64xf32> -> vector<16x64xf32>
    %103 = arith.addf %101, %102 : vector<16x64xf32>
    %cst_43 = arith.constant dense<0.000000e+00> : vector<16x64xf32>
    %104 = tpu.matmul %9, %88, %cst_43 {dimension_numbers = #tpu.dot_dimension_numbers<[1], [0], [0], [1], [0, 0, 1, 1], [], []>} : vector<16x16xbf16>, vector<16x64xbf16>, vector<16x64xf32> -> vector<16x64xf32>
    %105 = arith.addf %103, %104 : vector<16x64xf32>
    %106 = arith.truncf %105 : vector<16x64xf32> to vector<16x64xbf16>
    %107 = arith.extf %106 : vector<16x64xbf16> to vector<16x64xf32>
    %108 = arith.subf %105, %107 : vector<16x64xf32>
    %109 = arith.truncf %108 : vector<16x64xf32> to vector<16x64xbf16>
    %cst_44 = arith.constant dense<0.000000e+00> : vector<16x64xf32>
    %110 = tpu.matmul %97, %11, %cst_44 {dimension_numbers = #tpu.dot_dimension_numbers<[1], [0], [0], [1], [0, 0, 1, 1], [], []>} : vector<16x64xbf16>, vector<64x64xbf16>, vector<16x64xf32> -> vector<16x64xf32>
    %cst_45 = arith.constant dense<0.000000e+00> : vector<16x64xf32>
    %111 = tpu.matmul %97, %14, %cst_45 {dimension_numbers = #tpu.dot_dimension_numbers<[1], [0], [0], [1], [0, 0, 1, 1], [], []>} : vector<16x64xbf16>, vector<64x64xbf16>, vector<16x64xf32> -> vector<16x64xf32>
    %112 = arith.addf %110, %111 : vector<16x64xf32>
    %cst_46 = arith.constant dense<0.000000e+00> : vector<16x64xf32>
    %113 = tpu.matmul %100, %11, %cst_46 {dimension_numbers = #tpu.dot_dimension_numbers<[1], [0], [0], [1], [0, 0, 1, 1], [], []>} : vector<16x64xbf16>, vector<64x64xbf16>, vector<16x64xf32> -> vector<16x64xf32>
    %114 = arith.addf %112, %113 : vector<16x64xf32>
    %cst_47 = arith.constant dense<0.000000e+00> : vector<16x64xf32>
    %115 = tpu.matmul %106, %16, %cst_47 {dimension_numbers = #tpu.dot_dimension_numbers<[1], [0], [0], [1], [0, 0, 1, 1], [], []>} : vector<16x64xbf16>, vector<64x64xbf16>, vector<16x64xf32> -> vector<16x64xf32>
    %cst_48 = arith.constant dense<0.000000e+00> : vector<16x64xf32>
    %116 = tpu.matmul %106, %19, %cst_48 {dimension_numbers = #tpu.dot_dimension_numbers<[1], [0], [0], [1], [0, 0, 1, 1], [], []>} : vector<16x64xbf16>, vector<64x64xbf16>, vector<16x64xf32> -> vector<16x64xf32>
    %117 = arith.addf %115, %116 : vector<16x64xf32>
    %cst_49 = arith.constant dense<0.000000e+00> : vector<16x64xf32>
    %118 = tpu.matmul %109, %16, %cst_49 {dimension_numbers = #tpu.dot_dimension_numbers<[1], [0], [0], [1], [0, 0, 1, 1], [], []>} : vector<16x64xbf16>, vector<64x64xbf16>, vector<16x64xf32> -> vector<16x64xf32>
    %119 = arith.addf %117, %118 : vector<16x64xf32>
    %120 = arith.subf %114, %119 : vector<16x64xf32>
    %cst_50 = arith.constant dense<0.000000e+00> : vector<16x64xf32>
    %121 = tpu.matmul %97, %16, %cst_50 {dimension_numbers = #tpu.dot_dimension_numbers<[1], [0], [0], [1], [0, 0, 1, 1], [], []>} : vector<16x64xbf16>, vector<64x64xbf16>, vector<16x64xf32> -> vector<16x64xf32>
    %cst_51 = arith.constant dense<0.000000e+00> : vector<16x64xf32>
    %122 = tpu.matmul %97, %19, %cst_51 {dimension_numbers = #tpu.dot_dimension_numbers<[1], [0], [0], [1], [0, 0, 1, 1], [], []>} : vector<16x64xbf16>, vector<64x64xbf16>, vector<16x64xf32> -> vector<16x64xf32>
    %123 = arith.addf %121, %122 : vector<16x64xf32>
    %cst_52 = arith.constant dense<0.000000e+00> : vector<16x64xf32>
    %124 = tpu.matmul %100, %16, %cst_52 {dimension_numbers = #tpu.dot_dimension_numbers<[1], [0], [0], [1], [0, 0, 1, 1], [], []>} : vector<16x64xbf16>, vector<64x64xbf16>, vector<16x64xf32> -> vector<16x64xf32>
    %125 = arith.addf %123, %124 : vector<16x64xf32>
    %cst_53 = arith.constant dense<0.000000e+00> : vector<16x64xf32>
    %126 = tpu.matmul %106, %11, %cst_53 {dimension_numbers = #tpu.dot_dimension_numbers<[1], [0], [0], [1], [0, 0, 1, 1], [], []>} : vector<16x64xbf16>, vector<64x64xbf16>, vector<16x64xf32> -> vector<16x64xf32>
    %cst_54 = arith.constant dense<0.000000e+00> : vector<16x64xf32>
    %127 = tpu.matmul %106, %14, %cst_54 {dimension_numbers = #tpu.dot_dimension_numbers<[1], [0], [0], [1], [0, 0, 1, 1], [], []>} : vector<16x64xbf16>, vector<64x64xbf16>, vector<16x64xf32> -> vector<16x64xf32>
    %128 = arith.addf %126, %127 : vector<16x64xf32>
    %cst_55 = arith.constant dense<0.000000e+00> : vector<16x64xf32>
    %129 = tpu.matmul %109, %11, %cst_55 {dimension_numbers = #tpu.dot_dimension_numbers<[1], [0], [0], [1], [0, 0, 1, 1], [], []>} : vector<16x64xbf16>, vector<64x64xbf16>, vector<16x64xf32> -> vector<16x64xf32>
    %130 = arith.addf %128, %129 : vector<16x64xf32>
    %131 = arith.addf %125, %130 : vector<16x64xf32>
    %132 = arith.mulf %74, %120 : vector<16x64xf32>
    %133 = arith.mulf %85, %131 : vector<16x64xf32>
    %134 = arith.subf %132, %133 : vector<16x64xf32>
    %135 = arith.truncf %134 : vector<16x64xf32> to vector<16x64xbf16>
    %136 = arith.extf %135 : vector<16x64xbf16> to vector<16x64xf32>
    %137 = arith.subf %134, %136 : vector<16x64xf32>
    %138 = arith.truncf %137 : vector<16x64xf32> to vector<16x64xbf16>
    %139 = arith.mulf %74, %131 : vector<16x64xf32>
    %140 = arith.mulf %85, %120 : vector<16x64xf32>
    %141 = arith.addf %139, %140 : vector<16x64xf32>
    %142 = arith.truncf %141 : vector<16x64xf32> to vector<16x64xbf16>
    %143 = arith.extf %142 : vector<16x64xbf16> to vector<16x64xf32>
    %144 = arith.subf %141, %143 : vector<16x64xf32>
    %145 = arith.truncf %144 : vector<16x64xf32> to vector<16x64xbf16>
    %cst_56 = arith.constant dense<0.000000e+00> : vector<8x64xf32>
    %146 = tpu.matmul %21, %135, %cst_56 {dimension_numbers = #tpu.dot_dimension_numbers<[1], [0], [0], [1], [0, 0, 1, 1], [], []>} : vector<8x16xbf16>, vector<16x64xbf16>, vector<8x64xf32> -> vector<8x64xf32>
    %cst_57 = arith.constant dense<0.000000e+00> : vector<8x64xf32>
    %147 = tpu.matmul %21, %138, %cst_57 {dimension_numbers = #tpu.dot_dimension_numbers<[1], [0], [0], [1], [0, 0, 1, 1], [], []>} : vector<8x16xbf16>, vector<16x64xbf16>, vector<8x64xf32> -> vector<8x64xf32>
    %148 = arith.addf %146, %147 : vector<8x64xf32>
    %cst_58 = arith.constant dense<0.000000e+00> : vector<8x64xf32>
    %149 = tpu.matmul %24, %135, %cst_58 {dimension_numbers = #tpu.dot_dimension_numbers<[1], [0], [0], [1], [0, 0, 1, 1], [], []>} : vector<8x16xbf16>, vector<16x64xbf16>, vector<8x64xf32> -> vector<8x64xf32>
    %150 = arith.addf %148, %149 : vector<8x64xf32>
    %cst_59 = arith.constant dense<0.000000e+00> : vector<8x64xf32>
    %151 = tpu.matmul %26, %142, %cst_59 {dimension_numbers = #tpu.dot_dimension_numbers<[1], [0], [0], [1], [0, 0, 1, 1], [], []>} : vector<8x16xbf16>, vector<16x64xbf16>, vector<8x64xf32> -> vector<8x64xf32>
    %cst_60 = arith.constant dense<0.000000e+00> : vector<8x64xf32>
    %152 = tpu.matmul %26, %145, %cst_60 {dimension_numbers = #tpu.dot_dimension_numbers<[1], [0], [0], [1], [0, 0, 1, 1], [], []>} : vector<8x16xbf16>, vector<16x64xbf16>, vector<8x64xf32> -> vector<8x64xf32>
    %153 = arith.addf %151, %152 : vector<8x64xf32>
    %cst_61 = arith.constant dense<0.000000e+00> : vector<8x64xf32>
    %154 = tpu.matmul %29, %142, %cst_61 {dimension_numbers = #tpu.dot_dimension_numbers<[1], [0], [0], [1], [0, 0, 1, 1], [], []>} : vector<8x16xbf16>, vector<16x64xbf16>, vector<8x64xf32> -> vector<8x64xf32>
    %155 = arith.addf %153, %154 : vector<8x64xf32>
    %156 = arith.subf %150, %155 : vector<8x64xf32>
    %157 = arith.truncf %156 : vector<8x64xf32> to vector<8x64xbf16>
    %158 = arith.extf %157 : vector<8x64xbf16> to vector<8x64xf32>
    %159 = arith.subf %156, %158 : vector<8x64xf32>
    %160 = arith.truncf %159 : vector<8x64xf32> to vector<8x64xbf16>
    %cst_62 = arith.constant dense<0.000000e+00> : vector<8x64xf32>
    %161 = tpu.matmul %21, %142, %cst_62 {dimension_numbers = #tpu.dot_dimension_numbers<[1], [0], [0], [1], [0, 0, 1, 1], [], []>} : vector<8x16xbf16>, vector<16x64xbf16>, vector<8x64xf32> -> vector<8x64xf32>
    %cst_63 = arith.constant dense<0.000000e+00> : vector<8x64xf32>
    %162 = tpu.matmul %21, %145, %cst_63 {dimension_numbers = #tpu.dot_dimension_numbers<[1], [0], [0], [1], [0, 0, 1, 1], [], []>} : vector<8x16xbf16>, vector<16x64xbf16>, vector<8x64xf32> -> vector<8x64xf32>
    %163 = arith.addf %161, %162 : vector<8x64xf32>
    %cst_64 = arith.constant dense<0.000000e+00> : vector<8x64xf32>
    %164 = tpu.matmul %24, %142, %cst_64 {dimension_numbers = #tpu.dot_dimension_numbers<[1], [0], [0], [1], [0, 0, 1, 1], [], []>} : vector<8x16xbf16>, vector<16x64xbf16>, vector<8x64xf32> -> vector<8x64xf32>
    %165 = arith.addf %163, %164 : vector<8x64xf32>
    %cst_65 = arith.constant dense<0.000000e+00> : vector<8x64xf32>
    %166 = tpu.matmul %26, %135, %cst_65 {dimension_numbers = #tpu.dot_dimension_numbers<[1], [0], [0], [1], [0, 0, 1, 1], [], []>} : vector<8x16xbf16>, vector<16x64xbf16>, vector<8x64xf32> -> vector<8x64xf32>
    %cst_66 = arith.constant dense<0.000000e+00> : vector<8x64xf32>
    %167 = tpu.matmul %26, %138, %cst_66 {dimension_numbers = #tpu.dot_dimension_numbers<[1], [0], [0], [1], [0, 0, 1, 1], [], []>} : vector<8x16xbf16>, vector<16x64xbf16>, vector<8x64xf32> -> vector<8x64xf32>
    %168 = arith.addf %166, %167 : vector<8x64xf32>
    %cst_67 = arith.constant dense<0.000000e+00> : vector<8x64xf32>
    %169 = tpu.matmul %29, %135, %cst_67 {dimension_numbers = #tpu.dot_dimension_numbers<[1], [0], [0], [1], [0, 0, 1, 1], [], []>} : vector<8x16xbf16>, vector<16x64xbf16>, vector<8x64xf32> -> vector<8x64xf32>
    %170 = arith.addf %168, %169 : vector<8x64xf32>
    %171 = arith.addf %165, %170 : vector<8x64xf32>
    %172 = arith.truncf %171 : vector<8x64xf32> to vector<8x64xbf16>
    %173 = arith.extf %172 : vector<8x64xbf16> to vector<8x64xf32>
    %174 = arith.subf %171, %173 : vector<8x64xf32>
    %175 = arith.truncf %174 : vector<8x64xf32> to vector<8x64xbf16>
    %cst_68 = arith.constant dense<0.000000e+00> : vector<8x32xf32>
    %176 = tpu.matmul %157, %31, %cst_68 {dimension_numbers = #tpu.dot_dimension_numbers<[1], [0], [0], [1], [0, 0, 1, 1], [], []>} : vector<8x64xbf16>, vector<64x32xbf16>, vector<8x32xf32> -> vector<8x32xf32>
    %cst_69 = arith.constant dense<0.000000e+00> : vector<8x32xf32>
    %177 = tpu.matmul %157, %34, %cst_69 {dimension_numbers = #tpu.dot_dimension_numbers<[1], [0], [0], [1], [0, 0, 1, 1], [], []>} : vector<8x64xbf16>, vector<64x32xbf16>, vector<8x32xf32> -> vector<8x32xf32>
    %178 = arith.addf %176, %177 : vector<8x32xf32>
    %cst_70 = arith.constant dense<0.000000e+00> : vector<8x32xf32>
    %179 = tpu.matmul %160, %31, %cst_70 {dimension_numbers = #tpu.dot_dimension_numbers<[1], [0], [0], [1], [0, 0, 1, 1], [], []>} : vector<8x64xbf16>, vector<64x32xbf16>, vector<8x32xf32> -> vector<8x32xf32>
    %180 = arith.addf %178, %179 : vector<8x32xf32>
    %cst_71 = arith.constant dense<0.000000e+00> : vector<8x32xf32>
    %181 = tpu.matmul %172, %36, %cst_71 {dimension_numbers = #tpu.dot_dimension_numbers<[1], [0], [0], [1], [0, 0, 1, 1], [], []>} : vector<8x64xbf16>, vector<64x32xbf16>, vector<8x32xf32> -> vector<8x32xf32>
    %cst_72 = arith.constant dense<0.000000e+00> : vector<8x32xf32>
    %182 = tpu.matmul %172, %39, %cst_72 {dimension_numbers = #tpu.dot_dimension_numbers<[1], [0], [0], [1], [0, 0, 1, 1], [], []>} : vector<8x64xbf16>, vector<64x32xbf16>, vector<8x32xf32> -> vector<8x32xf32>
    %183 = arith.addf %181, %182 : vector<8x32xf32>
    %cst_73 = arith.constant dense<0.000000e+00> : vector<8x32xf32>
    %184 = tpu.matmul %175, %36, %cst_73 {dimension_numbers = #tpu.dot_dimension_numbers<[1], [0], [0], [1], [0, 0, 1, 1], [], []>} : vector<8x64xbf16>, vector<64x32xbf16>, vector<8x32xf32> -> vector<8x32xf32>
    %185 = arith.addf %183, %184 : vector<8x32xf32>
    %186 = arith.subf %180, %185 : vector<8x32xf32>
    %c0_74 = arith.constant 0 : index
    %c0_75 = arith.constant 0 : index
    %c0_76 = arith.constant 0 : index
    %187 = vector.load %arg11[%c0_74, %c0_75, %c0_76] : memref<1x8x32xf32, #tpu.memory_space<vmem>>, vector<1x8x32xf32>
    %188 = vector.shape_cast %187 : vector<1x8x32xf32> to vector<8x32xf32>
    %189 = vector.shape_cast %186 : vector<8x32xf32> to vector<1x8x32xf32>
    tpu.vector_store %arg11[%c0_74, %c0_75, %c0_76], %189 {strides = array<i32>} : memref<1x8x32xf32, #tpu.memory_space<vmem>>, vector<1x8x32xf32>,
    return
  }
  func.func @transform_0(%arg0: i32) -> (i32, i32, i32) {
    %c0_i32 = arith.constant 0 : i32
    %c0_i32_0 = arith.constant 0 : i32
    %c0_i32_1 = arith.constant 0 : i32
    return %arg0, %c0_i32, %c0_i32_0 : i32, i32, i32
  }
  func.func @transform_1(%arg0: i32) -> (i32, i32, i32) {
    %c0_i32 = arith.constant 0 : i32
    %c0_i32_0 = arith.constant 0 : i32
    %c0_i32_1 = arith.constant 0 : i32
    return %arg0, %c0_i32, %c0_i32_0 : i32, i32, i32
  }
  func.func @transform_2(%arg0: i32) -> (i32, i32) {
    %c0_i32 = arith.constant 0 : i32
    %c0_i32_0 = arith.constant 0 : i32
    %c0_i32_1 = arith.constant 0 : i32
    return %c0_i32, %c0_i32_0 : i32, i32
  }
  func.func @transform_3(%arg0: i32) -> (i32, i32) {
    %c0_i32 = arith.constant 0 : i32
    %c0_i32_0 = arith.constant 0 : i32
    %c0_i32_1 = arith.constant 0 : i32
    return %c0_i32, %c0_i32_0 : i32, i32
  }
  func.func @transform_4(%arg0: i32) -> (i32, i32) {
    %c0_i32 = arith.constant 0 : i32
    %c0_i32_0 = arith.constant 0 : i32
    %c0_i32_1 = arith.constant 0 : i32
    return %c0_i32, %c0_i32_0 : i32, i32
  }
  func.func @transform_5(%arg0: i32) -> (i32, i32) {
    %c0_i32 = arith.constant 0 : i32
    %c0_i32_0 = arith.constant 0 : i32
    %c0_i32_1 = arith.constant 0 : i32
    return %c0_i32, %c0_i32_0 : i32, i32
  }
  func.func @transform_6(%arg0: i32) -> (i32, i32) {
    %c0_i32 = arith.constant 0 : i32
    %c0_i32_0 = arith.constant 0 : i32
    %c0_i32_1 = arith.constant 0 : i32
    return %c0_i32, %c0_i32_0 : i32, i32
  }
  func.func @transform_7(%arg0: i32) -> (i32, i32) {
    %c0_i32 = arith.constant 0 : i32
    %c0_i32_0 = arith.constant 0 : i32
    %c0_i32_1 = arith.constant 0 : i32
    return %c0_i32, %c0_i32_0 : i32, i32
  }
  func.func @transform_8(%arg0: i32) -> (i32, i32) {
    %c0_i32 = arith.constant 0 : i32
    %c0_i32_0 = arith.constant 0 : i32
    %c0_i32_1 = arith.constant 0 : i32
    return %c0_i32, %c0_i32_0 : i32, i32
  }
  func.func @transform_9(%arg0: i32) -> (i32, i32) {
    %c0_i32 = arith.constant 0 : i32
    %c0_i32_0 = arith.constant 0 : i32
    %c0_i32_1 = arith.constant 0 : i32
    return %c0_i32, %c0_i32_0 : i32, i32
  }
  func.func @transform_10(%arg0: i32) -> (i32, i32, i32) {
    %c0_i32 = arith.constant 0 : i32
    %c0_i32_0 = arith.constant 0 : i32
    %c0_i32_1 = arith.constant 0 : i32
    return %arg0, %c0_i32, %c0_i32_0 : i32, i32, i32
  }
}

</mosaic_0001>

<llo_original>
// kernel: conv_projection_pallas.1
$region0: #{conv_projection_pallas.1}
  #allocation0 [shape = 'u32[]', space=smem, size = 0x4, offset = 0x4, fixed_abs, tag = 'smem constant byte address 0x4 - core index']
  #allocation1 [shape = 'u32[144,128]{1,0:T(1,128)}', space=vmem, size = 0x12000, scoped, tag = 'internal scratch']
  %s0 = inlined_call_operand.vmem [shape: f32[2,16,64], index: 0, kind: input, shape index: {}]
  %s1 = inlined_call_operand.vmem [shape: f32[2,16,64], index: 1, kind: input, shape index: {}]
  %s2 = inlined_call_operand.vmem [shape: f32[16,16], index: 2, kind: input, shape index: {}]
  %s3 = inlined_call_operand.vmem [shape: f32[16,16], index: 3, kind: input, shape index: {}]
  %s4 = inlined_call_operand.vmem [shape: f32[64,64], index: 4, kind: input, shape index: {}]
  %s5 = inlined_call_operand.vmem [shape: f32[64,64], index: 5, kind: input, shape index: {}]
  %s6 = inlined_call_operand.vmem [shape: f32[8,16], index: 6, kind: input, shape index: {}]
  %s7 = inlined_call_operand.vmem [shape: f32[8,16], index: 7, kind: input, shape index: {}]
  %s8 = inlined_call_operand.vmem [shape: f32[64,32], index: 8, kind: input, shape index: {}]
  %s9 = inlined_call_operand.vmem [shape: f32[64,32], index: 9, kind: input, shape index: {}]
  %s10 = inlined_call_operand.vmem [shape: f32[2,8,32], index: 10, kind: output, shape index: {}]
  %s11 = sld [smem:[#allocation0]]
  $region73: #{conv_projection_pallas.1} parent=0
    _
  %s13 = ssub.s32 1, %s11
  %s14 = scalar_select 0, %s13, %s11
  loop: start=0, step=1, limit=4
  $region2: #{conv_projection_pallas.1} parent=0 // loop_pre_header
    _
  $region3: #{conv_projection_pallas.1} parent=0 // loop_header
    %s16 = sphi 0, %s20
    %p17 = scmp.ge.s32.totalorder %s16, 4
    %s26 = sphi 0, %s28
    %s29 = sphi 0, %s26
    %s30 = sphi 0, %s29
    %s46 = sphi 0, %s30
    %s52 = sphi 0, %s54
    %s55 = sphi 0, %s52
    %s56 = sphi 0, %s55
    %s72 = sphi 0, %s56
    %s76 = sphi 0, %s76
    %s78 = sphi 0, %s76
    %s79 = sphi 0, %s78
    %s93 = sphi 0, %s79
    %s97 = sphi 0, %s97
    %s99 = sphi 0, %s97
    %s100 = sphi 0, %s99
    %s114 = sphi 0, %s100
    %s118 = sphi 0, %s118
    %s120 = sphi 0, %s118
    %s121 = sphi 0, %s120
    %s135 = sphi 0, %s121
    %s139 = sphi 0, %s139
    %s141 = sphi 0, %s139
    %s142 = sphi 0, %s141
    %s156 = sphi 0, %s142
    %s160 = sphi 0, %s160
    %s162 = sphi 0, %s160
    %s163 = sphi 0, %s162
    %s177 = sphi 0, %s163
    %s181 = sphi 0, %s181
    %s183 = sphi 0, %s181
    %s184 = sphi 0, %s183
    %s198 = sphi 0, %s184
    %s202 = sphi 0, %s202
    %s204 = sphi 0, %s202
    %s205 = sphi 0, %s204
    %s219 = sphi 0, %s205
    %s223 = sphi 0, %s223
    %s225 = sphi 0, %s223
    %s226 = sphi 0, %s225
    %s240 = sphi 0, %s226
    %s246 = sphi 0, %s248
    %s249 = sphi 0, %s246
    %s250 = sphi 0, %s249
    %s266 = sphi 0, %s250
  $region4: #{conv_projection_pallas.1} parent=0 // loop_header_branch
    %19 = sbr.rel (%p17) target = $region8
  $region5: #{conv_projection_pallas.1} parent=0 // loop_body
    %s21 = ssub.s32 %s16, 1
    %s22 = ssub.s32 %s16, 2
    %s23 = sadd.s32 %s16, 1
    %s24 = ssub.s32 %s16, %s23
    %p25 = scmp.eq.s32.totalorder %s24, 0
    %s27 = sadd.s32 %s26, 1
    %s28 = scalar_select %p25, %s26, %s27
    %p31 = pneg %p25
    %p32 = scmp.eq.s32.totalorder %s16, 1
    %p33 = por %p31, %p32
    %p34 = scmp.ne.s32.totalorder %s26, %s29
    %p35 = scmp.eq.s32.totalorder %s16, 0
    %p36 = por %p34, %p35
    %p37 = scmp.ne.s32.totalorder %s26, %s29
    %p38 = scmp.eq.s32.totalorder %s21, 1
    %p39 = por %p37, %p38
    %p40 = scmp.ne.s32.totalorder %s29, %s30
    %p41 = scmp.eq.s32.totalorder %s21, 0
    %p42 = por %p40, %p41
    %p43 = scmp.ne.s32.totalorder %s29, %s30
    %p44 = scmp.eq.s32.totalorder %s22, 1
    %p45 = por %p43, %p44
    %p47 = scmp.ne.s32.totalorder %s30, %s46
    %p48 = scmp.eq.s32.totalorder %s22, 0
    %p49 = por %p47, %p48
    %s50 = ssub.s32 %s16, %s23
    %p51 = scmp.eq.s32.totalorder %s50, 0
    %s53 = sadd.s32 %s52, 1
    %s54 = scalar_select %p51, %s52, %s53
    %p57 = pneg %p51
    %p58 = scmp.eq.s32.totalorder %s16, 1
    %p59 = por %p57, %p58
    %p60 = scmp.ne.s32.totalorder %s52, %s55
    %p61 = scmp.eq.s32.totalorder %s16, 0
    %p62 = por %p60, %p61
    %p63 = scmp.ne.s32.totalorder %s52, %s55
    %p64 = scmp.eq.s32.totalorder %s21, 1
    %p65 = por %p63, %p64
    %p66 = scmp.ne.s32.totalorder %s55, %s56
    %p67 = scmp.eq.s32.totalorder %s21, 0
    %p68 = por %p66, %p67
    %p69 = scmp.ne.s32.totalorder %s55, %s56
    %p70 = scmp.eq.s32.totalorder %s22, 1
    %p71 = por %p69, %p70
    %p73 = scmp.ne.s32.totalorder %s56, %s72
    %p74 = scmp.eq.s32.totalorder %s22, 0
    %p75 = por %p73, %p74
    %s77 = sadd.s32 %s76, 1
    %p80 = scmp.eq.s32.totalorder %s16, 1
    %p81 = scmp.ne.s32.totalorder %s76, %s78
    %p82 = scmp.eq.s32.totalorder %s16, 0
    %p83 = por %p81, %p82
    %p84 = scmp.ne.s32.totalorder %s76, %s78
    %p85 = scmp.eq.s32.totalorder %s21, 1
    %p86 = por %p84, %p85
    %p87 = scmp.ne.s32.totalorder %s78, %s79
    %p88 = scmp.eq.s32.totalorder %s21, 0
    %p89 = por %p87, %p88
    %p90 = scmp.ne.s32.totalorder %s78, %s79
    %p91 = scmp.eq.s32.totalorder %s22, 1
    %p92 = por %p90, %p91
    %p94 = scmp.ne.s32.totalorder %s79, %s93
    %p95 = scmp.eq.s32.totalorder %s22, 0
    %p96 = por %p94, %p95
    %s98 = sadd.s32 %s97, 1
    %p101 = scmp.eq.s32.totalorder %s16, 1
    %p102 = scmp.ne.s32.totalorder %s97, %s99
    %p103 = scmp.eq.s32.totalorder %s16, 0
    %p104 = por %p102, %p103
    %p105 = scmp.ne.s32.totalorder %s97, %s99
    %p106 = scmp.eq.s32.totalorder %s21, 1
    %p107 = por %p105, %p106
    %p108 = scmp.ne.s32.totalorder %s99, %s100
    %p109 = scmp.eq.s32.totalorder %s21, 0
    %p110 = por %p108, %p109
    %p111 = scmp.ne.s32.totalorder %s99, %s100
    %p112 = scmp.eq.s32.totalorder %s22, 1
    %p113 = por %p111, %p112
    %p115 = scmp.ne.s32.totalorder %s100, %s114
    %p116 = scmp.eq.s32.totalorder %s22, 0
    %p117 = por %p115, %p116
    %s119 = sadd.s32 %s118, 1
    %p122 = scmp.eq.s32.totalorder %s16, 1
    %p123 = scmp.ne.s32.totalorder %s118, %s120
    %p124 = scmp.eq.s32.totalorder %s16, 0
    %p125 = por %p123, %p124
    %p126 = scmp.ne.s32.totalorder %s118, %s120
    %p127 = scmp.eq.s32.totalorder %s21, 1
    %p128 = por %p126, %p127
    %p129 = scmp.ne.s32.totalorder %s120, %s121
    %p130 = scmp.eq.s32.totalorder %s21, 0
    %p131 = por %p129, %p130
    %p132 = scmp.ne.s32.totalorder %s120, %s121
    %p133 = scmp.eq.s32.totalorder %s22, 1
    %p134 = por %p132, %p133
    %p136 = scmp.ne.s32.totalorder %s121, %s135
    %p137 = scmp.eq.s32.totalorder %s22, 0
    %p138 = por %p136, %p137
    %s140 = sadd.s32 %s139, 1
    %p143 = scmp.eq.s32.totalorder %s16, 1
    %p144 = scmp.ne.s32.totalorder %s139, %s141
    %p145 = scmp.eq.s32.totalorder %s16, 0
    %p146 = por %p144, %p145
    %p147 = scmp.ne.s32.totalorder %s139, %s141
    %p148 = scmp.eq.s32.totalorder %s21, 1
    %p149 = por %p147, %p148
    %p150 = scmp.ne.s32.totalorder %s141, %s142
    %p151 = scmp.eq.s32.totalorder %s21, 0
    %p152 = por %p150, %p151
    %p153 = scmp.ne.s32.totalorder %s141, %s142
    %p154 = scmp.eq.s32.totalorder %s22, 1
    %p155 = por %p153, %p154
    %p157 = scmp.ne.s32.totalorder %s142, %s156
    %p158 = scmp.eq.s32.totalorder %s22, 0
    %p159 = por %p157, %p158
    %s161 = sadd.s32 %s160, 1
    %p164 = scmp.eq.s32.totalorder %s16, 1
    %p165 = scmp.ne.s32.totalorder %s160, %s162
    %p166 = scmp.eq.s32.totalorder %s16, 0
    %p167 = por %p165, %p166
    %p168 = scmp.ne.s32.totalorder %s160, %s162
    %p169 = scmp.eq.s32.totalorder %s21, 1
    %p170 = por %p168, %p169
    %p171 = scmp.ne.s32.totalorder %s162, %s163
    %p172 = scmp.eq.s32.totalorder %s21, 0
    %p173 = por %p171, %p172
    %p174 = scmp.ne.s32.totalorder %s162, %s163
    %p175 = scmp.eq.s32.totalorder %s22, 1
    %p176 = por %p174, %p175
    %p178 = scmp.ne.s32.totalorder %s163, %s177
    %p179 = scmp.eq.s32.totalorder %s22, 0
    %p180 = por %p178, %p179
    %s182 = sadd.s32 %s181, 1
    %p185 = scmp.eq.s32.totalorder %s16, 1
    %p186 = scmp.ne.s32.totalorder %s181, %s183
    %p187 = scmp.eq.s32.totalorder %s16, 0
    %p188 = por %p186, %p187
    %p189 = scmp.ne.s32.totalorder %s181, %s183
    %p190 = scmp.eq.s32.totalorder %s21, 1
    %p191 = por %p189, %p190
    %p192 = scmp.ne.s32.totalorder %s183, %s184
    %p193 = scmp.eq.s32.totalorder %s21, 0
    %p194 = por %p192, %p193
    %p195 = scmp.ne.s32.totalorder %s183, %s184
    %p196 = scmp.eq.s32.totalorder %s22, 1
    %p197 = por %p195, %p196
    %p199 = scmp.ne.s32.totalorder %s184, %s198
    %p200 = scmp.eq.s32.totalorder %s22, 0
    %p201 = por %p199, %p200
    %s203 = sadd.s32 %s202, 1
    %p206 = scmp.eq.s32.totalorder %s16, 1
    %p207 = scmp.ne.s32.totalorder %s202, %s204
    %p208 = scmp.eq.s32.totalorder %s16, 0
    %p209 = por %p207, %p208
    %p210 = scmp.ne.s32.totalorder %s202, %s204
    %p211 = scmp.eq.s32.totalorder %s21, 1
    %p212 = por %p210, %p211
    %p213 = scmp.ne.s32.totalorder %s204, %s205
    %p214 = scmp.eq.s32.totalorder %s21, 0
    %p215 = por %p213, %p214
    %p216 = scmp.ne.s32.totalorder %s204, %s205
    %p217 = scmp.eq.s32.totalorder %s22, 1
    %p218 = por %p216, %p217
    %p220 = scmp.ne.s32.totalorder %s205, %s219
    %p221 = scmp.eq.s32.totalorder %s22, 0
    %p222 = por %p220, %p221
    %s224 = sadd.s32 %s223, 1
    %p227 = scmp.eq.s32.totalorder %s16, 1
    %p228 = scmp.ne.s32.totalorder %s223, %s225
    %p229 = scmp.eq.s32.totalorder %s16, 0
    %p230 = por %p228, %p229
    %p231 = scmp.ne.s32.totalorder %s223, %s225
    %p232 = scmp.eq.s32.totalorder %s21, 1
    %p233 = por %p231, %p232
    %p234 = scmp.ne.s32.totalorder %s225, %s226
    %p235 = scmp.eq.s32.totalorder %s21, 0
    %p236 = por %p234, %p235
    %p237 = scmp.ne.s32.totalorder %s225, %s226
    %p238 = scmp.eq.s32.totalorder %s22, 1
    %p239 = por %p237, %p238
    %p241 = scmp.ne.s32.totalorder %s226, %s240
    %p242 = scmp.eq.s32.totalorder %s22, 0
    %p243 = por %p241, %p242
    %s244 = ssub.s32 %s16, %s23
    %p245 = scmp.eq.s32.totalorder %s244, 0
    %s247 = sadd.s32 %s246, 1
    %s248 = scalar_select %p245, %s246, %s247
    %p251 = pneg %p245
    %p252 = scmp.eq.s32.totalorder %s16, 1
    %p253 = por %p251, %p252
    %p254 = scmp.ne.s32.totalorder %s246, %s249
    %p255 = scmp.eq.s32.totalorder %s16, 0
    %p256 = por %p254, %p255
    %p257 = scmp.ne.s32.totalorder %s246, %s249
    %p258 = scmp.eq.s32.totalorder %s21, 1
    %p259 = por %p257, %p258
    %p260 = scmp.ne.s32.totalorder %s249, %s250
    %p261 = scmp.eq.s32.totalorder %s21, 0
    %p262 = por %p260, %p261
    %p263 = scmp.ne.s32.totalorder %s249, %s250
    %p264 = scmp.eq.s32.totalorder %s22, 1
    %p265 = por %p263, %p264
    %p267 = scmp.ne.s32.totalorder %s250, %s266
    %p268 = scmp.eq.s32.totalorder %s22, 0
    %p269 = por %p267, %p268
    %p270 = scmp.le.s32.totalorder 1, %s16
    %p271 = scmp.lt.s32.totalorder %s16, 3
    %p272 = pnand %p270, %p271
    %p273 = pneg %p272
    // Predicated region
    $region9: #{conv_projection_pallas.1} parent=5 // pred_check
      _
    $region10: #{conv_projection_pallas.1} parent=5 // pred_check_branch
      %275 = sbr.rel (%p272) target = $region12
    $region11: #{conv_projection_pallas.1} parent=5 // pred_region
      %s276 = ssub.s32 %s16, 1
      // Predicated region
      $region13: #{conv_projection_pallas.1} parent=11 // pred_check
        %p277 = pneg %p89
      $region14: #{conv_projection_pallas.1} parent=11 // pred_check_branch
        %279 = sbr.rel (%p277) target = $region16
      $region15: #{conv_projection_pallas.1} parent=11 // pred_region
        _
      $region16: #{conv_projection_pallas.1} parent=11 // pred_fallthru
        _
      // Predicated region
      $region17: #{conv_projection_pallas.1} parent=11 // pred_check
        %p280 = pneg %p110
      $region18: #{conv_projection_pallas.1} parent=11 // pred_check_branch
        %282 = sbr.rel (%p280) target = $region20
      $region19: #{conv_projection_pallas.1} parent=11 // pred_region
        _
      $region20: #{conv_projection_pallas.1} parent=11 // pred_fallthru
        _
      // Predicated region
      $region21: #{conv_projection_pallas.1} parent=11 // pred_check
        %p283 = pneg %p131
      $region22: #{conv_projection_pallas.1} parent=11 // pred_check_branch
        %285 = sbr.rel (%p283) target = $region24
      $region23: #{conv_projection_pallas.1} parent=11 // pred_region
        _
      $region24: #{conv_projection_pallas.1} parent=11 // pred_fallthru
        _
      // Predicated region
      $region25: #{conv_projection_pallas.1} parent=11 // pred_check
        %p286 = pneg %p152
      $region26: #{conv_projection_pallas.1} parent=11 // pred_check_branch
        %288 = sbr.rel (%p286) target = $region28
      $region27: #{conv_projection_pallas.1} parent=11 // pred_region
        _
      $region28: #{conv_projection_pallas.1} parent=11 // pred_fallthru
        _
      // Predicated region
      $region29: #{conv_projection_pallas.1} parent=11 // pred_check
        %p289 = pneg %p173
      $region30: #{conv_projection_pallas.1} parent=11 // pred_check_branch
        %291 = sbr.rel (%p289) target = $region32
      $region31: #{conv_projection_pallas.1} parent=11 // pred_region
        _
      $region32: #{conv_projection_pallas.1} parent=11 // pred_fallthru
        _
      // Predicated region
      $region33: #{conv_projection_pallas.1} parent=11 // pred_check
        %p292 = pneg %p194
      $region34: #{conv_projection_pallas.1} parent=11 // pred_check_branch
        %294 = sbr.rel (%p292) target = $region36
      $region35: #{conv_projection_pallas.1} parent=11 // pred_region
        _
      $region36: #{conv_projection_pallas.1} parent=11 // pred_fallthru
        _
      // Predicated region
      $region37: #{conv_projection_pallas.1} parent=11 // pred_check
        %p295 = pneg %p215
      $region38: #{conv_projection_pallas.1} parent=11 // pred_check_branch
        %297 = sbr.rel (%p295) target = $region40
      $region39: #{conv_projection_pallas.1} parent=11 // pred_region
        _
      $region40: #{conv_projection_pallas.1} parent=11 // pred_fallthru
        _
      // Predicated region
      $region41: #{conv_projection_pallas.1} parent=11 // pred_check
        %p298 = pneg %p236
      $region42: #{conv_projection_pallas.1} parent=11 // pred_check_branch
        %300 = sbr.rel (%p298) target = $region44
      $region43: #{conv_projection_pallas.1} parent=11 // pred_region
        _
      $region44: #{conv_projection_pallas.1} parent=11 // pred_fallthru
        _
    $region12: #{conv_projection_pallas.1} parent=5 // pred_fallthru
      _
    %p301 = scmp.lt.s32.totalorder %s16, 2
    // Predicated region
    $region45: #{conv_projection_pallas.1} parent=5 // pred_check
      %p302 = pneg %p301
    $region46: #{conv_projection_pallas.1} parent=5 // pred_check_branch
      %304 = sbr.rel (%p302) target = $region48
    $region47: #{conv_projection_pallas.1} parent=5 // pred_region
      // Predicated region
      $region49: #{conv_projection_pallas.1} parent=47 // pred_check
        %p305 = pneg %p36
      $region50: #{conv_projection_pallas.1} parent=47 // pred_check_branch
        %307 = sbr.rel (%p305) target = $region52
      $region51: #{conv_projection_pallas.1} parent=47 // pred_region
        %p308 = scmp.lt.s32.totalorder %s16, 1
        %s309 = scalar_select %p308, %s16, 1
        %s310 = smul.addr %s309, 2
        %s311 = smul.addr %s310, 8
        %s312 = scalar_lea.vmem %s0, %s311
      $region52: #{conv_projection_pallas.1} parent=47 // pred_fallthru
        _
      // Predicated region
      $region53: #{conv_projection_pallas.1} parent=47 // pred_check
        %p313 = pneg %p62
      $region54: #{conv_projection_pallas.1} parent=47 // pred_check_branch
        %315 = sbr.rel (%p313) target = $region56
      $region55: #{conv_projection_pallas.1} parent=47 // pred_region
        %p316 = scmp.lt.s32.totalorder %s16, 1
        %s317 = scalar_select %p316, %s16, 1
        %s318 = smul.addr %s317, 2
        %s319 = smul.addr %s318, 8
        %s320 = scalar_lea.vmem %s1, %s319
      $region56: #{conv_projection_pallas.1} parent=47 // pred_fallthru
        _
    $region48: #{conv_projection_pallas.1} parent=5 // pred_fallthru
      _
    %p321 = scmp.le.s32.totalorder 1, %s16
    %p322 = scmp.lt.s32.totalorder %s16, 3
    %p323 = pnand %p321, %p322
    %p324 = pneg %p323
    // Predicated region
    $region57: #{conv_projection_pallas.1} parent=5 // pred_check
      _
    $region58: #{conv_projection_pallas.1} parent=5 // pred_check_branch
      %326 = sbr.rel (%p323) target = $region60
    $region59: #{conv_projection_pallas.1} parent=5 // pred_region
      %s327 = ssub.s32 %s16, 1
      %p328 = scmp.lt.s32.totalorder %s21, 1
      %s329 = scalar_select %p328, %s21, 1
      %s330 = smul.addr %s329, 2
      %s331 = smul.addr %s330, 8
      %s332 = scalar_lea.vmem %s0, %s331
      %p333 = pneg %p42
      %p334 = pneg %p39
      %p335 = scmp.lt.s32.totalorder %s21, 1
      %s336 = scalar_select %p335, %s21, 1
      %s337 = smul.addr %s336, 2
      %s338 = smul.addr %s337, 8
      %s339 = scalar_lea.vmem %s1, %s338
      %p340 = pneg %p68
      %p341 = pneg %p65
      %p342 = pneg %p89
      %p343 = pneg %p86
      %p344 = pneg %p110
      %p345 = pneg %p107
      %p346 = pneg %p131
      %p347 = pneg %p128
      %p348 = pneg %p152
      %p349 = pneg %p149
      %p350 = pneg %p173
      %p351 = pneg %p170
      %p352 = pneg %p194
      %p353 = pneg %p191
      %p354 = pneg %p215
      %p355 = pneg %p212
      %p356 = pneg %p236
      %p357 = pneg %p233
      %p358 = pneg %p262
      %p359 = pneg %p259
      %p360 = scmp.lt.s32.totalorder %s21, 1
      %s361 = scalar_select %p360, %s21, 1
      %s362 = smul.addr %s361, 8
      %s363 = scalar_lea.vmem %s10, %s362
      %p364 = scmp.lt.s32.totalorder %s21, 1
      %s365 = scalar_select %p364, %s21, 1
      %s366 = smul.addr %s365, 2
      %s367 = smul.addr %s366, 8
      %s368 = scalar_lea.vmem %s0, %s367
      %p369 = scmp.lt.s32.totalorder %s21, 1
      %s370 = scalar_select %p369, %s21, 1
      %s371 = smul.addr %s370, 2
      %s372 = smul.addr %s371, 8
      %s373 = scalar_lea.vmem %s1, %s372
      %p374 = scmp.lt.s32.totalorder %s21, 1
      %s375 = scalar_select %p374, %s21, 1
      %s376 = smul.addr %s375, 8
      %s377 = scalar_lea.vmem %s10, %s376
      %v379 = vld [vmem:[%s2] sm:$0xff]
      %v380 = vld [vmem:[%s2 + $0x8] sm:$0xff]
      %v381 = vpack.c.bf16 %v380, %v379
      %v382 = vunpack.c.l.bf16 %v381
      %v383 = vunpack.c.h.bf16 %v381
      %v384 = vsub.f32 %v379, %v382
      %v385 = vsub.f32 %v380, %v383
      %v386 = vpack.c.bf16 %v385, %v384
      %v387 = vld [vmem:[%s3] sm:$0xff]
      %v388 = vld [vmem:[%s3 + $0x8] sm:$0xff]
      %v389 = vpack.c.bf16 %v388, %v387
      %v390 = vunpack.c.l.bf16 %v389
      %v391 = vunpack.c.h.bf16 %v389
      %v392 = vsub.f32 %v387, %v390
      %v393 = vsub.f32 %v388, %v391
      %v394 = vpack.c.bf16 %v393, %v392
      %v395 = vld [vmem:[%s4] sm:$0xff]
      %v396 = vld [vmem:[%s4 + $0x8] sm:$0xff]
      %v397 = vld [vmem:[%s4 + $0x10] sm:$0xff]
      %v398 = vld [vmem:[%s4 + $0x18] sm:$0xff]
      %v399 = vld [vmem:[%s4 + $0x20] sm:$0xff]
      %v400 = vld [vmem:[%s4 + $0x28] sm:$0xff]
      %v401 = vld [vmem:[%s4 + $0x30] sm:$0xff]
      %v402 = vld [vmem:[%s4 + $0x38] sm:$0xff]
      %v403 = vpack.c.bf16 %v396, %v395
      %v404 = vpack.c.bf16 %v398, %v397
      %v405 = vpack.c.bf16 %v400, %v399
      %v406 = vpack.c.bf16 %v402, %v401
      %v407 = vunpack.c.l.bf16 %v403
      %v408 = vunpack.c.h.bf16 %v403
      %v409 = vunpack.c.l.bf16 %v404
      %v410 = vunpack.c.h.bf16 %v404
      %v411 = vunpack.c.l.bf16 %v405
      %v412 = vunpack.c.h.bf16 %v405
      %v413 = vunpack.c.l.bf16 %v406
      %v414 = vunpack.c.h.bf16 %v406
      %v415 = vsub.f32 %v395, %v407
      %v416 = vsub.f32 %v396, %v408
      %v417 = vsub.f32 %v397, %v409
      %v418 = vsub.f32 %v398, %v410
      %v419 = vsub.f32 %v399, %v411
      %v420 = vsub.f32 %v400, %v412
      %v421 = vsub.f32 %v401, %v413
      %v422 = vsub.f32 %v402, %v414
      %v423 = vpack.c.bf16 %v416, %v415
      %v424 = vpack.c.bf16 %v418, %v417
      %v425 = vpack.c.bf16 %v420, %v419
      %v426 = vpack.c.bf16 %v422, %v421
      %v427 = vld [vmem:[%s5] sm:$0xff]
      %v428 = vld [vmem:[%s5 + $0x8] sm:$0xff]
      %v429 = vld [vmem:[%s5 + $0x10] sm:$0xff]
      %v430 = vld [vmem:[%s5 + $0x18] sm:$0xff]
      %v431 = vld [vmem:[%s5 + $0x20] sm:$0xff]
      %v432 = vld [vmem:[%s5 + $0x28] sm:$0xff]
      %v433 = vld [vmem:[%s5 + $0x30] sm:$0xff]
      %v434 = vld [vmem:[%s5 + $0x38] sm:$0xff]
      %v435 = vpack.c.bf16 %v428, %v427
      %v436 = vpack.c.bf16 %v430, %v429
      %v437 = vpack.c.bf16 %v432, %v431
      %v438 = vpack.c.bf16 %v434, %v433
      %v439 = vunpack.c.l.bf16 %v435
      %v440 = vunpack.c.h.bf16 %v435
      %v441 = vunpack.c.l.bf16 %v436
      %v442 = vunpack.c.h.bf16 %v436
      %v443 = vunpack.c.l.bf16 %v437
      %v444 = vunpack.c.h.bf16 %v437
      %v445 = vunpack.c.l.bf16 %v438
      %v446 = vunpack.c.h.bf16 %v438
      %v447 = vsub.f32 %v427, %v439
      %v448 = vsub.f32 %v428, %v440
      %v449 = vsub.f32 %v429, %v441
      %v450 = vsub.f32 %v430, %v442
      %v451 = vsub.f32 %v431, %v443
      %v452 = vsub.f32 %v432, %v444
      %v453 = vsub.f32 %v433, %v445
      %v454 = vsub.f32 %v434, %v446
      %v455 = vpack.c.bf16 %v448, %v447
      %v456 = vpack.c.bf16 %v450, %v449
      %v457 = vpack.c.bf16 %v452, %v451
      %v458 = vpack.c.bf16 %v454, %v453
      %v459 = vld [vmem:[%s6] sm:$0xff]
      %v460 = vpack.c.bf16 %v459, %v459
      %v461 = vunpack.c.l.bf16 %v460
      %v462 = vsub.f32 %v459, %v461
      %v463 = vpack.c.bf16 %v462, %v462
      %v464 = vld [vmem:[%s7] sm:$0xff]
      %v465 = vpack.c.bf16 %v464, %v464
      %v466 = vunpack.c.l.bf16 %v465
      %v467 = vsub.f32 %v464, %v466
      %v468 = vpack.c.bf16 %v467, %v467
      %v469 = vld [vmem:[%s8] sm:$0xff]
      %v470 = vld [vmem:[%s8 + $0x8] sm:$0xff]
      %v471 = vld [vmem:[%s8 + $0x10] sm:$0xff]
      %v472 = vld [vmem:[%s8 + $0x18] sm:$0xff]
      %v473 = vld [vmem:[%s8 + $0x20] sm:$0xff]
      %v474 = vld [vmem:[%s8 + $0x28] sm:$0xff]
      %v475 = vld [vmem:[%s8 + $0x30] sm:$0xff]
      %v476 = vld [vmem:[%s8 + $0x38] sm:$0xff]
      %v477 = vpack.c.bf16 %v470, %v469
      %v478 = vpack.c.bf16 %v472, %v471
      %v479 = vpack.c.bf16 %v474, %v473
      %v480 = vpack.c.bf16 %v476, %v475
      %v481 = vunpack.c.l.bf16 %v477
      %v482 = vunpack.c.h.bf16 %v477
      %v483 = vunpack.c.l.bf16 %v478
      %v484 = vunpack.c.h.bf16 %v478
      %v485 = vunpack.c.l.bf16 %v479
      %v486 = vunpack.c.h.bf16 %v479
      %v487 = vunpack.c.l.bf16 %v480
      %v488 = vunpack.c.h.bf16 %v480
      %v489 = vsub.f32 %v469, %v481
      %v490 = vsub.f32 %v470, %v482
      %v491 = vsub.f32 %v471, %v483
      %v492 = vsub.f32 %v472, %v484
      %v493 = vsub.f32 %v473, %v485
      %v494 = vsub.f32 %v474, %v486
      %v495 = vsub.f32 %v475, %v487
      %v496 = vsub.f32 %v476, %v488
      %v497 = vpack.c.bf16 %v490, %v489
      %v498 = vpack.c.bf16 %v492, %v491
      %v499 = vpack.c.bf16 %v494, %v493
      %v500 = vpack.c.bf16 %v496, %v495
      %v501 = vld [vmem:[%s9] sm:$0xff]
      %v502 = vld [vmem:[%s9 + $0x8] sm:$0xff]
      %v503 = vld [vmem:[%s9 + $0x10] sm:$0xff]
      %v504 = vld [vmem:[%s9 + $0x18] sm:$0xff]
      %v505 = vld [vmem:[%s9 + $0x20] sm:$0xff]
      %v506 = vld [vmem:[%s9 + $0x28] sm:$0xff]
      %v507 = vld [vmem:[%s9 + $0x30] sm:$0xff]
      %v508 = vld [vmem:[%s9 + $0x38] sm:$0xff]
      %v509 = vpack.c.bf16 %v502, %v501
      %v510 = vpack.c.bf16 %v504, %v503
      %v511 = vpack.c.bf16 %v506, %v505
      %v512 = vpack.c.bf16 %v508, %v507
      %v513 = vunpack.c.l.bf16 %v509
      %v514 = vunpack.c.h.bf16 %v509
      %v515 = vunpack.c.l.bf16 %v510
      %v516 = vunpack.c.h.bf16 %v510
      %v517 = vunpack.c.l.bf16 %v511
      %v518 = vunpack.c.h.bf16 %v511
      %v519 = vunpack.c.l.bf16 %v512
      %v520 = vunpack.c.h.bf16 %v512
      %v521 = vsub.f32 %v501, %v513
      %v522 = vsub.f32 %v502, %v514
      %v523 = vsub.f32 %v503, %v515
      %v524 = vsub.f32 %v504, %v516
      %v525 = vsub.f32 %v505, %v517
      %v526 = vsub.f32 %v506, %v518
      %v527 = vsub.f32 %v507, %v519
      %v528 = vsub.f32 %v508, %v520
      %v529 = vpack.c.bf16 %v522, %v521
      %v530 = vpack.c.bf16 %v524, %v523
      %v531 = vpack.c.bf16 %v526, %v525
      %v532 = vpack.c.bf16 %v528, %v527
      %v533 = vld [vmem:[%s368] sm:$0xff]
      %v534 = vld [vmem:[%s368 + $0x8] sm:$0xff]
      %v535 = vpack.c.bf16 %v534, %v533
      %v536 = vunpack.c.l.bf16 %v535
      %v537 = vunpack.c.h.bf16 %v535
      %v538 = vsub.f32 %v533, %v536
      %v539 = vsub.f32 %v534, %v537
      %v540 = vpack.c.bf16 %v539, %v538
      %vm541 = vcmask 130048
      %v543 = vsel %vm541, %v381, 0
      %545 = vmatprep.subr.bf16.mxu0 0
      %546 = vmatpush1.bf16.msra.mxu0 0
      %547 = vmatprep.subr.bf16.mxu0 0
      %548 = vmatpush1.bf16.msra.mxu0 0
      %549 = vmatprep.subr.bf16.mxu0 0
      %550 = vmatpush1.bf16.msra.mxu0 0
      %551 = vmatprep.subr.bf16.mxu0 0
      %552 = vmatpush1.bf16.msra.mxu0 0
      %553 = vmatprep.subr.bf16.mxu0 0
      %554 = vmatpush1.bf16.msra.mxu0 0
      %555 = vmatprep.subr.bf16.mxu0 0
      %556 = vmatpush1.bf16.msra.mxu0 0
      %557 = vmatprep.subr.bf16.mxu0 0
      %558 = vmatpush1.bf16.msra.mxu0 0
      %559 = vmatprep.subr.bf16.mxu0 0
      %560 = vmatpush1.bf16.msra.mxu0 %v540
      %561 = vmatprep.subr.bf16.mxu0 0
      %562 = vmatpush2.bf16.msra.mxu0 0
      %563 = vmatprep.subr.bf16.mxu0 0
      %564 = vmatpush2.bf16.msra.mxu0 0
      %565 = vmatprep.subr.bf16.mxu0 0
      %566 = vmatpush2.bf16.msra.mxu0 0
      %567 = vmatprep.subr.bf16.mxu0 0
      %568 = vmatpush2.bf16.msra.mxu0 0
      %569 = vmatprep.subr.bf16.mxu0 0
      %570 = vmatpush2.bf16.msra.mxu0 0
      %571 = vmatprep.subr.bf16.mxu0 0
      %572 = vmatpush2.bf16.msra.mxu0 0
      %573 = vmatprep.subr.bf16.mxu0 0
      %574 = vmatpush2.bf16.msra.mxu0 0
      %575 = vmatprep.subr.bf16.mxu0 0
      %576 = vmatpush2.bf16.msra.mxu0 0
      %577 = vmatprep.mubr.bf16.mxu0 0
      %578 = vmatmul.mubr.bf16.gmra.mxu0 %v543
      %v579 = vpop.f32.mrf.mxu0
      %v580 = vadd.f32 0.0, %v579
      %v581 = vpop.f32.mrf.mxu0
      %v582 = vpop.f32.mrf.mxu0
      %v583 = vadd.f32 0.0, %v582
      %v584 = vpop.f32.mrf.mxu0
      %585 = vdwg.mxu0
      %586 = vmatprep.subr.bf16.mxu0 0
      %587 = vmatpush1.bf16.msra.mxu0 0
      %588 = vmatprep.subr.bf16.mxu0 0
      %589 = vmatpush1.bf16.msra.mxu0 0
      %590 = vmatprep.subr.bf16.mxu0 0
      %591 = vmatpush1.bf16.msra.mxu0 0
      %592 = vmatprep.subr.bf16.mxu0 0
      %593 = vmatpush1.bf16.msra.mxu0 0
      %594 = vmatprep.subr.bf16.mxu0 0
      %595 = vmatpush1.bf16.msra.mxu0 0
      %596 = vmatprep.subr.bf16.mxu0 0
      %597 = vmatpush1.bf16.msra.mxu0 0
      %598 = vmatprep.subr.bf16.mxu0 0
      %599 = vmatpush1.bf16.msra.mxu0 0
      %600 = vmatprep.subr.bf16.mxu0 0
      %601 = vmatpush1.bf16.msra.mxu0 %v535
      %602 = vmatprep.subr.bf16.mxu0 0
      %603 = vmatpush2.bf16.msra.mxu0 0
      %604 = vmatprep.subr.bf16.mxu0 0
      %605 = vmatpush2.bf16.msra.mxu0 0
      %606 = vmatprep.subr.bf16.mxu0 0
      %607 = vmatpush2.bf16.msra.mxu0 0
      %608 = vmatprep.subr.bf16.mxu0 0
      %609 = vmatpush2.bf16.msra.mxu0 0
      %610 = vmatprep.subr.bf16.mxu0 0
      %611 = vmatpush2.bf16.msra.mxu0 0
      %612 = vmatprep.subr.bf16.mxu0 0
      %613 = vmatpush2.bf16.msra.mxu0 0
      %614 = vmatprep.subr.bf16.mxu0 0
      %615 = vmatpush2.bf16.msra.mxu0 0
      %616 = vmatprep.subr.bf16.mxu0 0
      %617 = vmatpush2.bf16.msra.mxu0 0
      %618 = vmatprep.mubr.bf16.mxu0 0
      %619 = vmatmul.mubr.bf16.gmra.mxu0 %v543
      %v620 = vpop.f32.mrf.mxu0
      %v621 = vadd.f32 %v580, %v620
      %v622 = vpop.f32.mrf.mxu0
      %v623 = vpop.f32.mrf.mxu0
      %v624 = vadd.f32 %v583, %v623
      %v625 = vpop.f32.mrf.mxu0
      %626 = vdwg.mxu0
      %v628 = vsel %vm541, %v386, 0
      %630 = vmatprep.subr.bf16.mxu0 0
      %631 = vmatpush1.bf16.msra.mxu0 0
      %632 = vmatprep.subr.bf16.mxu0 0
      %633 = vmatpush1.bf16.msra.mxu0 0
      %634 = vmatprep.subr.bf16.mxu0 0
      %635 = vmatpush1.bf16.msra.mxu0 0
      %636 = vmatprep.subr.bf16.mxu0 0
      %637 = vmatpush1.bf16.msra.mxu0 0
      %638 = vmatprep.subr.bf16.mxu0 0
      %639 = vmatpush1.bf16.msra.mxu0 0
      %640 = vmatprep.subr.bf16.mxu0 0
      %641 = vmatpush1.bf16.msra.mxu0 0
      %642 = vmatprep.subr.bf16.mxu0 0
      %643 = vmatpush1.bf16.msra.mxu0 0
      %644 = vmatprep.subr.bf16.mxu0 0
      %645 = vmatpush1.bf16.msra.mxu0 %v535
      %646 = vmatprep.subr.bf16.mxu0 0
      %647 = vmatpush2.bf16.msra.mxu0 0
      %648 = vmatprep.subr.bf16.mxu0 0
      %649 = vmatpush2.bf16.msra.mxu0 0
      %650 = vmatprep.subr.bf16.mxu0 0
      %651 = vmatpush2.bf16.msra.mxu0 0
      %652 = vmatprep.subr.bf16.mxu0 0
      %653 = vmatpush2.bf16.msra.mxu0 0
      %654 = vmatprep.subr.bf16.mxu0 0
      %655 = vmatpush2.bf16.msra.mxu0 0
      %656 = vmatprep.subr.bf16.mxu0 0
      %657 = vmatpush2.bf16.msra.mxu0 0
      %658 = vmatprep.subr.bf16.mxu0 0
      %659 = vmatpush2.bf16.msra.mxu0 0
      %660 = vmatprep.subr.bf16.mxu0 0
      %661 = vmatpush2.bf16.msra.mxu0 0
      %662 = vmatprep.mubr.bf16.mxu0 0
      %663 = vmatmul.mubr.bf16.gmra.mxu0 %v628
      %v664 = vpop.f32.mrf.mxu0
      %v665 = vadd.f32 0.0, %v664
      %v666 = vpop.f32.mrf.mxu0
      %v667 = vpop.f32.mrf.mxu0
      %v668 = vadd.f32 0.0, %v667
      %v669 = vpop.f32.mrf.mxu0
      %670 = vdwg.mxu0
      %v671 = vadd.f32 %v621, %v665
      %v672 = vadd.f32 %v624, %v668
      %v673 = vpack.c.bf16 %v672, %v671
      %v674 = vunpack.c.l.bf16 %v673
      %v675 = vunpack.c.h.bf16 %v673
      %v676 = vsub.f32 %v671, %v674
      %v677 = vsub.f32 %v672, %v675
      %v678 = vpack.c.bf16 %v677, %v676
      %v680 = vsel %vm541, %v389, 0
      %682 = vmatprep.subr.bf16.mxu0 0
      %683 = vmatpush1.bf16.msra.mxu0 0
      %684 = vmatprep.subr.bf16.mxu0 0
      %685 = vmatpush1.bf16.msra.mxu0 0
      %686 = vmatprep.subr.bf16.mxu0 0
      %687 = vmatpush1.bf16.msra.mxu0 0
      %688 = vmatprep.subr.bf16.mxu0 0
      %689 = vmatpush1.bf16.msra.mxu0 0
      %690 = vmatprep.subr.bf16.mxu0 0
      %691 = vmatpush1.bf16.msra.mxu0 0
      %692 = vmatprep.subr.bf16.mxu0 0
      %693 = vmatpush1.bf16.msra.mxu0 0
      %694 = vmatprep.subr.bf16.mxu0 0
      %695 = vmatpush1.bf16.msra.mxu0 0
      %696 = vmatprep.subr.bf16.mxu0 0
      %697 = vmatpush1.bf16.msra.mxu0 %v540
      %698 = vmatprep.subr.bf16.mxu0 0
      %699 = vmatpush2.bf16.msra.mxu0 0
      %700 = vmatprep.subr.bf16.mxu0 0
      %701 = vmatpush2.bf16.msra.mxu0 0
      %702 = vmatprep.subr.bf16.mxu0 0
      %703 = vmatpush2.bf16.msra.mxu0 0
      %704 = vmatprep.subr.bf16.mxu0 0
      %705 = vmatpush2.bf16.msra.mxu0 0
      %706 = vmatprep.subr.bf16.mxu0 0
      %707 = vmatpush2.bf16.msra.mxu0 0
      %708 = vmatprep.subr.bf16.mxu0 0
      %709 = vmatpush2.bf16.msra.mxu0 0
      %710 = vmatprep.subr.bf16.mxu0 0
      %711 = vmatpush2.bf16.msra.mxu0 0
      %712 = vmatprep.subr.bf16.mxu0 0
      %713 = vmatpush2.bf16.msra.mxu0 0
      %714 = vmatprep.mubr.bf16.mxu0 0
      %715 = vmatmul.mubr.bf16.gmra.mxu0 %v680
      %v716 = vpop.f32.mrf.mxu0
      %v717 = vadd.f32 0.0, %v716
      %v718 = vpop.f32.mrf.mxu0
      %v719 = vpop.f32.mrf.mxu0
      %v720 = vadd.f32 0.0, %v719
      %v721 = vpop.f32.mrf.mxu0
      %722 = vdwg.mxu0
      %723 = vmatprep.subr.bf16.mxu0 0
      %724 = vmatpush1.bf16.msra.mxu0 0
      %725 = vmatprep.subr.bf16.mxu0 0
      %726 = vmatpush1.bf16.msra.mxu0 0
      %727 = vmatprep.subr.bf16.mxu0 0
      %728 = vmatpush1.bf16.msra.mxu0 0
      %729 = vmatprep.subr.bf16.mxu0 0
      %730 = vmatpush1.bf16.msra.mxu0 0
      %731 = vmatprep.subr.bf16.mxu0 0
      %732 = vmatpush1.bf16.msra.mxu0 0
      %733 = vmatprep.subr.bf16.mxu0 0
      %734 = vmatpush1.bf16.msra.mxu0 0
      %735 = vmatprep.subr.bf16.mxu0 0
      %736 = vmatpush1.bf16.msra.mxu0 0
      %737 = vmatprep.subr.bf16.mxu0 0
      %738 = vmatpush1.bf16.msra.mxu0 %v535
      %739 = vmatprep.subr.bf16.mxu0 0
      %740 = vmatpush2.bf16.msra.mxu0 0
      %741 = vmatprep.subr.bf16.mxu0 0
      %742 = vmatpush2.bf16.msra.mxu0 0
      %743 = vmatprep.subr.bf16.mxu0 0
      %744 = vmatpush2.bf16.msra.mxu0 0
      %745 = vmatprep.subr.bf16.mxu0 0
      %746 = vmatpush2.bf16.msra.mxu0 0
      %747 = vmatprep.subr.bf16.mxu0 0
      %748 = vmatpush2.bf16.msra.mxu0 0
      %749 = vmatprep.subr.bf16.mxu0 0
      %750 = vmatpush2.bf16.msra.mxu0 0
      %751 = vmatprep.subr.bf16.mxu0 0
      %752 = vmatpush2.bf16.msra.mxu0 0
      %753 = vmatprep.subr.bf16.mxu0 0
      %754 = vmatpush2.bf16.msra.mxu0 0
      %755 = vmatprep.mubr.bf16.mxu0 0
      %756 = vmatmul.mubr.bf16.gmra.mxu0 %v680
      %v757 = vpop.f32.mrf.mxu0
      %v758 = vadd.f32 %v717, %v757
      %v759 = vpop.f32.mrf.mxu0
      %v760 = vpop.f32.mrf.mxu0
      %v761 = vadd.f32 %v720, %v760
      %v762 = vpop.f32.mrf.mxu0
      %763 = vdwg.mxu0
      %v765 = vsel %vm541, %v394, 0
      %767 = vmatprep.subr.bf16.mxu0 0
      %768 = vmatpush1.bf16.msra.mxu0 0
      %769 = vmatprep.subr.bf16.mxu0 0
      %770 = vmatpush1.bf16.msra.mxu0 0
      %771 = vmatprep.subr.bf16.mxu0 0
      %772 = vmatpush1.bf16.msra.mxu0 0
      %773 = vmatprep.subr.bf16.mxu0 0
      %774 = vmatpush1.bf16.msra.mxu0 0
      %775 = vmatprep.subr.bf16.mxu0 0
      %776 = vmatpush1.bf16.msra.mxu0 0
      %777 = vmatprep.subr.bf16.mxu0 0
      %778 = vmatpush1.bf16.msra.mxu0 0
      %779 = vmatprep.subr.bf16.mxu0 0
      %780 = vmatpush1.bf16.msra.mxu0 0
      %781 = vmatprep.subr.bf16.mxu0 0
      %782 = vmatpush1.bf16.msra.mxu0 %v535
      %783 = vmatprep.subr.bf16.mxu0 0
      %784 = vmatpush2.bf16.msra.mxu0 0
      %785 = vmatprep.subr.bf16.mxu0 0
      %786 = vmatpush2.bf16.msra.mxu0 0
      %787 = vmatprep.subr.bf16.mxu0 0
      %788 = vmatpush2.bf16.msra.mxu0 0
      %789 = vmatprep.subr.bf16.mxu0 0
      %790 = vmatpush2.bf16.msra.mxu0 0
      %791 = vmatprep.subr.bf16.mxu0 0
      %792 = vmatpush2.bf16.msra.mxu0 0
      %793 = vmatprep.subr.bf16.mxu0 0
      %794 = vmatpush2.bf16.msra.mxu0 0
      %795 = vmatprep.subr.bf16.mxu0 0
      %796 = vmatpush2.bf16.msra.mxu0 0
      %797 = vmatprep.subr.bf16.mxu0 0
      %798 = vmatpush2.bf16.msra.mxu0 0
      %799 = vmatprep.mubr.bf16.mxu0 0
      %800 = vmatmul.mubr.bf16.gmra.mxu0 %v765
      %v801 = vpop.f32.mrf.mxu0
      %v802 = vadd.f32 0.0, %v801
      %v803 = vpop.f32.mrf.mxu0
      %v804 = vpop.f32.mrf.mxu0
      %v805 = vadd.f32 0.0, %v804
      %v806 = vpop.f32.mrf.mxu0
      %807 = vdwg.mxu0
      %v808 = vadd.f32 %v758, %v802
      %v809 = vadd.f32 %v761, %v805
      %v810 = vpack.c.bf16 %v809, %v808
      %v811 = vunpack.c.l.bf16 %v810
      %v812 = vunpack.c.h.bf16 %v810
      %v813 = vsub.f32 %v808, %v811
      %v814 = vsub.f32 %v809, %v812
      %v815 = vpack.c.bf16 %v814, %v813
      %vm816 = vcmask 523264
      %v818 = vsel %vm816, %v673, 0
      %820 = vmatprep.subr.bf16.mxu0 0
      %821 = vmatpush1.bf16.msra.mxu0 0
      %822 = vmatprep.subr.bf16.mxu0 0
      %823 = vmatpush1.bf16.msra.mxu0 0
      %824 = vmatprep.subr.bf16.mxu0 0
      %825 = vmatpush1.bf16.msra.mxu0 0
      %826 = vmatprep.subr.bf16.mxu0 0
      %827 = vmatpush1.bf16.msra.mxu0 0
      %828 = vmatprep.subr.bf16.mxu0 0
      %829 = vmatpush1.bf16.msra.mxu0 %v426
      %830 = vmatprep.subr.bf16.mxu0 0
      %831 = vmatpush1.bf16.msra.mxu0 %v425
      %832 = vmatprep.subr.bf16.mxu0 0
      %833 = vmatpush1.bf16.msra.mxu0 %v424
      %834 = vmatprep.subr.bf16.mxu0 0
      %835 = vmatpush1.bf16.msra.mxu0 %v423
      %836 = vmatprep.subr.bf16.mxu0 0
      %837 = vmatpush2.bf16.msra.mxu0 0
      %838 = vmatprep.subr.bf16.mxu0 0
      %839 = vmatpush2.bf16.msra.mxu0 0
      %840 = vmatprep.subr.bf16.mxu0 0
      %841 = vmatpush2.bf16.msra.mxu0 0
      %842 = vmatprep.subr.bf16.mxu0 0
      %843 = vmatpush2.bf16.msra.mxu0 0
      %844 = vmatprep.subr.bf16.mxu0 0
      %845 = vmatpush2.bf16.msra.mxu0 0
      %846 = vmatprep.subr.bf16.mxu0 0
      %847 = vmatpush2.bf16.msra.mxu0 0
      %848 = vmatprep.subr.bf16.mxu0 0
      %849 = vmatpush2.bf16.msra.mxu0 0
      %850 = vmatprep.subr.bf16.mxu0 0
      %851 = vmatpush2.bf16.msra.mxu0 0
      %852 = vmatprep.mubr.bf16.mxu0 0
      %853 = vmatmul.mubr.bf16.gmra.mxu0 %v818
      %v854 = vpop.f32.mrf.mxu0
      %v855 = vadd.f32 0.0, %v854
      %v856 = vpop.f32.mrf.mxu0
      %v857 = vpop.f32.mrf.mxu0
      %v858 = vadd.f32 0.0, %v857
      %v859 = vpop.f32.mrf.mxu0
      %860 = vdwg.mxu0
      %861 = vmatprep.subr.bf16.mxu0 0
      %862 = vmatpush1.bf16.msra.mxu0 0
      %863 = vmatprep.subr.bf16.mxu0 0
      %864 = vmatpush1.bf16.msra.mxu0 0
      %865 = vmatprep.subr.bf16.mxu0 0
      %866 = vmatpush1.bf16.msra.mxu0 0
      %867 = vmatprep.subr.bf16.mxu0 0
      %868 = vmatpush1.bf16.msra.mxu0 0
      %869 = vmatprep.subr.bf16.mxu0 0
      %870 = vmatpush1.bf16.msra.mxu0 %v406
      %871 = vmatprep.subr.bf16.mxu0 0
      %872 = vmatpush1.bf16.msra.mxu0 %v405
      %873 = vmatprep.subr.bf16.mxu0 0
      %874 = vmatpush1.bf16.msra.mxu0 %v404
      %875 = vmatprep.subr.bf16.mxu0 0
      %876 = vmatpush1.bf16.msra.mxu0 %v403
      %877 = vmatprep.subr.bf16.mxu0 0
      %878 = vmatpush2.bf16.msra.mxu0 0
      %879 = vmatprep.subr.bf16.mxu0 0
      %880 = vmatpush2.bf16.msra.mxu0 0
      %881 = vmatprep.subr.bf16.mxu0 0
      %882 = vmatpush2.bf16.msra.mxu0 0
      %883 = vmatprep.subr.bf16.mxu0 0
      %884 = vmatpush2.bf16.msra.mxu0 0
      %885 = vmatprep.subr.bf16.mxu0 0
      %886 = vmatpush2.bf16.msra.mxu0 0
      %887 = vmatprep.subr.bf16.mxu0 0
      %888 = vmatpush2.bf16.msra.mxu0 0
      %889 = vmatprep.subr.bf16.mxu0 0
      %890 = vmatpush2.bf16.msra.mxu0 0
      %891 = vmatprep.subr.bf16.mxu0 0
      %892 = vmatpush2.bf16.msra.mxu0 0
      %893 = vmatprep.mubr.bf16.mxu0 0
      %894 = vmatmul.mubr.bf16.gmra.mxu0 %v818
      %v895 = vpop.f32.mrf.mxu0
      %v896 = vadd.f32 %v855, %v895
      %v897 = vpop.f32.mrf.mxu0
      %v898 = vpop.f32.mrf.mxu0
      %v899 = vadd.f32 %v858, %v898
      %v900 = vpop.f32.mrf.mxu0
      %901 = vdwg.mxu0
      %v903 = vsel %vm816, %v678, 0
      %905 = vmatprep.subr.bf16.mxu0 0
      %906 = vmatpush1.bf16.msra.mxu0 0
      %907 = vmatprep.subr.bf16.mxu0 0
      %908 = vmatpush1.bf16.msra.mxu0 0
      %909 = vmatprep.subr.bf16.mxu0 0
      %910 = vmatpush1.bf16.msra.mxu0 0
      %911 = vmatprep.subr.bf16.mxu0 0
      %912 = vmatpush1.bf16.msra.mxu0 0
      %913 = vmatprep.subr.bf16.mxu0 0
      %914 = vmatpush1.bf16.msra.mxu0 %v406
      %915 = vmatprep.subr.bf16.mxu0 0
      %916 = vmatpush1.bf16.msra.mxu0 %v405
      %917 = vmatprep.subr.bf16.mxu0 0
      %918 = vmatpush1.bf16.msra.mxu0 %v404
      %919 = vmatprep.subr.bf16.mxu0 0
      %920 = vmatpush1.bf16.msra.mxu0 %v403
      %921 = vmatprep.subr.bf16.mxu0 0
      %922 = vmatpush2.bf16.msra.mxu0 0
      %923 = vmatprep.subr.bf16.mxu0 0
      %924 = vmatpush2.bf16.msra.mxu0 0
      %925 = vmatprep.subr.bf16.mxu0 0
      %926 = vmatpush2.bf16.msra.mxu0 0
      %927 = vmatprep.subr.bf16.mxu0 0
      %928 = vmatpush2.bf16.msra.mxu0 0
      %929 = vmatprep.subr.bf16.mxu0 0
      %930 = vmatpush2.bf16.msra.mxu0 0
      %931 = vmatprep.subr.bf16.mxu0 0
      %932 = vmatpush2.bf16.msra.mxu0 0
      %933 = vmatprep.subr.bf16.mxu0 0
      %934 = vmatpush2.bf16.msra.mxu0 0
      %935 = vmatprep.subr.bf16.mxu0 0
      %936 = vmatpush2.bf16.msra.mxu0 0
      %937 = vmatprep.mubr.bf16.mxu0 0
      %938 = vmatmul.mubr.bf16.gmra.mxu0 %v903
      %v939 = vpop.f32.mrf.mxu0
      %v940 = vadd.f32 0.0, %v939
      %v941 = vpop.f32.mrf.mxu0
      %v942 = vpop.f32.mrf.mxu0
      %v943 = vadd.f32 0.0, %v942
      %v944 = vpop.f32.mrf.mxu0
      %945 = vdwg.mxu0
      %v946 = vadd.f32 %v896, %v940
      %v947 = vadd.f32 %v899, %v943
      %v949 = vsel %vm816, %v810, 0
      %951 = vmatprep.subr.bf16.mxu0 0
      %952 = vmatpush1.bf16.msra.mxu0 0
      %953 = vmatprep.subr.bf16.mxu0 0
      %954 = vmatpush1.bf16.msra.mxu0 0
      %955 = vmatprep.subr.bf16.mxu0 0
      %956 = vmatpush1.bf16.msra.mxu0 0
      %957 = vmatprep.subr.bf16.mxu0 0
      %958 = vmatpush1.bf16.msra.mxu0 0
      %959 = vmatprep.subr.bf16.mxu0 0
      %960 = vmatpush1.bf16.msra.mxu0 %v458
      %961 = vmatprep.subr.bf16.mxu0 0
      %962 = vmatpush1.bf16.msra.mxu0 %v457
      %963 = vmatprep.subr.bf16.mxu0 0
      %964 = vmatpush1.bf16.msra.mxu0 %v456
      %965 = vmatprep.subr.bf16.mxu0 0
      %966 = vmatpush1.bf16.msra.mxu0 %v455
      %967 = vmatprep.subr.bf16.mxu0 0
      %968 = vmatpush2.bf16.msra.mxu0 0
      %969 = vmatprep.subr.bf16.mxu0 0
      %970 = vmatpush2.bf16.msra.mxu0 0
      %971 = vmatprep.subr.bf16.mxu0 0
      %972 = vmatpush2.bf16.msra.mxu0 0
      %973 = vmatprep.subr.bf16.mxu0 0
      %974 = vmatpush2.bf16.msra.mxu0 0
      %975 = vmatprep.subr.bf16.mxu0 0
      %976 = vmatpush2.bf16.msra.mxu0 0
      %977 = vmatprep.subr.bf16.mxu0 0
      %978 = vmatpush2.bf16.msra.mxu0 0
      %979 = vmatprep.subr.bf16.mxu0 0
      %980 = vmatpush2.bf16.msra.mxu0 0
      %981 = vmatprep.subr.bf16.mxu0 0
      %982 = vmatpush2.bf16.msra.mxu0 0
      %983 = vmatprep.mubr.bf16.mxu0 0
      %984 = vmatmul.mubr.bf16.gmra.mxu0 %v949
      %v985 = vpop.f32.mrf.mxu0
      %v986 = vadd.f32 0.0, %v985
      %v987 = vpop.f32.mrf.mxu0
      %v988 = vpop.f32.mrf.mxu0
      %v989 = vadd.f32 0.0, %v988
      %v990 = vpop.f32.mrf.mxu0
      %991 = vdwg.mxu0
      %992 = vmatprep.subr.bf16.mxu0 0
      %993 = vmatpush1.bf16.msra.mxu0 0
      %994 = vmatprep.subr.bf16.mxu0 0
      %995 = vmatpush1.bf16.msra.mxu0 0
      %996 = vmatprep.subr.bf16.mxu0 0
      %997 = vmatpush1.bf16.msra.mxu0 0
      %998 = vmatprep.subr.bf16.mxu0 0
      %999 = vmatpush1.bf16.msra.mxu0 0
      %1000 = vmatprep.subr.bf16.mxu0 0
      %1001 = vmatpush1.bf16.msra.mxu0 %v438
      %1002 = vmatprep.subr.bf16.mxu0 0
      %1003 = vmatpush1.bf16.msra.mxu0 %v437
      %1004 = vmatprep.subr.bf16.mxu0 0
      %1005 = vmatpush1.bf16.msra.mxu0 %v436
      %1006 = vmatprep.subr.bf16.mxu0 0
      %1007 = vmatpush1.bf16.msra.mxu0 %v435
      %1008 = vmatprep.subr.bf16.mxu0 0
      %1009 = vmatpush2.bf16.msra.mxu0 0
      %1010 = vmatprep.subr.bf16.mxu0 0
      %1011 = vmatpush2.bf16.msra.mxu0 0
      %1012 = vmatprep.subr.bf16.mxu0 0
      %1013 = vmatpush2.bf16.msra.mxu0 0
      %1014 = vmatprep.subr.bf16.mxu0 0
      %1015 = vmatpush2.bf16.msra.mxu0 0
      %1016 = vmatprep.subr.bf16.mxu0 0
      %1017 = vmatpush2.bf16.msra.mxu0 0
      %1018 = vmatprep.subr.bf16.mxu0 0
      %1019 = vmatpush2.bf16.msra.mxu0 0
      %1020 = vmatprep.subr.bf16.mxu0 0
      %1021 = vmatpush2.bf16.msra.mxu0 0
      %1022 = vmatprep.subr.bf16.mxu0 0
      %1023 = vmatpush2.bf16.msra.mxu0 0
      %1024 = vmatprep.mubr.bf16.mxu0 0
      %1025 = vmatmul.mubr.bf16.gmra.mxu0 %v949
      %v1026 = vpop.f32.mrf.mxu0
      %v1027 = vadd.f32 %v986, %v1026
      %v1028 = vpop.f32.mrf.mxu0
      %v1029 = vpop.f32.mrf.mxu0
      %v1030 = vadd.f32 %v989, %v1029
      %v1031 = vpop.f32.mrf.mxu0
      %1032 = vdwg.mxu0
      %v1034 = vsel %vm816, %v815, 0
      %1036 = vmatprep.subr.bf16.mxu0 0
      %1037 = vmatpush1.bf16.msra.mxu0 0
      %1038 = vmatprep.subr.bf16.mxu0 0
      %1039 = vmatpush1.bf16.msra.mxu0 0
      %1040 = vmatprep.subr.bf16.mxu0 0
      %1041 = vmatpush1.bf16.msra.mxu0 0
      %1042 = vmatprep.subr.bf16.mxu0 0
      %1043 = vmatpush1.bf16.msra.mxu0 0
      %1044 = vmatprep.subr.bf16.mxu0 0
      %1045 = vmatpush1.bf16.msra.mxu0 %v438
      %1046 = vmatprep.subr.bf16.mxu0 0
      %1047 = vmatpush1.bf16.msra.mxu0 %v437
      %1048 = vmatprep.subr.bf16.mxu0 0
      %1049 = vmatpush1.bf16.msra.mxu0 %v436
      %1050 = vmatprep.subr.bf16.mxu0 0
      %1051 = vmatpush1.bf16.msra.mxu0 %v435
      %1052 = vmatprep.subr.bf16.mxu0 0
      %1053 = vmatpush2.bf16.msra.mxu0 0
      %1054 = vmatprep.subr.bf16.mxu0 0
      %1055 = vmatpush2.bf16.msra.mxu0 0
      %1056 = vmatprep.subr.bf16.mxu0 0
      %1057 = vmatpush2.bf16.msra.mxu0 0
      %1058 = vmatprep.subr.bf16.mxu0 0
      %1059 = vmatpush2.bf16.msra.mxu0 0
      %1060 = vmatprep.subr.bf16.mxu0 0
      %1061 = vmatpush2.bf16.msra.mxu0 0
      %1062 = vmatprep.subr.bf16.mxu0 0
      %1063 = vmatpush2.bf16.msra.mxu0 0
      %1064 = vmatprep.subr.bf16.mxu0 0
      %1065 = vmatpush2.bf16.msra.mxu0 0
      %1066 = vmatprep.subr.bf16.mxu0 0
      %1067 = vmatpush2.bf16.msra.mxu0 0
      %1068 = vmatprep.mubr.bf16.mxu0 0
      %1069 = vmatmul.mubr.bf16.gmra.mxu0 %v1034
      %v1070 = vpop.f32.mrf.mxu0
      %v1071 = vadd.f32 0.0, %v1070
      %v1072 = vpop.f32.mrf.mxu0
      %v1073 = vpop.f32.mrf.mxu0
      %v1074 = vadd.f32 0.0, %v1073
      %v1075 = vpop.f32.mrf.mxu0
      %1076 = vdwg.mxu0
      %v1077 = vadd.f32 %v1027, %v1071
      %v1078 = vadd.f32 %v1030, %v1074
      %v1079 = vsub.f32 %v946, %v1077
      %v1080 = vsub.f32 %v947, %v1078
      %1081 = vmatprep.subr.bf16.mxu0 0
      %1082 = vmatpush1.bf16.msra.mxu0 0
      %1083 = vmatprep.subr.bf16.mxu0 0
      %1084 = vmatpush1.bf16.msra.mxu0 0
      %1085 = vmatprep.subr.bf16.mxu0 0
      %1086 = vmatpush1.bf16.msra.mxu0 0
      %1087 = vmatprep.subr.bf16.mxu0 0
      %1088 = vmatpush1.bf16.msra.mxu0 0
      %1089 = vmatprep.subr.bf16.mxu0 0
      %1090 = vmatpush1.bf16.msra.mxu0 %v458
      %1091 = vmatprep.subr.bf16.mxu0 0
      %1092 = vmatpush1.bf16.msra.mxu0 %v457
      %1093 = vmatprep.subr.bf16.mxu0 0
      %1094 = vmatpush1.bf16.msra.mxu0 %v456
      %1095 = vmatprep.subr.bf16.mxu0 0
      %1096 = vmatpush1.bf16.msra.mxu0 %v455
      %1097 = vmatprep.subr.bf16.mxu0 0
      %1098 = vmatpush2.bf16.msra.mxu0 0
      %1099 = vmatprep.subr.bf16.mxu0 0
      %1100 = vmatpush2.bf16.msra.mxu0 0
      %1101 = vmatprep.subr.bf16.mxu0 0
      %1102 = vmatpush2.bf16.msra.mxu0 0
      %1103 = vmatprep.subr.bf16.mxu0 0
      %1104 = vmatpush2.bf16.msra.mxu0 0
      %1105 = vmatprep.subr.bf16.mxu0 0
      %1106 = vmatpush2.bf16.msra.mxu0 0
      %1107 = vmatprep.subr.bf16.mxu0 0
      %1108 = vmatpush2.bf16.msra.mxu0 0
      %1109 = vmatprep.subr.bf16.mxu0 0
      %1110 = vmatpush2.bf16.msra.mxu0 0
      %1111 = vmatprep.subr.bf16.mxu0 0
      %1112 = vmatpush2.bf16.msra.mxu0 0
      %1113 = vmatprep.mubr.bf16.mxu0 0
      %1114 = vmatmul.mubr.bf16.gmra.mxu0 %v818
      %v1115 = vpop.f32.mrf.mxu0
      %v1116 = vadd.f32 0.0, %v1115
      %v1117 = vpop.f32.mrf.mxu0
      %v1118 = vpop.f32.mrf.mxu0
      %v1119 = vadd.f32 0.0, %v1118
      %v1120 = vpop.f32.mrf.mxu0
      %1121 = vdwg.mxu0
      %1122 = vmatprep.subr.bf16.mxu0 0
      %1123 = vmatpush1.bf16.msra.mxu0 0
      %1124 = vmatprep.subr.bf16.mxu0 0
      %1125 = vmatpush1.bf16.msra.mxu0 0
      %1126 = vmatprep.subr.bf16.mxu0 0
      %1127 = vmatpush1.bf16.msra.mxu0 0
      %1128 = vmatprep.subr.bf16.mxu0 0
      %1129 = vmatpush1.bf16.msra.mxu0 0
      %1130 = vmatprep.subr.bf16.mxu0 0
      %1131 = vmatpush1.bf16.msra.mxu0 %v438
      %1132 = vmatprep.subr.bf16.mxu0 0
      %1133 = vmatpush1.bf16.msra.mxu0 %v437
      %1134 = vmatprep.subr.bf16.mxu0 0
      %1135 = vmatpush1.bf16.msra.mxu0 %v436
      %1136 = vmatprep.subr.bf16.mxu0 0
      %1137 = vmatpush1.bf16.msra.mxu0 %v435
      %1138 = vmatprep.subr.bf16.mxu0 0
      %1139 = vmatpush2.bf16.msra.mxu0 0
      %1140 = vmatprep.subr.bf16.mxu0 0
      %1141 = vmatpush2.bf16.msra.mxu0 0
      %1142 = vmatprep.subr.bf16.mxu0 0
      %1143 = vmatpush2.bf16.msra.mxu0 0
      %1144 = vmatprep.subr.bf16.mxu0 0
      %1145 = vmatpush2.bf16.msra.mxu0 0
      %1146 = vmatprep.subr.bf16.mxu0 0
      %1147 = vmatpush2.bf16.msra.mxu0 0
      %1148 = vmatprep.subr.bf16.mxu0 0
      %1149 = vmatpush2.bf16.msra.mxu0 0
      %1150 = vmatprep.subr.bf16.mxu0 0
      %1151 = vmatpush2.bf16.msra.mxu0 0
      %1152 = vmatprep.subr.bf16.mxu0 0
      %1153 = vmatpush2.bf16.msra.mxu0 0
      %1154 = vmatprep.mubr.bf16.mxu0 0
      %1155 = vmatmul.mubr.bf16.gmra.mxu0 %v818
      %v1156 = vpop.f32.mrf.mxu0
      %v1157 = vadd.f32 %v1116, %v1156
      %v1158 = vpop.f32.mrf.mxu0
      %v1159 = vpop.f32.mrf.mxu0
      %v1160 = vadd.f32 %v1119, %v1159
      %v1161 = vpop.f32.mrf.mxu0
      %1162 = vdwg.mxu0
      %1163 = vmatprep.subr.bf16.mxu0 0
      %1164 = vmatpush1.bf16.msra.mxu0 0
      %1165 = vmatprep.subr.bf16.mxu0 0
      %1166 = vmatpush1.bf16.msra.mxu0 0
      %1167 = vmatprep.subr.bf16.mxu0 0
      %1168 = vmatpush1.bf16.msra.mxu0 0
      %1169 = vmatprep.subr.bf16.mxu0 0
      %1170 = vmatpush1.bf16.msra.mxu0 0
      %1171 = vmatprep.subr.bf16.mxu0 0
      %1172 = vmatpush1.bf16.msra.mxu0 %v438
      %1173 = vmatprep.subr.bf16.mxu0 0
      %1174 = vmatpush1.bf16.msra.mxu0 %v437
      %1175 = vmatprep.subr.bf16.mxu0 0
      %1176 = vmatpush1.bf16.msra.mxu0 %v436
      %1177 = vmatprep.subr.bf16.mxu0 0
      %1178 = vmatpush1.bf16.msra.mxu0 %v435
      %1179 = vmatprep.subr.bf16.mxu0 0
      %1180 = vmatpush2.bf16.msra.mxu0 0
      %1181 = vmatprep.subr.bf16.mxu0 0
      %1182 = vmatpush2.bf16.msra.mxu0 0
      %1183 = vmatprep.subr.bf16.mxu0 0
      %1184 = vmatpush2.bf16.msra.mxu0 0
      %1185 = vmatprep.subr.bf16.mxu0 0
      %1186 = vmatpush2.bf16.msra.mxu0 0
      %1187 = vmatprep.subr.bf16.mxu0 0
      %1188 = vmatpush2.bf16.msra.mxu0 0
      %1189 = vmatprep.subr.bf16.mxu0 0
      %1190 = vmatpush2.bf16.msra.mxu0 0
      %1191 = vmatprep.subr.bf16.mxu0 0
      %1192 = vmatpush2.bf16.msra.mxu0 0
      %1193 = vmatprep.subr.bf16.mxu0 0
      %1194 = vmatpush2.bf16.msra.mxu0 0
      %1195 = vmatprep.mubr.bf16.mxu0 0
      %1196 = vmatmul.mubr.bf16.gmra.mxu0 %v903
      %v1197 = vpop.f32.mrf.mxu0
      %v1198 = vadd.f32 0.0, %v1197
      %v1199 = vpop.f32.mrf.mxu0
      %v1200 = vpop.f32.mrf.mxu0
      %v1201 = vadd.f32 0.0, %v1200
      %v1202 = vpop.f32.mrf.mxu0
      %1203 = vdwg.mxu0
      %v1204 = vadd.f32 %v1157, %v1198
      %v1205 = vadd.f32 %v1160, %v1201
      %1206 = vmatprep.subr.bf16.mxu0 0
      %1207 = vmatpush1.bf16.msra.mxu0 0
      %1208 = vmatprep.subr.bf16.mxu0 0
      %1209 = vmatpush1.bf16.msra.mxu0 0
      %1210 = vmatprep.subr.bf16.mxu0 0
      %1211 = vmatpush1.bf16.msra.mxu0 0
      %1212 = vmatprep.subr.bf16.mxu0 0
      %1213 = vmatpush1.bf16.msra.mxu0 0
      %1214 = vmatprep.subr.bf16.mxu0 0
      %1215 = vmatpush1.bf16.msra.mxu0 %v426
      %1216 = vmatprep.subr.bf16.mxu0 0
      %1217 = vmatpush1.bf16.msra.mxu0 %v425
      %1218 = vmatprep.subr.bf16.mxu0 0
      %1219 = vmatpush1.bf16.msra.mxu0 %v424
      %1220 = vmatprep.subr.bf16.mxu0 0
      %1221 = vmatpush1.bf16.msra.mxu0 %v423
      %1222 = vmatprep.subr.bf16.mxu0 0
      %1223 = vmatpush2.bf16.msra.mxu0 0
      %1224 = vmatprep.subr.bf16.mxu0 0
      %1225 = vmatpush2.bf16.msra.mxu0 0
      %1226 = vmatprep.subr.bf16.mxu0 0
      %1227 = vmatpush2.bf16.msra.mxu0 0
      %1228 = vmatprep.subr.bf16.mxu0 0
      %1229 = vmatpush2.bf16.msra.mxu0 0
      %1230 = vmatprep.subr.bf16.mxu0 0
      %1231 = vmatpush2.bf16.msra.mxu0 0
      %1232 = vmatprep.subr.bf16.mxu0 0
      %1233 = vmatpush2.bf16.msra.mxu0 0
      %1234 = vmatprep.subr.bf16.mxu0 0
      %1235 = vmatpush2.bf16.msra.mxu0 0
      %1236 = vmatprep.subr.bf16.mxu0 0
      %1237 = vmatpush2.bf16.msra.mxu0 0
      %1238 = vmatprep.mubr.bf16.mxu0 0
      %1239 = vmatmul.mubr.bf16.gmra.mxu0 %v949
      %v1240 = vpop.f32.mrf.mxu0
      %v1241 = vadd.f32 0.0, %v1240
      %v1242 = vpop.f32.mrf.mxu0
      %v1243 = vpop.f32.mrf.mxu0
      %v1244 = vadd.f32 0.0, %v1243
      %v1245 = vpop.f32.mrf.mxu0
      %1246 = vdwg.mxu0
      %1247 = vmatprep.subr.bf16.mxu0 0
      %1248 = vmatpush1.bf16.msra.mxu0 0
      %1249 = vmatprep.subr.bf16.mxu0 0
      %1250 = vmatpush1.bf16.msra.mxu0 0
      %1251 = vmatprep.subr.bf16.mxu0 0
      %1252 = vmatpush1.bf16.msra.mxu0 0
      %1253 = vmatprep.subr.bf16.mxu0 0
      %1254 = vmatpush1.bf16.msra.mxu0 0
      %1255 = vmatprep.subr.bf16.mxu0 0
      %1256 = vmatpush1.bf16.msra.mxu0 %v406
      %1257 = vmatprep.subr.bf16.mxu0 0
      %1258 = vmatpush1.bf16.msra.mxu0 %v405
      %1259 = vmatprep.subr.bf16.mxu0 0
      %1260 = vmatpush1.bf16.msra.mxu0 %v404
      %1261 = vmatprep.subr.bf16.mxu0 0
      %1262 = vmatpush1.bf16.msra.mxu0 %v403
      %1263 = vmatprep.subr.bf16.mxu0 0
      %1264 = vmatpush2.bf16.msra.mxu0 0
      %1265 = vmatprep.subr.bf16.mxu0 0
      %1266 = vmatpush2.bf16.msra.mxu0 0
      %1267 = vmatprep.subr.bf16.mxu0 0
      %1268 = vmatpush2.bf16.msra.mxu0 0
      %1269 = vmatprep.subr.bf16.mxu0 0
      %1270 = vmatpush2.bf16.msra.mxu0 0
      %1271 = vmatprep.subr.bf16.mxu0 0
      %1272 = vmatpush2.bf16.msra.mxu0 0
      %1273 = vmatprep.subr.bf16.mxu0 0
      %1274 = vmatpush2.bf16.msra.mxu0 0
      %1275 = vmatprep.subr.bf16.mxu0 0
      %1276 = vmatpush2.bf16.msra.mxu0 0
      %1277 = vmatprep.subr.bf16.mxu0 0
      %1278 = vmatpush2.bf16.msra.mxu0 0
      %1279 = vmatprep.mubr.bf16.mxu0 0
      %1280 = vmatmul.mubr.bf16.gmra.mxu0 %v949
      %v1281 = vpop.f32.mrf.mxu0
      %v1282 = vadd.f32 %v1241, %v1281
      %v1283 = vpop.f32.mrf.mxu0
      %v1284 = vpop.f32.mrf.mxu0
      %v1285 = vadd.f32 %v1244, %v1284
      %v1286 = vpop.f32.mrf.mxu0
      %1287 = vdwg.mxu0
      %1288 = vmatprep.subr.bf16.mxu0 0
      %1289 = vmatpush1.bf16.msra.mxu0 0
      %1290 = vmatprep.subr.bf16.mxu0 0
      %1291 = vmatpush1.bf16.msra.mxu0 0
      %1292 = vmatprep.subr.bf16.mxu0 0
      %1293 = vmatpush1.bf16.msra.mxu0 0
      %1294 = vmatprep.subr.bf16.mxu0 0
      %1295 = vmatpush1.bf16.msra.mxu0 0
      %1296 = vmatprep.subr.bf16.mxu0 0
      %1297 = vmatpush1.bf16.msra.mxu0 %v406
      %1298 = vmatprep.subr.bf16.mxu0 0
      %1299 = vmatpush1.bf16.msra.mxu0 %v405
      %1300 = vmatprep.subr.bf16.mxu0 0
      %1301 = vmatpush1.bf16.msra.mxu0 %v404
      %1302 = vmatprep.subr.bf16.mxu0 0
      %1303 = vmatpush1.bf16.msra.mxu0 %v403
      %1304 = vmatprep.subr.bf16.mxu0 0
      %1305 = vmatpush2.bf16.msra.mxu0 0
      %1306 = vmatprep.subr.bf16.mxu0 0
      %1307 = vmatpush2.bf16.msra.mxu0 0
      %1308 = vmatprep.subr.bf16.mxu0 0
      %1309 = vmatpush2.bf16.msra.mxu0 0
      %1310 = vmatprep.subr.bf16.mxu0 0
      %1311 = vmatpush2.bf16.msra.mxu0 0
      %1312 = vmatprep.subr.bf16.mxu0 0
      %1313 = vmatpush2.bf16.msra.mxu0 0
      %1314 = vmatprep.subr.bf16.mxu0 0
      %1315 = vmatpush2.bf16.msra.mxu0 0
      %1316 = vmatprep.subr.bf16.mxu0 0
      %1317 = vmatpush2.bf16.msra.mxu0 0
      %1318 = vmatprep.subr.bf16.mxu0 0
      %1319 = vmatpush2.bf16.msra.mxu0 0
      %1320 = vmatprep.mubr.bf16.mxu0 0
      %1321 = vmatmul.mubr.bf16.gmra.mxu0 %v1034
      %v1322 = vpop.f32.mrf.mxu0
      %v1323 = vadd.f32 0.0, %v1322
      %v1324 = vpop.f32.mrf.mxu0
      %v1325 = vpop.f32.mrf.mxu0
      %v1326 = vadd.f32 0.0, %v1325
      %v1327 = vpop.f32.mrf.mxu0
      %1328 = vdwg.mxu0
      %v1329 = vadd.f32 %v1282, %v1323
      %v1330 = vadd.f32 %v1285, %v1326
      %v1331 = vadd.f32 %v1204, %v1329
      %v1332 = vadd.f32 %v1205, %v1330
      %v1333 = vld [vmem:[%s373] sm:$0xff]
      %v1334 = vld [vmem:[%s373 + $0x8] sm:$0xff]
      %v1335 = vpack.c.bf16 %v1334, %v1333
      %v1336 = vunpack.c.l.bf16 %v1335
      %v1337 = vunpack.c.h.bf16 %v1335
      %v1338 = vsub.f32 %v1333, %v1336
      %v1339 = vsub.f32 %v1334, %v1337
      %v1340 = vpack.c.bf16 %v1339, %v1338
      %1341 = vmatprep.subr.bf16.mxu0 0
      %1342 = vmatpush1.bf16.msra.mxu0 0
      %1343 = vmatprep.subr.bf16.mxu0 0
      %1344 = vmatpush1.bf16.msra.mxu0 0
      %1345 = vmatprep.subr.bf16.mxu0 0
      %1346 = vmatpush1.bf16.msra.mxu0 0
      %1347 = vmatprep.subr.bf16.mxu0 0
      %1348 = vmatpush1.bf16.msra.mxu0 0
      %1349 = vmatprep.subr.bf16.mxu0 0
      %1350 = vmatpush1.bf16.msra.mxu0 0
      %1351 = vmatprep.subr.bf16.mxu0 0
      %1352 = vmatpush1.bf16.msra.mxu0 0
      %1353 = vmatprep.subr.bf16.mxu0 0
      %1354 = vmatpush1.bf16.msra.mxu0 0
      %1355 = vmatprep.subr.bf16.mxu0 0
      %1356 = vmatpush1.bf16.msra.mxu0 %v1340
      %1357 = vmatprep.subr.bf16.mxu0 0
      %1358 = vmatpush2.bf16.msra.mxu0 0
      %1359 = vmatprep.subr.bf16.mxu0 0
      %1360 = vmatpush2.bf16.msra.mxu0 0
      %1361 = vmatprep.subr.bf16.mxu0 0
      %1362 = vmatpush2.bf16.msra.mxu0 0
      %1363 = vmatprep.subr.bf16.mxu0 0
      %1364 = vmatpush2.bf16.msra.mxu0 0
      %1365 = vmatprep.subr.bf16.mxu0 0
      %1366 = vmatpush2.bf16.msra.mxu0 0
      %1367 = vmatprep.subr.bf16.mxu0 0
      %1368 = vmatpush2.bf16.msra.mxu0 0
      %1369 = vmatprep.subr.bf16.mxu0 0
      %1370 = vmatpush2.bf16.msra.mxu0 0
      %1371 = vmatprep.subr.bf16.mxu0 0
      %1372 = vmatpush2.bf16.msra.mxu0 0
      %1373 = vmatprep.mubr.bf16.mxu0 0
      %1374 = vmatmul.mubr.bf16.gmra.mxu0 %v543
      %v1375 = vpop.f32.mrf.mxu0
      %v1376 = vadd.f32 0.0, %v1375
      %v1377 = vpop.f32.mrf.mxu0
      %v1378 = vpop.f32.mrf.mxu0
      %v1379 = vadd.f32 0.0, %v1378
      %v1380 = vpop.f32.mrf.mxu0
      %1381 = vdwg.mxu0
      %1382 = vmatprep.subr.bf16.mxu0 0
      %1383 = vmatpush1.bf16.msra.mxu0 0
      %1384 = vmatprep.subr.bf16.mxu0 0
      %1385 = vmatpush1.bf16.msra.mxu0 0
      %1386 = vmatprep.subr.bf16.mxu0 0
      %1387 = vmatpush1.bf16.msra.mxu0 0
      %1388 = vmatprep.subr.bf16.mxu0 0
      %1389 = vmatpush1.bf16.msra.mxu0 0
      %1390 = vmatprep.subr.bf16.mxu0 0
      %1391 = vmatpush1.bf16.msra.mxu0 0
      %1392 = vmatprep.subr.bf16.mxu0 0
      %1393 = vmatpush1.bf16.msra.mxu0 0
      %1394 = vmatprep.subr.bf16.mxu0 0
      %1395 = vmatpush1.bf16.msra.mxu0 0
      %1396 = vmatprep.subr.bf16.mxu0 0
      %1397 = vmatpush1.bf16.msra.mxu0 %v1335
      %1398 = vmatprep.subr.bf16.mxu0 0
      %1399 = vmatpush2.bf16.msra.mxu0 0
      %1400 = vmatprep.subr.bf16.mxu0 0
      %1401 = vmatpush2.bf16.msra.mxu0 0
      %1402 = vmatprep.subr.bf16.mxu0 0
      %1403 = vmatpush2.bf16.msra.mxu0 0
      %1404 = vmatprep.subr.bf16.mxu0 0
      %1405 = vmatpush2.bf16.msra.mxu0 0
      %1406 = vmatprep.subr.bf16.mxu0 0
      %1407 = vmatpush2.bf16.msra.mxu0 0
      %1408 = vmatprep.subr.bf16.mxu0 0
      %1409 = vmatpush2.bf16.msra.mxu0 0
      %1410 = vmatprep.subr.bf16.mxu0 0
      %1411 = vmatpush2.bf16.msra.mxu0 0
      %1412 = vmatprep.subr.bf16.mxu0 0
      %1413 = vmatpush2.bf16.msra.mxu0 0
      %1414 = vmatprep.mubr.bf16.mxu0 0
      %1415 = vmatmul.mubr.bf16.gmra.mxu0 %v543
      %v1416 = vpop.f32.mrf.mxu0
      %v1417 = vadd.f32 %v1376, %v1416
      %v1418 = vpop.f32.mrf.mxu0
      %v1419 = vpop.f32.mrf.mxu0
      %v1420 = vadd.f32 %v1379, %v1419
      %v1421 = vpop.f32.mrf.mxu0
      %1422 = vdwg.mxu0
      %1423 = vmatprep.subr.bf16.mxu0 0
      %1424 = vmatpush1.bf16.msra.mxu0 0
      %1425 = vmatprep.subr.bf16.mxu0 0
      %1426 = vmatpush1.bf16.msra.mxu0 0
      %1427 = vmatprep.subr.bf16.mxu0 0
      %1428 = vmatpush1.bf16.msra.mxu0 0
      %1429 = vmatprep.subr.bf16.mxu0 0
      %1430 = vmatpush1.bf16.msra.mxu0 0
      %1431 = vmatprep.subr.bf16.mxu0 0
      %1432 = vmatpush1.bf16.msra.mxu0 0
      %1433 = vmatprep.subr.bf16.mxu0 0
      %1434 = vmatpush1.bf16.msra.mxu0 0
      %1435 = vmatprep.subr.bf16.mxu0 0
      %1436 = vmatpush1.bf16.msra.mxu0 0
      %1437 = vmatprep.subr.bf16.mxu0 0
      %1438 = vmatpush1.bf16.msra.mxu0 %v1335
      %1439 = vmatprep.subr.bf16.mxu0 0
      %1440 = vmatpush2.bf16.msra.mxu0 0
      %1441 = vmatprep.subr.bf16.mxu0 0
      %1442 = vmatpush2.bf16.msra.mxu0 0
      %1443 = vmatprep.subr.bf16.mxu0 0
      %1444 = vmatpush2.bf16.msra.mxu0 0
      %1445 = vmatprep.subr.bf16.mxu0 0
      %1446 = vmatpush2.bf16.msra.mxu0 0
      %1447 = vmatprep.subr.bf16.mxu0 0
      %1448 = vmatpush2.bf16.msra.mxu0 0
      %1449 = vmatprep.subr.bf16.mxu0 0
      %1450 = vmatpush2.bf16.msra.mxu0 0
      %1451 = vmatprep.subr.bf16.mxu0 0
      %1452 = vmatpush2.bf16.msra.mxu0 0
      %1453 = vmatprep.subr.bf16.mxu0 0
      %1454 = vmatpush2.bf16.msra.mxu0 0
      %1455 = vmatprep.mubr.bf16.mxu0 0
      %1456 = vmatmul.mubr.bf16.gmra.mxu0 %v628
      %v1457 = vpop.f32.mrf.mxu0
      %v1458 = vadd.f32 0.0, %v1457
      %v1459 = vpop.f32.mrf.mxu0
      %v1460 = vpop.f32.mrf.mxu0
      %v1461 = vadd.f32 0.0, %v1460
      %v1462 = vpop.f32.mrf.mxu0
      %1463 = vdwg.mxu0
      %v1464 = vadd.f32 %v1417, %v1458
      %v1465 = vadd.f32 %v1420, %v1461
      %v1466 = vpack.c.bf16 %v1465, %v1464
      %v1467 = vunpack.c.l.bf16 %v1466
      %v1468 = vunpack.c.h.bf16 %v1466
      %v1469 = vsub.f32 %v1464, %v1467
      %v1470 = vsub.f32 %v1465, %v1468
      %v1471 = vpack.c.bf16 %v1470, %v1469
      %1472 = vmatprep.subr.bf16.mxu0 0
      %1473 = vmatpush1.bf16.msra.mxu0 0
      %1474 = vmatprep.subr.bf16.mxu0 0
      %1475 = vmatpush1.bf16.msra.mxu0 0
      %1476 = vmatprep.subr.bf16.mxu0 0
      %1477 = vmatpush1.bf16.msra.mxu0 0
      %1478 = vmatprep.subr.bf16.mxu0 0
      %1479 = vmatpush1.bf16.msra.mxu0 0
      %1480 = vmatprep.subr.bf16.mxu0 0
      %1481 = vmatpush1.bf16.msra.mxu0 0
      %1482 = vmatprep.subr.bf16.mxu0 0
      %1483 = vmatpush1.bf16.msra.mxu0 0
      %1484 = vmatprep.subr.bf16.mxu0 0
      %1485 = vmatpush1.bf16.msra.mxu0 0
      %1486 = vmatprep.subr.bf16.mxu0 0
      %1487 = vmatpush1.bf16.msra.mxu0 %v1340
      %1488 = vmatprep.subr.bf16.mxu0 0
      %1489 = vmatpush2.bf16.msra.mxu0 0
      %1490 = vmatprep.subr.bf16.mxu0 0
      %1491 = vmatpush2.bf16.msra.mxu0 0
      %1492 = vmatprep.subr.bf16.mxu0 0
      %1493 = vmatpush2.bf16.msra.mxu0 0
      %1494 = vmatprep.subr.bf16.mxu0 0
      %1495 = vmatpush2.bf16.msra.mxu0 0
      %1496 = vmatprep.subr.bf16.mxu0 0
      %1497 = vmatpush2.bf16.msra.mxu0 0
      %1498 = vmatprep.subr.bf16.mxu0 0
      %1499 = vmatpush2.bf16.msra.mxu0 0
      %1500 = vmatprep.subr.bf16.mxu0 0
      %1501 = vmatpush2.bf16.msra.mxu0 0
      %1502 = vmatprep.subr.bf16.mxu0 0
      %1503 = vmatpush2.bf16.msra.mxu0 0
      %1504 = vmatprep.mubr.bf16.mxu0 0
      %1505 = vmatmul.mubr.bf16.gmra.mxu0 %v680
      %v1506 = vpop.f32.mrf.mxu0
      %v1507 = vadd.f32 0.0, %v1506
      %v1508 = vpop.f32.mrf.mxu0
      %v1509 = vpop.f32.mrf.mxu0
      %v1510 = vadd.f32 0.0, %v1509
      %v1511 = vpop.f32.mrf.mxu0
      %1512 = vdwg.mxu0
      %1513 = vmatprep.subr.bf16.mxu0 0
      %1514 = vmatpush1.bf16.msra.mxu0 0
      %1515 = vmatprep.subr.bf16.mxu0 0
      %1516 = vmatpush1.bf16.msra.mxu0 0
      %1517 = vmatprep.subr.bf16.mxu0 0
      %1518 = vmatpush1.bf16.msra.mxu0 0
      %1519 = vmatprep.subr.bf16.mxu0 0
      %1520 = vmatpush1.bf16.msra.mxu0 0
      %1521 = vmatprep.subr.bf16.mxu0 0
      %1522 = vmatpush1.bf16.msra.mxu0 0
      %1523 = vmatprep.subr.bf16.mxu0 0
      %1524 = vmatpush1.bf16.msra.mxu0 0
      %1525 = vmatprep.subr.bf16.mxu0 0
      %1526 = vmatpush1.bf16.msra.mxu0 0
      %1527 = vmatprep.subr.bf16.mxu0 0
      %1528 = vmatpush1.bf16.msra.mxu0 %v1335
      %1529 = vmatprep.subr.bf16.mxu0 0
      %1530 = vmatpush2.bf16.msra.mxu0 0
      %1531 = vmatprep.subr.bf16.mxu0 0
      %1532 = vmatpush2.bf16.msra.mxu0 0
      %1533 = vmatprep.subr.bf16.mxu0 0
      %1534 = vmatpush2.bf16.msra.mxu0 0
      %1535 = vmatprep.subr.bf16.mxu0 0
      %1536 = vmatpush2.bf16.msra.mxu0 0
      %1537 = vmatprep.subr.bf16.mxu0 0
      %1538 = vmatpush2.bf16.msra.mxu0 0
      %1539 = vmatprep.subr.bf16.mxu0 0
      %1540 = vmatpush2.bf16.msra.mxu0 0
      %1541 = vmatprep.subr.bf16.mxu0 0
      %1542 = vmatpush2.bf16.msra.mxu0 0
      %1543 = vmatprep.subr.bf16.mxu0 0
      %1544 = vmatpush2.bf16.msra.mxu0 0
      %1545 = vmatprep.mubr.bf16.mxu0 0
      %1546 = vmatmul.mubr.bf16.gmra.mxu0 %v680
      %v1547 = vpop.f32.mrf.mxu0
      %v1548 = vadd.f32 %v1507, %v1547
      %v1549 = vpop.f32.mrf.mxu0
      %v1550 = vpop.f32.mrf.mxu0
      %v1551 = vadd.f32 %v1510, %v1550
      %v1552 = vpop.f32.mrf.mxu0
      %1553 = vdwg.mxu0
      %1554 = vmatprep.subr.bf16.mxu0 0
      %1555 = vmatpush1.bf16.msra.mxu0 0
      %1556 = vmatprep.subr.bf16.mxu0 0
      %1557 = vmatpush1.bf16.msra.mxu0 0
      %1558 = vmatprep.subr.bf16.mxu0 0
      %1559 = vmatpush1.bf16.msra.mxu0 0
      %1560 = vmatprep.subr.bf16.mxu0 0
      %1561 = vmatpush1.bf16.msra.mxu0 0
      %1562 = vmatprep.subr.bf16.mxu0 0
      %1563 = vmatpush1.bf16.msra.mxu0 0
      %1564 = vmatprep.subr.bf16.mxu0 0
      %1565 = vmatpush1.bf16.msra.mxu0 0
      %1566 = vmatprep.subr.bf16.mxu0 0
      %1567 = vmatpush1.bf16.msra.mxu0 0
      %1568 = vmatprep.subr.bf16.mxu0 0
      %1569 = vmatpush1.bf16.msra.mxu0 %v1335
      %1570 = vmatprep.subr.bf16.mxu0 0
      %1571 = vmatpush2.bf16.msra.mxu0 0
      %1572 = vmatprep.subr.bf16.mxu0 0
      %1573 = vmatpush2.bf16.msra.mxu0 0
      %1574 = vmatprep.subr.bf16.mxu0 0
      %1575 = vmatpush2.bf16.msra.mxu0 0
      %1576 = vmatprep.subr.bf16.mxu0 0
      %1577 = vmatpush2.bf16.msra.mxu0 0
      %1578 = vmatprep.subr.bf16.mxu0 0
      %1579 = vmatpush2.bf16.msra.mxu0 0
      %1580 = vmatprep.subr.bf16.mxu0 0
      %1581 = vmatpush2.bf16.msra.mxu0 0
      %1582 = vmatprep.subr.bf16.mxu0 0
      %1583 = vmatpush2.bf16.msra.mxu0 0
      %1584 = vmatprep.subr.bf16.mxu0 0
      %1585 = vmatpush2.bf16.msra.mxu0 0
      %1586 = vmatprep.mubr.bf16.mxu0 0
      %1587 = vmatmul.mubr.bf16.gmra.mxu0 %v765
      %v1588 = vpop.f32.mrf.mxu0
      %v1589 = vadd.f32 0.0, %v1588
      %v1590 = vpop.f32.mrf.mxu0
      %v1591 = vpop.f32.mrf.mxu0
      %v1592 = vadd.f32 0.0, %v1591
      %v1593 = vpop.f32.mrf.mxu0
      %1594 = vdwg.mxu0
      %v1595 = vadd.f32 %v1548, %v1589
      %v1596 = vadd.f32 %v1551, %v1592
      %v1597 = vpack.c.bf16 %v1596, %v1595
      %v1598 = vunpack.c.l.bf16 %v1597
      %v1599 = vunpack.c.h.bf16 %v1597
      %v1600 = vsub.f32 %v1595, %v1598
      %v1601 = vsub.f32 %v1596, %v1599
      %v1602 = vpack.c.bf16 %v1601, %v1600
      %v1604 = vsel %vm816, %v1466, 0
      %1606 = vmatprep.subr.bf16.mxu0 0
      %1607 = vmatpush1.bf16.msra.mxu0 0
      %1608 = vmatprep.subr.bf16.mxu0 0
      %1609 = vmatpush1.bf16.msra.mxu0 0
      %1610 = vmatprep.subr.bf16.mxu0 0
      %1611 = vmatpush1.bf16.msra.mxu0 0
      %1612 = vmatprep.subr.bf16.mxu0 0
      %1613 = vmatpush1.bf16.msra.mxu0 0
      %1614 = vmatprep.subr.bf16.mxu0 0
      %1615 = vmatpush1.bf16.msra.mxu0 %v426
      %1616 = vmatprep.subr.bf16.mxu0 0
      %1617 = vmatpush1.bf16.msra.mxu0 %v425
      %1618 = vmatprep.subr.bf16.mxu0 0
      %1619 = vmatpush1.bf16.msra.mxu0 %v424
      %1620 = vmatprep.subr.bf16.mxu0 0
      %1621 = vmatpush1.bf16.msra.mxu0 %v423
      %1622 = vmatprep.subr.bf16.mxu0 0
      %1623 = vmatpush2.bf16.msra.mxu0 0
      %1624 = vmatprep.subr.bf16.mxu0 0
      %1625 = vmatpush2.bf16.msra.mxu0 0
      %1626 = vmatprep.subr.bf16.mxu0 0
      %1627 = vmatpush2.bf16.msra.mxu0 0
      %1628 = vmatprep.subr.bf16.mxu0 0
      %1629 = vmatpush2.bf16.msra.mxu0 0
      %1630 = vmatprep.subr.bf16.mxu0 0
      %1631 = vmatpush2.bf16.msra.mxu0 0
      %1632 = vmatprep.subr.bf16.mxu0 0
      %1633 = vmatpush2.bf16.msra.mxu0 0
      %1634 = vmatprep.subr.bf16.mxu0 0
      %1635 = vmatpush2.bf16.msra.mxu0 0
      %1636 = vmatprep.subr.bf16.mxu0 0
      %1637 = vmatpush2.bf16.msra.mxu0 0
      %1638 = vmatprep.mubr.bf16.mxu0 0
      %1639 = vmatmul.mubr.bf16.gmra.mxu0 %v1604
      %v1640 = vpop.f32.mrf.mxu0
      %v1641 = vadd.f32 0.0, %v1640
      %v1642 = vpop.f32.mrf.mxu0
      %v1643 = vpop.f32.mrf.mxu0
      %v1644 = vadd.f32 0.0, %v1643
      %v1645 = vpop.f32.mrf.mxu0
      %1646 = vdwg.mxu0
      %1647 = vmatprep.subr.bf16.mxu0 0
      %1648 = vmatpush1.bf16.msra.mxu0 0
      %1649 = vmatprep.subr.bf16.mxu0 0
      %1650 = vmatpush1.bf16.msra.mxu0 0
      %1651 = vmatprep.subr.bf16.mxu0 0
      %1652 = vmatpush1.bf16.msra.mxu0 0
      %1653 = vmatprep.subr.bf16.mxu0 0
      %1654 = vmatpush1.bf16.msra.mxu0 0
      %1655 = vmatprep.subr.bf16.mxu0 0
      %1656 = vmatpush1.bf16.msra.mxu0 %v406
      %1657 = vmatprep.subr.bf16.mxu0 0
      %1658 = vmatpush1.bf16.msra.mxu0 %v405
      %1659 = vmatprep.subr.bf16.mxu0 0
      %1660 = vmatpush1.bf16.msra.mxu0 %v404
      %1661 = vmatprep.subr.bf16.mxu0 0
      %1662 = vmatpush1.bf16.msra.mxu0 %v403
      %1663 = vmatprep.subr.bf16.mxu0 0
      %1664 = vmatpush2.bf16.msra.mxu0 0
      %1665 = vmatprep.subr.bf16.mxu0 0
      %1666 = vmatpush2.bf16.msra.mxu0 0
      %1667 = vmatprep.subr.bf16.mxu0 0
      %1668 = vmatpush2.bf16.msra.mxu0 0
      %1669 = vmatprep.subr.bf16.mxu0 0
      %1670 = vmatpush2.bf16.msra.mxu0 0
      %1671 = vmatprep.subr.bf16.mxu0 0
      %1672 = vmatpush2.bf16.msra.mxu0 0
      %1673 = vmatprep.subr.bf16.mxu0 0
      %1674 = vmatpush2.bf16.msra.mxu0 0
      %1675 = vmatprep.subr.bf16.mxu0 0
      %1676 = vmatpush2.bf16.msra.mxu0 0
      %1677 = vmatprep.subr.bf16.mxu0 0
      %1678 = vmatpush2.bf16.msra.mxu0 0
      %1679 = vmatprep.mubr.bf16.mxu0 0
      %1680 = vmatmul.mubr.bf16.gmra.mxu0 %v1604
      %v1681 = vpop.f32.mrf.mxu0
      %v1682 = vadd.f32 %v1641, %v1681
      %v1683 = vpop.f32.mrf.mxu0
      %v1684 = vpop.f32.mrf.mxu0
      %v1685 = vadd.f32 %v1644, %v1684
      %v1686 = vpop.f32.mrf.mxu0
      %1687 = vdwg.mxu0
      %v1689 = vsel %vm816, %v1471, 0
      %1691 = vmatprep.subr.bf16.mxu0 0
      %1692 = vmatpush1.bf16.msra.mxu0 0
      %1693 = vmatprep.subr.bf16.mxu0 0
      %1694 = vmatpush1.bf16.msra.mxu0 0
      %1695 = vmatprep.subr.bf16.mxu0 0
      %1696 = vmatpush1.bf16.msra.mxu0 0
      %1697 = vmatprep.subr.bf16.mxu0 0
      %1698 = vmatpush1.bf16.msra.mxu0 0
      %1699 = vmatprep.subr.bf16.mxu0 0
      %1700 = vmatpush1.bf16.msra.mxu0 %v406
      %1701 = vmatprep.subr.bf16.mxu0 0
      %1702 = vmatpush1.bf16.msra.mxu0 %v405
      %1703 = vmatprep.subr.bf16.mxu0 0
      %1704 = vmatpush1.bf16.msra.mxu0 %v404
      %1705 = vmatprep.subr.bf16.mxu0 0
      %1706 = vmatpush1.bf16.msra.mxu0 %v403
      %1707 = vmatprep.subr.bf16.mxu0 0
      %1708 = vmatpush2.bf16.msra.mxu0 0
      %1709 = vmatprep.subr.bf16.mxu0 0
      %1710 = vmatpush2.bf16.msra.mxu0 0
      %1711 = vmatprep.subr.bf16.mxu0 0
      %1712 = vmatpush2.bf16.msra.mxu0 0
      %1713 = vmatprep.subr.bf16.mxu0 0
      %1714 = vmatpush2.bf16.msra.mxu0 0
      %1715 = vmatprep.subr.bf16.mxu0 0
      %1716 = vmatpush2.bf16.msra.mxu0 0
      %1717 = vmatprep.subr.bf16.mxu0 0
      %1718 = vmatpush2.bf16.msra.mxu0 0
      %1719 = vmatprep.subr.bf16.mxu0 0
      %1720 = vmatpush2.bf16.msra.mxu0 0
      %1721 = vmatprep.subr.bf16.mxu0 0
      %1722 = vmatpush2.bf16.msra.mxu0 0
      %1723 = vmatprep.mubr.bf16.mxu0 0
      %1724 = vmatmul.mubr.bf16.gmra.mxu0 %v1689
      %v1725 = vpop.f32.mrf.mxu0
      %v1726 = vadd.f32 0.0, %v1725
      %v1727 = vpop.f32.mrf.mxu0
      %v1728 = vpop.f32.mrf.mxu0
      %v1729 = vadd.f32 0.0, %v1728
      %v1730 = vpop.f32.mrf.mxu0
      %1731 = vdwg.mxu0
      %v1732 = vadd.f32 %v1682, %v1726
      %v1733 = vadd.f32 %v1685, %v1729
      %v1735 = vsel %vm816, %v1597, 0
      %1737 = vmatprep.subr.bf16.mxu0 0
      %1738 = vmatpush1.bf16.msra.mxu0 0
      %1739 = vmatprep.subr.bf16.mxu0 0
      %1740 = vmatpush1.bf16.msra.mxu0 0
      %1741 = vmatprep.subr.bf16.mxu0 0
      %1742 = vmatpush1.bf16.msra.mxu0 0
      %1743 = vmatprep.subr.bf16.mxu0 0
      %1744 = vmatpush1.bf16.msra.mxu0 0
      %1745 = vmatprep.subr.bf16.mxu0 0
      %1746 = vmatpush1.bf16.msra.mxu0 %v458
      %1747 = vmatprep.subr.bf16.mxu0 0
      %1748 = vmatpush1.bf16.msra.mxu0 %v457
      %1749 = vmatprep.subr.bf16.mxu0 0
      %1750 = vmatpush1.bf16.msra.mxu0 %v456
      %1751 = vmatprep.subr.bf16.mxu0 0
      %1752 = vmatpush1.bf16.msra.mxu0 %v455
      %1753 = vmatprep.subr.bf16.mxu0 0
      %1754 = vmatpush2.bf16.msra.mxu0 0
      %1755 = vmatprep.subr.bf16.mxu0 0
      %1756 = vmatpush2.bf16.msra.mxu0 0
      %1757 = vmatprep.subr.bf16.mxu0 0
      %1758 = vmatpush2.bf16.msra.mxu0 0
      %1759 = vmatprep.subr.bf16.mxu0 0
      %1760 = vmatpush2.bf16.msra.mxu0 0
      %1761 = vmatprep.subr.bf16.mxu0 0
      %1762 = vmatpush2.bf16.msra.mxu0 0
      %1763 = vmatprep.subr.bf16.mxu0 0
      %1764 = vmatpush2.bf16.msra.mxu0 0
      %1765 = vmatprep.subr.bf16.mxu0 0
      %1766 = vmatpush2.bf16.msra.mxu0 0
      %1767 = vmatprep.subr.bf16.mxu0 0
      %1768 = vmatpush2.bf16.msra.mxu0 0
      %1769 = vmatprep.mubr.bf16.mxu0 0
      %1770 = vmatmul.mubr.bf16.gmra.mxu0 %v1735
      %v1771 = vpop.f32.mrf.mxu0
      %v1772 = vadd.f32 0.0, %v1771
      %v1773 = vpop.f32.mrf.mxu0
      %v1774 = vpop.f32.mrf.mxu0
      %v1775 = vadd.f32 0.0, %v1774
      %v1776 = vpop.f32.mrf.mxu0
      %1777 = vdwg.mxu0
      %1778 = vmatprep.subr.bf16.mxu0 0
      %1779 = vmatpush1.bf16.msra.mxu0 0
      %1780 = vmatprep.subr.bf16.mxu0 0
      %1781 = vmatpush1.bf16.msra.mxu0 0
      %1782 = vmatprep.subr.bf16.mxu0 0
      %1783 = vmatpush1.bf16.msra.mxu0 0
      %1784 = vmatprep.subr.bf16.mxu0 0
      %1785 = vmatpush1.bf16.msra.mxu0 0
      %1786 = vmatprep.subr.bf16.mxu0 0
      %1787 = vmatpush1.bf16.msra.mxu0 %v438
      %1788 = vmatprep.subr.bf16.mxu0 0
      %1789 = vmatpush1.bf16.msra.mxu0 %v437
      %1790 = vmatprep.subr.bf16.mxu0 0
      %1791 = vmatpush1.bf16.msra.mxu0 %v436
      %1792 = vmatprep.subr.bf16.mxu0 0
      %1793 = vmatpush1.bf16.msra.mxu0 %v435
      %1794 = vmatprep.subr.bf16.mxu0 0
      %1795 = vmatpush2.bf16.msra.mxu0 0
      %1796 = vmatprep.subr.bf16.mxu0 0
      %1797 = vmatpush2.bf16.msra.mxu0 0
      %1798 = vmatprep.subr.bf16.mxu0 0
      %1799 = vmatpush2.bf16.msra.mxu0 0
      %1800 = vmatprep.subr.bf16.mxu0 0
      %1801 = vmatpush2.bf16.msra.mxu0 0
      %1802 = vmatprep.subr.bf16.mxu0 0
      %1803 = vmatpush2.bf16.msra.mxu0 0
      %1804 = vmatprep.subr.bf16.mxu0 0
      %1805 = vmatpush2.bf16.msra.mxu0 0
      %1806 = vmatprep.subr.bf16.mxu0 0
      %1807 = vmatpush2.bf16.msra.mxu0 0
      %1808 = vmatprep.subr.bf16.mxu0 0
      %1809 = vmatpush2.bf16.msra.mxu0 0
      %1810 = vmatprep.mubr.bf16.mxu0 0
      %1811 = vmatmul.mubr.bf16.gmra.mxu0 %v1735
      %v1812 = vpop.f32.mrf.mxu0
      %v1813 = vadd.f32 %v1772, %v1812
      %v1814 = vpop.f32.mrf.mxu0
      %v1815 = vpop.f32.mrf.mxu0
      %v1816 = vadd.f32 %v1775, %v1815
      %v1817 = vpop.f32.mrf.mxu0
      %1818 = vdwg.mxu0
      %v1820 = vsel %vm816, %v1602, 0
      %1822 = vmatprep.subr.bf16.mxu0 0
      %1823 = vmatpush1.bf16.msra.mxu0 0
      %1824 = vmatprep.subr.bf16.mxu0 0
      %1825 = vmatpush1.bf16.msra.mxu0 0
      %1826 = vmatprep.subr.bf16.mxu0 0
      %1827 = vmatpush1.bf16.msra.mxu0 0
      %1828 = vmatprep.subr.bf16.mxu0 0
      %1829 = vmatpush1.bf16.msra.mxu0 0
      %1830 = vmatprep.subr.bf16.mxu0 0
      %1831 = vmatpush1.bf16.msra.mxu0 %v438
      %1832 = vmatprep.subr.bf16.mxu0 0
      %1833 = vmatpush1.bf16.msra.mxu0 %v437
      %1834 = vmatprep.subr.bf16.mxu0 0
      %1835 = vmatpush1.bf16.msra.mxu0 %v436
      %1836 = vmatprep.subr.bf16.mxu0 0
      %1837 = vmatpush1.bf16.msra.mxu0 %v435
      %1838 = vmatprep.subr.bf16.mxu0 0
      %1839 = vmatpush2.bf16.msra.mxu0 0
      %1840 = vmatprep.subr.bf16.mxu0 0
      %1841 = vmatpush2.bf16.msra.mxu0 0
      %1842 = vmatprep.subr.bf16.mxu0 0
      %1843 = vmatpush2.bf16.msra.mxu0 0
      %1844 = vmatprep.subr.bf16.mxu0 0
      %1845 = vmatpush2.bf16.msra.mxu0 0
      %1846 = vmatprep.subr.bf16.mxu0 0
      %1847 = vmatpush2.bf16.msra.mxu0 0
      %1848 = vmatprep.subr.bf16.mxu0 0
      %1849 = vmatpush2.bf16.msra.mxu0 0
      %1850 = vmatprep.subr.bf16.mxu0 0
      %1851 = vmatpush2.bf16.msra.mxu0 0
      %1852 = vmatprep.subr.bf16.mxu0 0
      %1853 = vmatpush2.bf16.msra.mxu0 0
      %1854 = vmatprep.mubr.bf16.mxu0 0
      %1855 = vmatmul.mubr.bf16.gmra.mxu0 %v1820
      %v1856 = vpop.f32.mrf.mxu0
      %v1857 = vadd.f32 0.0, %v1856
      %v1858 = vpop.f32.mrf.mxu0
      %v1859 = vpop.f32.mrf.mxu0
      %v1860 = vadd.f32 0.0, %v1859
      %v1861 = vpop.f32.mrf.mxu0
      %1862 = vdwg.mxu0
      %v1863 = vadd.f32 %v1813, %v1857
      %v1864 = vadd.f32 %v1816, %v1860
      %v1865 = vsub.f32 %v1732, %v1863
      %v1866 = vsub.f32 %v1733, %v1864
      %1867 = vmatprep.subr.bf16.mxu0 0
      %1868 = vmatpush1.bf16.msra.mxu0 0
      %1869 = vmatprep.subr.bf16.mxu0 0
      %1870 = vmatpush1.bf16.msra.mxu0 0
      %1871 = vmatprep.subr.bf16.mxu0 0
      %1872 = vmatpush1.bf16.msra.mxu0 0
      %1873 = vmatprep.subr.bf16.mxu0 0
      %1874 = vmatpush1.bf16.msra.mxu0 0
      %1875 = vmatprep.subr.bf16.mxu0 0
      %1876 = vmatpush1.bf16.msra.mxu0 %v458
      %1877 = vmatprep.subr.bf16.mxu0 0
      %1878 = vmatpush1.bf16.msra.mxu0 %v457
      %1879 = vmatprep.subr.bf16.mxu0 0
      %1880 = vmatpush1.bf16.msra.mxu0 %v456
      %1881 = vmatprep.subr.bf16.mxu0 0
      %1882 = vmatpush1.bf16.msra.mxu0 %v455
      %1883 = vmatprep.subr.bf16.mxu0 0
      %1884 = vmatpush2.bf16.msra.mxu0 0
      %1885 = vmatprep.subr.bf16.mxu0 0
      %1886 = vmatpush2.bf16.msra.mxu0 0
      %1887 = vmatprep.subr.bf16.mxu0 0
      %1888 = vmatpush2.bf16.msra.mxu0 0
      %1889 = vmatprep.subr.bf16.mxu0 0
      %1890 = vmatpush2.bf16.msra.mxu0 0
      %1891 = vmatprep.subr.bf16.mxu0 0
      %1892 = vmatpush2.bf16.msra.mxu0 0
      %1893 = vmatprep.subr.bf16.mxu0 0
      %1894 = vmatpush2.bf16.msra.mxu0 0
      %1895 = vmatprep.subr.bf16.mxu0 0
      %1896 = vmatpush2.bf16.msra.mxu0 0
      %1897 = vmatprep.subr.bf16.mxu0 0
      %1898 = vmatpush2.bf16.msra.mxu0 0
      %1899 = vmatprep.mubr.bf16.mxu0 0
      %1900 = vmatmul.mubr.bf16.gmra.mxu0 %v1604
      %v1901 = vpop.f32.mrf.mxu0
      %v1902 = vadd.f32 0.0, %v1901
      %v1903 = vpop.f32.mrf.mxu0
      %v1904 = vpop.f32.mrf.mxu0
      %v1905 = vadd.f32 0.0, %v1904
      %v1906 = vpop.f32.mrf.mxu0
      %1907 = vdwg.mxu0
      %1908 = vmatprep.subr.bf16.mxu0 0
      %1909 = vmatpush1.bf16.msra.mxu0 0
      %1910 = vmatprep.subr.bf16.mxu0 0
      %1911 = vmatpush1.bf16.msra.mxu0 0
      %1912 = vmatprep.subr.bf16.mxu0 0
      %1913 = vmatpush1.bf16.msra.mxu0 0
      %1914 = vmatprep.subr.bf16.mxu0 0
      %1915 = vmatpush1.bf16.msra.mxu0 0
      %1916 = vmatprep.subr.bf16.mxu0 0
      %1917 = vmatpush1.bf16.msra.mxu0 %v438
      %1918 = vmatprep.subr.bf16.mxu0 0
      %1919 = vmatpush1.bf16.msra.mxu0 %v437
      %1920 = vmatprep.subr.bf16.mxu0 0
      %1921 = vmatpush1.bf16.msra.mxu0 %v436
      %1922 = vmatprep.subr.bf16.mxu0 0
      %1923 = vmatpush1.bf16.msra.mxu0 %v435
      %1924 = vmatprep.subr.bf16.mxu0 0
      %1925 = vmatpush2.bf16.msra.mxu0 0
      %1926 = vmatprep.subr.bf16.mxu0 0
      %1927 = vmatpush2.bf16.msra.mxu0 0
      %1928 = vmatprep.subr.bf16.mxu0 0
      %1929 = vmatpush2.bf16.msra.mxu0 0
      %1930 = vmatprep.subr.bf16.mxu0 0
      %1931 = vmatpush2.bf16.msra.mxu0 0
      %1932 = vmatprep.subr.bf16.mxu0 0
      %1933 = vmatpush2.bf16.msra.mxu0 0
      %1934 = vmatprep.subr.bf16.mxu0 0
      %1935 = vmatpush2.bf16.msra.mxu0 0
      %1936 = vmatprep.subr.bf16.mxu0 0
      %1937 = vmatpush2.bf16.msra.mxu0 0
      %1938 = vmatprep.subr.bf16.mxu0 0
      %1939 = vmatpush2.bf16.msra.mxu0 0
      %1940 = vmatprep.mubr.bf16.mxu0 0
      %1941 = vmatmul.mubr.bf16.gmra.mxu0 %v1604
      %v1942 = vpop.f32.mrf.mxu0
      %v1943 = vadd.f32 %v1902, %v1942
      %v1944 = vpop.f32.mrf.mxu0
      %v1945 = vpop.f32.mrf.mxu0
      %v1946 = vadd.f32 %v1905, %v1945
      %v1947 = vpop.f32.mrf.mxu0
      %1948 = vdwg.mxu0
      %1949 = vmatprep.subr.bf16.mxu0 0
      %1950 = vmatpush1.bf16.msra.mxu0 0
      %1951 = vmatprep.subr.bf16.mxu0 0
      %1952 = vmatpush1.bf16.msra.mxu0 0
      %1953 = vmatprep.subr.bf16.mxu0 0
      %1954 = vmatpush1.bf16.msra.mxu0 0
      %1955 = vmatprep.subr.bf16.mxu0 0
      %1956 = vmatpush1.bf16.msra.mxu0 0
      %1957 = vmatprep.subr.bf16.mxu0 0
      %1958 = vmatpush1.bf16.msra.mxu0 %v438
      %1959 = vmatprep.subr.bf16.mxu0 0
      %1960 = vmatpush1.bf16.msra.mxu0 %v437
      %1961 = vmatprep.subr.bf16.mxu0 0
      %1962 = vmatpush1.bf16.msra.mxu0 %v436
      %1963 = vmatprep.subr.bf16.mxu0 0
      %1964 = vmatpush1.bf16.msra.mxu0 %v435
      %1965 = vmatprep.subr.bf16.mxu0 0
      %1966 = vmatpush2.bf16.msra.mxu0 0
      %1967 = vmatprep.subr.bf16.mxu0 0
      %1968 = vmatpush2.bf16.msra.mxu0 0
      %1969 = vmatprep.subr.bf16.mxu0 0
      %1970 = vmatpush2.bf16.msra.mxu0 0
      %1971 = vmatprep.subr.bf16.mxu0 0
      %1972 = vmatpush2.bf16.msra.mxu0 0
      %1973 = vmatprep.subr.bf16.mxu0 0
      %1974 = vmatpush2.bf16.msra.mxu0 0
      %1975 = vmatprep.subr.bf16.mxu0 0
      %1976 = vmatpush2.bf16.msra.mxu0 0
      %1977 = vmatprep.subr.bf16.mxu0 0
      %1978 = vmatpush2.bf16.msra.mxu0 0
      %1979 = vmatprep.subr.bf16.mxu0 0
      %1980 = vmatpush2.bf16.msra.mxu0 0
      %1981 = vmatprep.mubr.bf16.mxu0 0
      %1982 = vmatmul.mubr.bf16.gmra.mxu0 %v1689
      %v1983 = vpop.f32.mrf.mxu0
      %v1984 = vadd.f32 0.0, %v1983
      %v1985 = vpop.f32.mrf.mxu0
      %v1986 = vpop.f32.mrf.mxu0
      %v1987 = vadd.f32 0.0, %v1986
      %v1988 = vpop.f32.mrf.mxu0
      %1989 = vdwg.mxu0
      %v1990 = vadd.f32 %v1943, %v1984
      %v1991 = vadd.f32 %v1946, %v1987
      %1992 = vmatprep.subr.bf16.mxu0 0
      %1993 = vmatpush1.bf16.msra.mxu0 0
      %1994 = vmatprep.subr.bf16.mxu0 0
      %1995 = vmatpush1.bf16.msra.mxu0 0
      %1996 = vmatprep.subr.bf16.mxu0 0
      %1997 = vmatpush1.bf16.msra.mxu0 0
      %1998 = vmatprep.subr.bf16.mxu0 0
      %1999 = vmatpush1.bf16.msra.mxu0 0
      %2000 = vmatprep.subr.bf16.mxu0 0
      %2001 = vmatpush1.bf16.msra.mxu0 %v426
      %2002 = vmatprep.subr.bf16.mxu0 0
      %2003 = vmatpush1.bf16.msra.mxu0 %v425
      %2004 = vmatprep.subr.bf16.mxu0 0
      %2005 = vmatpush1.bf16.msra.mxu0 %v424
      %2006 = vmatprep.subr.bf16.mxu0 0
      %2007 = vmatpush1.bf16.msra.mxu0 %v423
      %2008 = vmatprep.subr.bf16.mxu0 0
      %2009 = vmatpush2.bf16.msra.mxu0 0
      %2010 = vmatprep.subr.bf16.mxu0 0
      %2011 = vmatpush2.bf16.msra.mxu0 0
      %2012 = vmatprep.subr.bf16.mxu0 0
      %2013 = vmatpush2.bf16.msra.mxu0 0
      %2014 = vmatprep.subr.bf16.mxu0 0
      %2015 = vmatpush2.bf16.msra.mxu0 0
      %2016 = vmatprep.subr.bf16.mxu0 0
      %2017 = vmatpush2.bf16.msra.mxu0 0
      %2018 = vmatprep.subr.bf16.mxu0 0
      %2019 = vmatpush2.bf16.msra.mxu0 0
      %2020 = vmatprep.subr.bf16.mxu0 0
      %2021 = vmatpush2.bf16.msra.mxu0 0
      %2022 = vmatprep.subr.bf16.mxu0 0
      %2023 = vmatpush2.bf16.msra.mxu0 0
      %2024 = vmatprep.mubr.bf16.mxu0 0
      %2025 = vmatmul.mubr.bf16.gmra.mxu0 %v1735
      %v2026 = vpop.f32.mrf.mxu0
      %v2027 = vadd.f32 0.0, %v2026
      %v2028 = vpop.f32.mrf.mxu0
      %v2029 = vpop.f32.mrf.mxu0
      %v2030 = vadd.f32 0.0, %v2029
      %v2031 = vpop.f32.mrf.mxu0
      %2032 = vdwg.mxu0
      %2033 = vmatprep.subr.bf16.mxu0 0
      %2034 = vmatpush1.bf16.msra.mxu0 0
      %2035 = vmatprep.subr.bf16.mxu0 0
      %2036 = vmatpush1.bf16.msra.mxu0 0
      %2037 = vmatprep.subr.bf16.mxu0 0
      %2038 = vmatpush1.bf16.msra.mxu0 0
      %2039 = vmatprep.subr.bf16.mxu0 0
      %2040 = vmatpush1.bf16.msra.mxu0 0
      %2041 = vmatprep.subr.bf16.mxu0 0
      %2042 = vmatpush1.bf16.msra.mxu0 %v406
      %2043 = vmatprep.subr.bf16.mxu0 0
      %2044 = vmatpush1.bf16.msra.mxu0 %v405
      %2045 = vmatprep.subr.bf16.mxu0 0
      %2046 = vmatpush1.bf16.msra.mxu0 %v404
      %2047 = vmatprep.subr.bf16.mxu0 0
      %2048 = vmatpush1.bf16.msra.mxu0 %v403
      %2049 = vmatprep.subr.bf16.mxu0 0
      %2050 = vmatpush2.bf16.msra.mxu0 0
      %2051 = vmatprep.subr.bf16.mxu0 0
      %2052 = vmatpush2.bf16.msra.mxu0 0
      %2053 = vmatprep.subr.bf16.mxu0 0
      %2054 = vmatpush2.bf16.msra.mxu0 0
      %2055 = vmatprep.subr.bf16.mxu0 0
      %2056 = vmatpush2.bf16.msra.mxu0 0
      %2057 = vmatprep.subr.bf16.mxu0 0
      %2058 = vmatpush2.bf16.msra.mxu0 0
      %2059 = vmatprep.subr.bf16.mxu0 0
      %2060 = vmatpush2.bf16.msra.mxu0 0
      %2061 = vmatprep.subr.bf16.mxu0 0
      %2062 = vmatpush2.bf16.msra.mxu0 0
      %2063 = vmatprep.subr.bf16.mxu0 0
      %2064 = vmatpush2.bf16.msra.mxu0 0
      %2065 = vmatprep.mubr.bf16.mxu0 0
      %2066 = vmatmul.mubr.bf16.gmra.mxu0 %v1735
      %v2067 = vpop.f32.mrf.mxu0
      %v2068 = vadd.f32 %v2027, %v2067
      %v2069 = vpop.f32.mrf.mxu0
      %v2070 = vpop.f32.mrf.mxu0
      %v2071 = vadd.f32 %v2030, %v2070
      %v2072 = vpop.f32.mrf.mxu0
      %2073 = vdwg.mxu0
      %2074 = vmatprep.subr.bf16.mxu0 0
      %2075 = vmatpush1.bf16.msra.mxu0 0
      %2076 = vmatprep.subr.bf16.mxu0 0
      %2077 = vmatpush1.bf16.msra.mxu0 0
      %2078 = vmatprep.subr.bf16.mxu0 0
      %2079 = vmatpush1.bf16.msra.mxu0 0
      %2080 = vmatprep.subr.bf16.mxu0 0
      %2081 = vmatpush1.bf16.msra.mxu0 0
      %2082 = vmatprep.subr.bf16.mxu0 0
      %2083 = vmatpush1.bf16.msra.mxu0 %v406
      %2084 = vmatprep.subr.bf16.mxu0 0
      %2085 = vmatpush1.bf16.msra.mxu0 %v405
      %2086 = vmatprep.subr.bf16.mxu0 0
      %2087 = vmatpush1.bf16.msra.mxu0 %v404
      %2088 = vmatprep.subr.bf16.mxu0 0
      %2089 = vmatpush1.bf16.msra.mxu0 %v403
      %2090 = vmatprep.subr.bf16.mxu0 0
      %2091 = vmatpush2.bf16.msra.mxu0 0
      %2092 = vmatprep.subr.bf16.mxu0 0
      %2093 = vmatpush2.bf16.msra.mxu0 0
      %2094 = vmatprep.subr.bf16.mxu0 0
      %2095 = vmatpush2.bf16.msra.mxu0 0
      %2096 = vmatprep.subr.bf16.mxu0 0
      %2097 = vmatpush2.bf16.msra.mxu0 0
      %2098 = vmatprep.subr.bf16.mxu0 0
      %2099 = vmatpush2.bf16.msra.mxu0 0
      %2100 = vmatprep.subr.bf16.mxu0 0
      %2101 = vmatpush2.bf16.msra.mxu0 0
      %2102 = vmatprep.subr.bf16.mxu0 0
      %2103 = vmatpush2.bf16.msra.mxu0 0
      %2104 = vmatprep.subr.bf16.mxu0 0
      %2105 = vmatpush2.bf16.msra.mxu0 0
      %2106 = vmatprep.mubr.bf16.mxu0 0
      %2107 = vmatmul.mubr.bf16.gmra.mxu0 %v1820
      %v2108 = vpop.f32.mrf.mxu0
      %v2109 = vadd.f32 0.0, %v2108
      %v2110 = vpop.f32.mrf.mxu0
      %v2111 = vpop.f32.mrf.mxu0
      %v2112 = vadd.f32 0.0, %v2111
      %v2113 = vpop.f32.mrf.mxu0
      %2114 = vdwg.mxu0
      %v2115 = vadd.f32 %v2068, %v2109
      %v2116 = vadd.f32 %v2071, %v2112
      %v2117 = vadd.f32 %v1990, %v2115
      %v2118 = vadd.f32 %v1991, %v2116
      %v2119 = vmul.f32 %v1079, %v1865
      %v2120 = vmul.f32 %v1080, %v1866
      %v2121 = vmul.f32 %v1331, %v2117
      %v2122 = vmul.f32 %v1332, %v2118
      %v2123 = vsub.f32 %v2119, %v2121
      %v2124 = vsub.f32 %v2120, %v2122
      %v2125 = vpack.c.bf16 %v2124, %v2123
      %v2126 = vunpack.c.l.bf16 %v2125
      %v2127 = vunpack.c.h.bf16 %v2125
      %v2128 = vsub.f32 %v2123, %v2126
      %v2129 = vsub.f32 %v2124, %v2127
      %v2130 = vpack.c.bf16 %v2129, %v2128
      %v2131 = vmul.f32 %v1079, %v2117
      %v2132 = vmul.f32 %v1080, %v2118
      %v2133 = vmul.f32 %v1331, %v1865
      %v2134 = vmul.f32 %v1332, %v1866
      %v2135 = vadd.f32 %v2131, %v2133
      %v2136 = vadd.f32 %v2132, %v2134
      %v2137 = vpack.c.bf16 %v2136, %v2135
      %v2138 = vunpack.c.l.bf16 %v2137
      %v2139 = vunpack.c.h.bf16 %v2137
      %v2140 = vsub.f32 %v2135, %v2138
      %v2141 = vsub.f32 %v2136, %v2139
      %v2142 = vpack.c.bf16 %v2141, %v2140
      %v2144 = vsel %vm541, %v460, 0
      %2146 = vmatprep.subr.bf16.mxu0 0
      %2147 = vmatpush1.bf16.msra.mxu0 0
      %2148 = vmatprep.subr.bf16.mxu0 0
      %2149 = vmatpush1.bf16.msra.mxu0 0
      %2150 = vmatprep.subr.bf16.mxu0 0
      %2151 = vmatpush1.bf16.msra.mxu0 0
      %2152 = vmatprep.subr.bf16.mxu0 0
      %2153 = vmatpush1.bf16.msra.mxu0 0
      %2154 = vmatprep.subr.bf16.mxu0 0
      %2155 = vmatpush1.bf16.msra.mxu0 0
      %2156 = vmatprep.subr.bf16.mxu0 0
      %2157 = vmatpush1.bf16.msra.mxu0 0
      %2158 = vmatprep.subr.bf16.mxu0 0
      %2159 = vmatpush1.bf16.msra.mxu0 0
      %2160 = vmatprep.subr.bf16.mxu0 0
      %2161 = vmatpush1.bf16.msra.mxu0 %v2130
      %2162 = vmatprep.subr.bf16.mxu0 0
      %2163 = vmatpush2.bf16.msra.mxu0 0
      %2164 = vmatprep.subr.bf16.mxu0 0
      %2165 = vmatpush2.bf16.msra.mxu0 0
      %2166 = vmatprep.subr.bf16.mxu0 0
      %2167 = vmatpush2.bf16.msra.mxu0 0
      %2168 = vmatprep.subr.bf16.mxu0 0
      %2169 = vmatpush2.bf16.msra.mxu0 0
      %2170 = vmatprep.subr.bf16.mxu0 0
      %2171 = vmatpush2.bf16.msra.mxu0 0
      %2172 = vmatprep.subr.bf16.mxu0 0
      %2173 = vmatpush2.bf16.msra.mxu0 0
      %2174 = vmatprep.subr.bf16.mxu0 0
      %2175 = vmatpush2.bf16.msra.mxu0 0
      %2176 = vmatprep.subr.bf16.mxu0 0
      %2177 = vmatpush2.bf16.msra.mxu0 0
      %2178 = vmatprep.mubr.bf16.mxu0 0
      %2179 = vmatmul.mubr.bf16.gmra.mxu0 %v2144
      %v2180 = vpop.f32.mrf.mxu0
      %v2181 = vadd.f32 0.0, %v2180
      %v2182 = vpop.f32.mrf.mxu0
      %v2183 = vpop.f32.mrf.mxu0
      %v2184 = vpop.f32.mrf.mxu0
      %2185 = vdwg.mxu0
      %2186 = vmatprep.subr.bf16.mxu0 0
      %2187 = vmatpush1.bf16.msra.mxu0 0
      %2188 = vmatprep.subr.bf16.mxu0 0
      %2189 = vmatpush1.bf16.msra.mxu0 0
      %2190 = vmatprep.subr.bf16.mxu0 0
      %2191 = vmatpush1.bf16.msra.mxu0 0
      %2192 = vmatprep.subr.bf16.mxu0 0
      %2193 = vmatpush1.bf16.msra.mxu0 0
      %2194 = vmatprep.subr.bf16.mxu0 0
      %2195 = vmatpush1.bf16.msra.mxu0 0
      %2196 = vmatprep.subr.bf16.mxu0 0
      %2197 = vmatpush1.bf16.msra.mxu0 0
      %2198 = vmatprep.subr.bf16.mxu0 0
      %2199 = vmatpush1.bf16.msra.mxu0 0
      %2200 = vmatprep.subr.bf16.mxu0 0
      %2201 = vmatpush1.bf16.msra.mxu0 %v2125
      %2202 = vmatprep.subr.bf16.mxu0 0
      %2203 = vmatpush2.bf16.msra.mxu0 0
      %2204 = vmatprep.subr.bf16.mxu0 0
      %2205 = vmatpush2.bf16.msra.mxu0 0
      %2206 = vmatprep.subr.bf16.mxu0 0
      %2207 = vmatpush2.bf16.msra.mxu0 0
      %2208 = vmatprep.subr.bf16.mxu0 0
      %2209 = vmatpush2.bf16.msra.mxu0 0
      %2210 = vmatprep.subr.bf16.mxu0 0
      %2211 = vmatpush2.bf16.msra.mxu0 0
      %2212 = vmatprep.subr.bf16.mxu0 0
      %2213 = vmatpush2.bf16.msra.mxu0 0
      %2214 = vmatprep.subr.bf16.mxu0 0
      %2215 = vmatpush2.bf16.msra.mxu0 0
      %2216 = vmatprep.subr.bf16.mxu0 0
      %2217 = vmatpush2.bf16.msra.mxu0 0
      %2218 = vmatprep.mubr.bf16.mxu0 0
      %2219 = vmatmul.mubr.bf16.gmra.mxu0 %v2144
      %v2220 = vpop.f32.mrf.mxu0
      %v2221 = vadd.f32 %v2181, %v2220
      %v2222 = vpop.f32.mrf.mxu0
      %v2223 = vpop.f32.mrf.mxu0
      %v2224 = vpop.f32.mrf.mxu0
      %2225 = vdwg.mxu0
      %v2227 = vsel %vm541, %v463, 0
      %2229 = vmatprep.subr.bf16.mxu0 0
      %2230 = vmatpush1.bf16.msra.mxu0 0
      %2231 = vmatprep.subr.bf16.mxu0 0
      %2232 = vmatpush1.bf16.msra.mxu0 0
      %2233 = vmatprep.subr.bf16.mxu0 0
      %2234 = vmatpush1.bf16.msra.mxu0 0
      %2235 = vmatprep.subr.bf16.mxu0 0
      %2236 = vmatpush1.bf16.msra.mxu0 0
      %2237 = vmatprep.subr.bf16.mxu0 0
      %2238 = vmatpush1.bf16.msra.mxu0 0
      %2239 = vmatprep.subr.bf16.mxu0 0
      %2240 = vmatpush1.bf16.msra.mxu0 0
      %2241 = vmatprep.subr.bf16.mxu0 0
      %2242 = vmatpush1.bf16.msra.mxu0 0
      %2243 = vmatprep.subr.bf16.mxu0 0
      %2244 = vmatpush1.bf16.msra.mxu0 %v2125
      %2245 = vmatprep.subr.bf16.mxu0 0
      %2246 = vmatpush2.bf16.msra.mxu0 0
      %2247 = vmatprep.subr.bf16.mxu0 0
      %2248 = vmatpush2.bf16.msra.mxu0 0
      %2249 = vmatprep.subr.bf16.mxu0 0
      %2250 = vmatpush2.bf16.msra.mxu0 0
      %2251 = vmatprep.subr.bf16.mxu0 0
      %2252 = vmatpush2.bf16.msra.mxu0 0
      %2253 = vmatprep.subr.bf16.mxu0 0
      %2254 = vmatpush2.bf16.msra.mxu0 0
      %2255 = vmatprep.subr.bf16.mxu0 0
      %2256 = vmatpush2.bf16.msra.mxu0 0
      %2257 = vmatprep.subr.bf16.mxu0 0
      %2258 = vmatpush2.bf16.msra.mxu0 0
      %2259 = vmatprep.subr.bf16.mxu0 0
      %2260 = vmatpush2.bf16.msra.mxu0 0
      %2261 = vmatprep.mubr.bf16.mxu0 0
      %2262 = vmatmul.mubr.bf16.gmra.mxu0 %v2227
      %v2263 = vpop.f32.mrf.mxu0
      %v2264 = vadd.f32 0.0, %v2263
      %v2265 = vpop.f32.mrf.mxu0
      %v2266 = vpop.f32.mrf.mxu0
      %v2267 = vpop.f32.mrf.mxu0
      %2268 = vdwg.mxu0
      %v2269 = vadd.f32 %v2221, %v2264
      %v2271 = vsel %vm541, %v465, 0
      %2273 = vmatprep.subr.bf16.mxu0 0
      %2274 = vmatpush1.bf16.msra.mxu0 0
      %2275 = vmatprep.subr.bf16.mxu0 0
      %2276 = vmatpush1.bf16.msra.mxu0 0
      %2277 = vmatprep.subr.bf16.mxu0 0
      %2278 = vmatpush1.bf16.msra.mxu0 0
      %2279 = vmatprep.subr.bf16.mxu0 0
      %2280 = vmatpush1.bf16.msra.mxu0 0
      %2281 = vmatprep.subr.bf16.mxu0 0
      %2282 = vmatpush1.bf16.msra.mxu0 0
      %2283 = vmatprep.subr.bf16.mxu0 0
      %2284 = vmatpush1.bf16.msra.mxu0 0
      %2285 = vmatprep.subr.bf16.mxu0 0
      %2286 = vmatpush1.bf16.msra.mxu0 0
      %2287 = vmatprep.subr.bf16.mxu0 0
      %2288 = vmatpush1.bf16.msra.mxu0 %v2142
      %2289 = vmatprep.subr.bf16.mxu0 0
      %2290 = vmatpush2.bf16.msra.mxu0 0
      %2291 = vmatprep.subr.bf16.mxu0 0
      %2292 = vmatpush2.bf16.msra.mxu0 0
      %2293 = vmatprep.subr.bf16.mxu0 0
      %2294 = vmatpush2.bf16.msra.mxu0 0
      %2295 = vmatprep.subr.bf16.mxu0 0
      %2296 = vmatpush2.bf16.msra.mxu0 0
      %2297 = vmatprep.subr.bf16.mxu0 0
      %2298 = vmatpush2.bf16.msra.mxu0 0
      %2299 = vmatprep.subr.bf16.mxu0 0
      %2300 = vmatpush2.bf16.msra.mxu0 0
      %2301 = vmatprep.subr.bf16.mxu0 0
      %2302 = vmatpush2.bf16.msra.mxu0 0
      %2303 = vmatprep.subr.bf16.mxu0 0
      %2304 = vmatpush2.bf16.msra.mxu0 0
      %2305 = vmatprep.mubr.bf16.mxu0 0
      %2306 = vmatmul.mubr.bf16.gmra.mxu0 %v2271
      %v2307 = vpop.f32.mrf.mxu0
      %v2308 = vadd.f32 0.0, %v2307
      %v2309 = vpop.f32.mrf.mxu0
      %v2310 = vpop.f32.mrf.mxu0
      %v2311 = vpop.f32.mrf.mxu0
      %2312 = vdwg.mxu0
      %2313 = vmatprep.subr.bf16.mxu0 0
      %2314 = vmatpush1.bf16.msra.mxu0 0
      %2315 = vmatprep.subr.bf16.mxu0 0
      %2316 = vmatpush1.bf16.msra.mxu0 0
      %2317 = vmatprep.subr.bf16.mxu0 0
      %2318 = vmatpush1.bf16.msra.mxu0 0
      %2319 = vmatprep.subr.bf16.mxu0 0
      %2320 = vmatpush1.bf16.msra.mxu0 0
      %2321 = vmatprep.subr.bf16.mxu0 0
      %2322 = vmatpush1.bf16.msra.mxu0 0
      %2323 = vmatprep.subr.bf16.mxu0 0
      %2324 = vmatpush1.bf16.msra.mxu0 0
      %2325 = vmatprep.subr.bf16.mxu0 0
      %2326 = vmatpush1.bf16.msra.mxu0 0
      %2327 = vmatprep.subr.bf16.mxu0 0
      %2328 = vmatpush1.bf16.msra.mxu0 %v2137
      %2329 = vmatprep.subr.bf16.mxu0 0
      %2330 = vmatpush2.bf16.msra.mxu0 0
      %2331 = vmatprep.subr.bf16.mxu0 0
      %2332 = vmatpush2.bf16.msra.mxu0 0
      %2333 = vmatprep.subr.bf16.mxu0 0
      %2334 = vmatpush2.bf16.msra.mxu0 0
      %2335 = vmatprep.subr.bf16.mxu0 0
      %2336 = vmatpush2.bf16.msra.mxu0 0
      %2337 = vmatprep.subr.bf16.mxu0 0
      %2338 = vmatpush2.bf16.msra.mxu0 0
      %2339 = vmatprep.subr.bf16.mxu0 0
      %2340 = vmatpush2.bf16.msra.mxu0 0
      %2341 = vmatprep.subr.bf16.mxu0 0
      %2342 = vmatpush2.bf16.msra.mxu0 0
      %2343 = vmatprep.subr.bf16.mxu0 0
      %2344 = vmatpush2.bf16.msra.mxu0 0
      %2345 = vmatprep.mubr.bf16.mxu0 0
      %2346 = vmatmul.mubr.bf16.gmra.mxu0 %v2271
      %v2347 = vpop.f32.mrf.mxu0
      %v2348 = vadd.f32 %v2308, %v2347
      %v2349 = vpop.f32.mrf.mxu0
      %v2350 = vpop.f32.mrf.mxu0
      %v2351 = vpop.f32.mrf.mxu0
      %2352 = vdwg.mxu0
      %v2354 = vsel %vm541, %v468, 0
      %2356 = vmatprep.subr.bf16.mxu0 0
      %2357 = vmatpush1.bf16.msra.mxu0 0
      %2358 = vmatprep.subr.bf16.mxu0 0
      %2359 = vmatpush1.bf16.msra.mxu0 0
      %2360 = vmatprep.subr.bf16.mxu0 0
      %2361 = vmatpush1.bf16.msra.mxu0 0
      %2362 = vmatprep.subr.bf16.mxu0 0
      %2363 = vmatpush1.bf16.msra.mxu0 0
      %2364 = vmatprep.subr.bf16.mxu0 0
      %2365 = vmatpush1.bf16.msra.mxu0 0
      %2366 = vmatprep.subr.bf16.mxu0 0
      %2367 = vmatpush1.bf16.msra.mxu0 0
      %2368 = vmatprep.subr.bf16.mxu0 0
      %2369 = vmatpush1.bf16.msra.mxu0 0
      %2370 = vmatprep.subr.bf16.mxu0 0
      %2371 = vmatpush1.bf16.msra.mxu0 %v2137
      %2372 = vmatprep.subr.bf16.mxu0 0
      %2373 = vmatpush2.bf16.msra.mxu0 0
      %2374 = vmatprep.subr.bf16.mxu0 0
      %2375 = vmatpush2.bf16.msra.mxu0 0
      %2376 = vmatprep.subr.bf16.mxu0 0
      %2377 = vmatpush2.bf16.msra.mxu0 0
      %2378 = vmatprep.subr.bf16.mxu0 0
      %2379 = vmatpush2.bf16.msra.mxu0 0
      %2380 = vmatprep.subr.bf16.mxu0 0
      %2381 = vmatpush2.bf16.msra.mxu0 0
      %2382 = vmatprep.subr.bf16.mxu0 0
      %2383 = vmatpush2.bf16.msra.mxu0 0
      %2384 = vmatprep.subr.bf16.mxu0 0
      %2385 = vmatpush2.bf16.msra.mxu0 0
      %2386 = vmatprep.subr.bf16.mxu0 0
      %2387 = vmatpush2.bf16.msra.mxu0 0
      %2388 = vmatprep.mubr.bf16.mxu0 0
      %2389 = vmatmul.mubr.bf16.gmra.mxu0 %v2354
      %v2390 = vpop.f32.mrf.mxu0
      %v2391 = vadd.f32 0.0, %v2390
      %v2392 = vpop.f32.mrf.mxu0
      %v2393 = vpop.f32.mrf.mxu0
      %v2394 = vpop.f32.mrf.mxu0
      %2395 = vdwg.mxu0
      %v2396 = vadd.f32 %v2348, %v2391
      %v2397 = vsub.f32 %v2269, %v2396
      %v2398 = vpack.c.bf16 %v2397, %v2397
      %v2399 = vunpack.c.l.bf16 %v2398
      %v2400 = vsub.f32 %v2397, %v2399
      %v2401 = vpack.c.bf16 %v2400, %v2400
      %2402 = vmatprep.subr.bf16.mxu0 0
      %2403 = vmatpush1.bf16.msra.mxu0 0
      %2404 = vmatprep.subr.bf16.mxu0 0
      %2405 = vmatpush1.bf16.msra.mxu0 0
      %2406 = vmatprep.subr.bf16.mxu0 0
      %2407 = vmatpush1.bf16.msra.mxu0 0
      %2408 = vmatprep.subr.bf16.mxu0 0
      %2409 = vmatpush1.bf16.msra.mxu0 0
      %2410 = vmatprep.subr.bf16.mxu0 0
      %2411 = vmatpush1.bf16.msra.mxu0 0
      %2412 = vmatprep.subr.bf16.mxu0 0
      %2413 = vmatpush1.bf16.msra.mxu0 0
      %2414 = vmatprep.subr.bf16.mxu0 0
      %2415 = vmatpush1.bf16.msra.mxu0 0
      %2416 = vmatprep.subr.bf16.mxu0 0
      %2417 = vmatpush1.bf16.msra.mxu0 %v2142
      %2418 = vmatprep.subr.bf16.mxu0 0
      %2419 = vmatpush2.bf16.msra.mxu0 0
      %2420 = vmatprep.subr.bf16.mxu0 0
      %2421 = vmatpush2.bf16.msra.mxu0 0
      %2422 = vmatprep.subr.bf16.mxu0 0
      %2423 = vmatpush2.bf16.msra.mxu0 0
      %2424 = vmatprep.subr.bf16.mxu0 0
      %2425 = vmatpush2.bf16.msra.mxu0 0
      %2426 = vmatprep.subr.bf16.mxu0 0
      %2427 = vmatpush2.bf16.msra.mxu0 0
      %2428 = vmatprep.subr.bf16.mxu0 0
      %2429 = vmatpush2.bf16.msra.mxu0 0
      %2430 = vmatprep.subr.bf16.mxu0 0
      %2431 = vmatpush2.bf16.msra.mxu0 0
      %2432 = vmatprep.subr.bf16.mxu0 0
      %2433 = vmatpush2.bf16.msra.mxu0 0
      %2434 = vmatprep.mubr.bf16.mxu0 0
      %2435 = vmatmul.mubr.bf16.gmra.mxu0 %v2144
      %v2436 = vpop.f32.mrf.mxu0
      %v2437 = vadd.f32 0.0, %v2436
      %v2438 = vpop.f32.mrf.mxu0
      %v2439 = vpop.f32.mrf.mxu0
      %v2440 = vpop.f32.mrf.mxu0
      %2441 = vdwg.mxu0
      %2442 = vmatprep.subr.bf16.mxu0 0
      %2443 = vmatpush1.bf16.msra.mxu0 0
      %2444 = vmatprep.subr.bf16.mxu0 0
      %2445 = vmatpush1.bf16.msra.mxu0 0
      %2446 = vmatprep.subr.bf16.mxu0 0
      %2447 = vmatpush1.bf16.msra.mxu0 0
      %2448 = vmatprep.subr.bf16.mxu0 0
      %2449 = vmatpush1.bf16.msra.mxu0 0
      %2450 = vmatprep.subr.bf16.mxu0 0
      %2451 = vmatpush1.bf16.msra.mxu0 0
      %2452 = vmatprep.subr.bf16.mxu0 0
      %2453 = vmatpush1.bf16.msra.mxu0 0
      %2454 = vmatprep.subr.bf16.mxu0 0
      %2455 = vmatpush1.bf16.msra.mxu0 0
      %2456 = vmatprep.subr.bf16.mxu0 0
      %2457 = vmatpush1.bf16.msra.mxu0 %v2137
      %2458 = vmatprep.subr.bf16.mxu0 0
      %2459 = vmatpush2.bf16.msra.mxu0 0
      %2460 = vmatprep.subr.bf16.mxu0 0
      %2461 = vmatpush2.bf16.msra.mxu0 0
      %2462 = vmatprep.subr.bf16.mxu0 0
      %2463 = vmatpush2.bf16.msra.mxu0 0
      %2464 = vmatprep.subr.bf16.mxu0 0
      %2465 = vmatpush2.bf16.msra.mxu0 0
      %2466 = vmatprep.subr.bf16.mxu0 0
      %2467 = vmatpush2.bf16.msra.mxu0 0
      %2468 = vmatprep.subr.bf16.mxu0 0
      %2469 = vmatpush2.bf16.msra.mxu0 0
      %2470 = vmatprep.subr.bf16.mxu0 0
      %2471 = vmatpush2.bf16.msra.mxu0 0
      %2472 = vmatprep.subr.bf16.mxu0 0
      %2473 = vmatpush2.bf16.msra.mxu0 0
      %2474 = vmatprep.mubr.bf16.mxu0 0
      %2475 = vmatmul.mubr.bf16.gmra.mxu0 %v2144
      %v2476 = vpop.f32.mrf.mxu0
      %v2477 = vadd.f32 %v2437, %v2476
      %v2478 = vpop.f32.mrf.mxu0
      %v2479 = vpop.f32.mrf.mxu0
      %v2480 = vpop.f32.mrf.mxu0
      %2481 = vdwg.mxu0
      %2482 = vmatprep.subr.bf16.mxu0 0
      %2483 = vmatpush1.bf16.msra.mxu0 0
      %2484 = vmatprep.subr.bf16.mxu0 0
      %2485 = vmatpush1.bf16.msra.mxu0 0
      %2486 = vmatprep.subr.bf16.mxu0 0
      %2487 = vmatpush1.bf16.msra.mxu0 0
      %2488 = vmatprep.subr.bf16.mxu0 0
      %2489 = vmatpush1.bf16.msra.mxu0 0
      %2490 = vmatprep.subr.bf16.mxu0 0
      %2491 = vmatpush1.bf16.msra.mxu0 0
      %2492 = vmatprep.subr.bf16.mxu0 0
      %2493 = vmatpush1.bf16.msra.mxu0 0
      %2494 = vmatprep.subr.bf16.mxu0 0
      %2495 = vmatpush1.bf16.msra.mxu0 0
      %2496 = vmatprep.subr.bf16.mxu0 0
      %2497 = vmatpush1.bf16.msra.mxu0 %v2137
      %2498 = vmatprep.subr.bf16.mxu0 0
      %2499 = vmatpush2.bf16.msra.mxu0 0
      %2500 = vmatprep.subr.bf16.mxu0 0
      %2501 = vmatpush2.bf16.msra.mxu0 0
      %2502 = vmatprep.subr.bf16.mxu0 0
      %2503 = vmatpush2.bf16.msra.mxu0 0
      %2504 = vmatprep.subr.bf16.mxu0 0
      %2505 = vmatpush2.bf16.msra.mxu0 0
      %2506 = vmatprep.subr.bf16.mxu0 0
      %2507 = vmatpush2.bf16.msra.mxu0 0
      %2508 = vmatprep.subr.bf16.mxu0 0
      %2509 = vmatpush2.bf16.msra.mxu0 0
      %2510 = vmatprep.subr.bf16.mxu0 0
      %2511 = vmatpush2.bf16.msra.mxu0 0
      %2512 = vmatprep.subr.bf16.mxu0 0
      %2513 = vmatpush2.bf16.msra.mxu0 0
      %2514 = vmatprep.mubr.bf16.mxu0 0
      %2515 = vmatmul.mubr.bf16.gmra.mxu0 %v2227
      %v2516 = vpop.f32.mrf.mxu0
      %v2517 = vadd.f32 0.0, %v2516
      %v2518 = vpop.f32.mrf.mxu0
      %v2519 = vpop.f32.mrf.mxu0
      %v2520 = vpop.f32.mrf.mxu0
      %2521 = vdwg.mxu0
      %v2522 = vadd.f32 %v2477, %v2517
      %2523 = vmatprep.subr.bf16.mxu0 0
      %2524 = vmatpush1.bf16.msra.mxu0 0
      %2525 = vmatprep.subr.bf16.mxu0 0
      %2526 = vmatpush1.bf16.msra.mxu0 0
      %2527 = vmatprep.subr.bf16.mxu0 0
      %2528 = vmatpush1.bf16.msra.mxu0 0
      %2529 = vmatprep.subr.bf16.mxu0 0
      %2530 = vmatpush1.bf16.msra.mxu0 0
      %2531 = vmatprep.subr.bf16.mxu0 0
      %2532 = vmatpush1.bf16.msra.mxu0 0
      %2533 = vmatprep.subr.bf16.mxu0 0
      %2534 = vmatpush1.bf16.msra.mxu0 0
      %2535 = vmatprep.subr.bf16.mxu0 0
      %2536 = vmatpush1.bf16.msra.mxu0 0
      %2537 = vmatprep.subr.bf16.mxu0 0
      %2538 = vmatpush1.bf16.msra.mxu0 %v2130
      %2539 = vmatprep.subr.bf16.mxu0 0
      %2540 = vmatpush2.bf16.msra.mxu0 0
      %2541 = vmatprep.subr.bf16.mxu0 0
      %2542 = vmatpush2.bf16.msra.mxu0 0
      %2543 = vmatprep.subr.bf16.mxu0 0
      %2544 = vmatpush2.bf16.msra.mxu0 0
      %2545 = vmatprep.subr.bf16.mxu0 0
      %2546 = vmatpush2.bf16.msra.mxu0 0
      %2547 = vmatprep.subr.bf16.mxu0 0
      %2548 = vmatpush2.bf16.msra.mxu0 0
      %2549 = vmatprep.subr.bf16.mxu0 0
      %2550 = vmatpush2.bf16.msra.mxu0 0
      %2551 = vmatprep.subr.bf16.mxu0 0
      %2552 = vmatpush2.bf16.msra.mxu0 0
      %2553 = vmatprep.subr.bf16.mxu0 0
      %2554 = vmatpush2.bf16.msra.mxu0 0
      %2555 = vmatprep.mubr.bf16.mxu0 0
      %2556 = vmatmul.mubr.bf16.gmra.mxu0 %v2271
      %v2557 = vpop.f32.mrf.mxu0
      %v2558 = vadd.f32 0.0, %v2557
      %v2559 = vpop.f32.mrf.mxu0
      %v2560 = vpop.f32.mrf.mxu0
      %v2561 = vpop.f32.mrf.mxu0
      %2562 = vdwg.mxu0
      %2563 = vmatprep.subr.bf16.mxu0 0
      %2564 = vmatpush1.bf16.msra.mxu0 0
      %2565 = vmatprep.subr.bf16.mxu0 0
      %2566 = vmatpush1.bf16.msra.mxu0 0
      %2567 = vmatprep.subr.bf16.mxu0 0
      %2568 = vmatpush1.bf16.msra.mxu0 0
      %2569 = vmatprep.subr.bf16.mxu0 0
      %2570 = vmatpush1.bf16.msra.mxu0 0
      %2571 = vmatprep.subr.bf16.mxu0 0
      %2572 = vmatpush1.bf16.msra.mxu0 0
      %2573 = vmatprep.subr.bf16.mxu0 0
      %2574 = vmatpush1.bf16.msra.mxu0 0
      %2575 = vmatprep.subr.bf16.mxu0 0
      %2576 = vmatpush1.bf16.msra.mxu0 0
      %2577 = vmatprep.subr.bf16.mxu0 0
      %2578 = vmatpush1.bf16.msra.mxu0 %v2125
      %2579 = vmatprep.subr.bf16.mxu0 0
      %2580 = vmatpush2.bf16.msra.mxu0 0
      %2581 = vmatprep.subr.bf16.mxu0 0
      %2582 = vmatpush2.bf16.msra.mxu0 0
      %2583 = vmatprep.subr.bf16.mxu0 0
      %2584 = vmatpush2.bf16.msra.mxu0 0
      %2585 = vmatprep.subr.bf16.mxu0 0
      %2586 = vmatpush2.bf16.msra.mxu0 0
      %2587 = vmatprep.subr.bf16.mxu0 0
      %2588 = vmatpush2.bf16.msra.mxu0 0
      %2589 = vmatprep.subr.bf16.mxu0 0
      %2590 = vmatpush2.bf16.msra.mxu0 0
      %2591 = vmatprep.subr.bf16.mxu0 0
      %2592 = vmatpush2.bf16.msra.mxu0 0
      %2593 = vmatprep.subr.bf16.mxu0 0
      %2594 = vmatpush2.bf16.msra.mxu0 0
      %2595 = vmatprep.mubr.bf16.mxu0 0
      %2596 = vmatmul.mubr.bf16.gmra.mxu0 %v2271
      %v2597 = vpop.f32.mrf.mxu0
      %v2598 = vadd.f32 %v2558, %v2597
      %v2599 = vpop.f32.mrf.mxu0
      %v2600 = vpop.f32.mrf.mxu0
      %v2601 = vpop.f32.mrf.mxu0
      %2602 = vdwg.mxu0
      %2603 = vmatprep.subr.bf16.mxu0 0
      %2604 = vmatpush1.bf16.msra.mxu0 0
      %2605 = vmatprep.subr.bf16.mxu0 0
      %2606 = vmatpush1.bf16.msra.mxu0 0
      %2607 = vmatprep.subr.bf16.mxu0 0
      %2608 = vmatpush1.bf16.msra.mxu0 0
      %2609 = vmatprep.subr.bf16.mxu0 0
      %2610 = vmatpush1.bf16.msra.mxu0 0
      %2611 = vmatprep.subr.bf16.mxu0 0
      %2612 = vmatpush1.bf16.msra.mxu0 0
      %2613 = vmatprep.subr.bf16.mxu0 0
      %2614 = vmatpush1.bf16.msra.mxu0 0
      %2615 = vmatprep.subr.bf16.mxu0 0
      %2616 = vmatpush1.bf16.msra.mxu0 0
      %2617 = vmatprep.subr.bf16.mxu0 0
      %2618 = vmatpush1.bf16.msra.mxu0 %v2125
      %2619 = vmatprep.subr.bf16.mxu0 0
      %2620 = vmatpush2.bf16.msra.mxu0 0
      %2621 = vmatprep.subr.bf16.mxu0 0
      %2622 = vmatpush2.bf16.msra.mxu0 0
      %2623 = vmatprep.subr.bf16.mxu0 0
      %2624 = vmatpush2.bf16.msra.mxu0 0
      %2625 = vmatprep.subr.bf16.mxu0 0
      %2626 = vmatpush2.bf16.msra.mxu0 0
      %2627 = vmatprep.subr.bf16.mxu0 0
      %2628 = vmatpush2.bf16.msra.mxu0 0
      %2629 = vmatprep.subr.bf16.mxu0 0
      %2630 = vmatpush2.bf16.msra.mxu0 0
      %2631 = vmatprep.subr.bf16.mxu0 0
      %2632 = vmatpush2.bf16.msra.mxu0 0
      %2633 = vmatprep.subr.bf16.mxu0 0
      %2634 = vmatpush2.bf16.msra.mxu0 0
      %2635 = vmatprep.mubr.bf16.mxu0 0
      %2636 = vmatmul.mubr.bf16.gmra.mxu0 %v2354
      %v2637 = vpop.f32.mrf.mxu0
      %v2638 = vadd.f32 0.0, %v2637
      %v2639 = vpop.f32.mrf.mxu0
      %v2640 = vpop.f32.mrf.mxu0
      %v2641 = vpop.f32.mrf.mxu0
      %2642 = vdwg.mxu0
      %v2643 = vadd.f32 %v2598, %v2638
      %v2644 = vadd.f32 %v2522, %v2643
      %v2645 = vpack.c.bf16 %v2644, %v2644
      %v2646 = vunpack.c.l.bf16 %v2645
      %v2647 = vsub.f32 %v2644, %v2646
      %v2648 = vpack.c.bf16 %v2647, %v2647
      %v2650 = vsel %vm816, %v2398, 0
      %2652 = vmatprep.subr.bf16.mxu0 0
      %2653 = vmatpush1.bf16.msra.mxu0 0
      %2654 = vmatprep.subr.bf16.mxu0 0
      %2655 = vmatpush1.bf16.msra.mxu0 0
      %2656 = vmatprep.subr.bf16.mxu0 0
      %2657 = vmatpush1.bf16.msra.mxu0 0
      %2658 = vmatprep.subr.bf16.mxu0 0
      %2659 = vmatpush1.bf16.msra.mxu0 0
      %2660 = vmatprep.subr.bf16.mxu0 0
      %2661 = vmatpush1.bf16.msra.mxu0 %v500
      %2662 = vmatprep.subr.bf16.mxu0 0
      %2663 = vmatpush1.bf16.msra.mxu0 %v499
      %2664 = vmatprep.subr.bf16.mxu0 0
      %2665 = vmatpush1.bf16.msra.mxu0 %v498
      %2666 = vmatprep.subr.bf16.mxu0 0
      %2667 = vmatpush1.bf16.msra.mxu0 %v497
      %2668 = vmatprep.subr.bf16.mxu0 0
      %2669 = vmatpush2.bf16.msra.mxu0 0
      %2670 = vmatprep.subr.bf16.mxu0 0
      %2671 = vmatpush2.bf16.msra.mxu0 0
      %2672 = vmatprep.subr.bf16.mxu0 0
      %2673 = vmatpush2.bf16.msra.mxu0 0
      %2674 = vmatprep.subr.bf16.mxu0 0
      %2675 = vmatpush2.bf16.msra.mxu0 0
      %2676 = vmatprep.subr.bf16.mxu0 0
      %2677 = vmatpush2.bf16.msra.mxu0 0
      %2678 = vmatprep.subr.bf16.mxu0 0
      %2679 = vmatpush2.bf16.msra.mxu0 0
      %2680 = vmatprep.subr.bf16.mxu0 0
      %2681 = vmatpush2.bf16.msra.mxu0 0
      %2682 = vmatprep.subr.bf16.mxu0 0
      %2683 = vmatpush2.bf16.msra.mxu0 0
      %2684 = vmatprep.mubr.bf16.mxu0 0
      %2685 = vmatmul.mubr.bf16.gmra.mxu0 %v2650
      %v2686 = vpop.f32.mrf.mxu0
      %v2687 = vadd.f32 0.0, %v2686
      %v2688 = vpop.f32.mrf.mxu0
      %v2689 = vpop.f32.mrf.mxu0
      %v2690 = vpop.f32.mrf.mxu0
      %2691 = vdwg.mxu0
      %2692 = vmatprep.subr.bf16.mxu0 0
      %2693 = vmatpush1.bf16.msra.mxu0 0
      %2694 = vmatprep.subr.bf16.mxu0 0
      %2695 = vmatpush1.bf16.msra.mxu0 0
      %2696 = vmatprep.subr.bf16.mxu0 0
      %2697 = vmatpush1.bf16.msra.mxu0 0
      %2698 = vmatprep.subr.bf16.mxu0 0
      %2699 = vmatpush1.bf16.msra.mxu0 0
      %2700 = vmatprep.subr.bf16.mxu0 0
      %2701 = vmatpush1.bf16.msra.mxu0 %v480
      %2702 = vmatprep.subr.bf16.mxu0 0
      %2703 = vmatpush1.bf16.msra.mxu0 %v479
      %2704 = vmatprep.subr.bf16.mxu0 0
      %2705 = vmatpush1.bf16.msra.mxu0 %v478
      %2706 = vmatprep.subr.bf16.mxu0 0
      %2707 = vmatpush1.bf16.msra.mxu0 %v477
      %2708 = vmatprep.subr.bf16.mxu0 0
      %2709 = vmatpush2.bf16.msra.mxu0 0
      %2710 = vmatprep.subr.bf16.mxu0 0
      %2711 = vmatpush2.bf16.msra.mxu0 0
      %2712 = vmatprep.subr.bf16.mxu0 0
      %2713 = vmatpush2.bf16.msra.mxu0 0
      %2714 = vmatprep.subr.bf16.mxu0 0
      %2715 = vmatpush2.bf16.msra.mxu0 0
      %2716 = vmatprep.subr.bf16.mxu0 0
      %2717 = vmatpush2.bf16.msra.mxu0 0
      %2718 = vmatprep.subr.bf16.mxu0 0
      %2719 = vmatpush2.bf16.msra.mxu0 0
      %2720 = vmatprep.subr.bf16.mxu0 0
      %2721 = vmatpush2.bf16.msra.mxu0 0
      %2722 = vmatprep.subr.bf16.mxu0 0
      %2723 = vmatpush2.bf16.msra.mxu0 0
      %2724 = vmatprep.mubr.bf16.mxu0 0
      %2725 = vmatmul.mubr.bf16.gmra.mxu0 %v2650
      %v2726 = vpop.f32.mrf.mxu0
      %v2727 = vadd.f32 %v2687, %v2726
      %v2728 = vpop.f32.mrf.mxu0
      %v2729 = vpop.f32.mrf.mxu0
      %v2730 = vpop.f32.mrf.mxu0
      %2731 = vdwg.mxu0
      %v2733 = vsel %vm816, %v2401, 0
      %2735 = vmatprep.subr.bf16.mxu0 0
      %2736 = vmatpush1.bf16.msra.mxu0 0
      %2737 = vmatprep.subr.bf16.mxu0 0
      %2738 = vmatpush1.bf16.msra.mxu0 0
      %2739 = vmatprep.subr.bf16.mxu0 0
      %2740 = vmatpush1.bf16.msra.mxu0 0
      %2741 = vmatprep.subr.bf16.mxu0 0
      %2742 = vmatpush1.bf16.msra.mxu0 0
      %2743 = vmatprep.subr.bf16.mxu0 0
      %2744 = vmatpush1.bf16.msra.mxu0 %v480
      %2745 = vmatprep.subr.bf16.mxu0 0
      %2746 = vmatpush1.bf16.msra.mxu0 %v479
      %2747 = vmatprep.subr.bf16.mxu0 0
      %2748 = vmatpush1.bf16.msra.mxu0 %v478
      %2749 = vmatprep.subr.bf16.mxu0 0
      %2750 = vmatpush1.bf16.msra.mxu0 %v477
      %2751 = vmatprep.subr.bf16.mxu0 0
      %2752 = vmatpush2.bf16.msra.mxu0 0
      %2753 = vmatprep.subr.bf16.mxu0 0
      %2754 = vmatpush2.bf16.msra.mxu0 0
      %2755 = vmatprep.subr.bf16.mxu0 0
      %2756 = vmatpush2.bf16.msra.mxu0 0
      %2757 = vmatprep.subr.bf16.mxu0 0
      %2758 = vmatpush2.bf16.msra.mxu0 0
      %2759 = vmatprep.subr.bf16.mxu0 0
      %2760 = vmatpush2.bf16.msra.mxu0 0
      %2761 = vmatprep.subr.bf16.mxu0 0
      %2762 = vmatpush2.bf16.msra.mxu0 0
      %2763 = vmatprep.subr.bf16.mxu0 0
      %2764 = vmatpush2.bf16.msra.mxu0 0
      %2765 = vmatprep.subr.bf16.mxu0 0
      %2766 = vmatpush2.bf16.msra.mxu0 0
      %2767 = vmatprep.mubr.bf16.mxu0 0
      %2768 = vmatmul.mubr.bf16.gmra.mxu0 %v2733
      %v2769 = vpop.f32.mrf.mxu0
      %v2770 = vadd.f32 0.0, %v2769
      %v2771 = vpop.f32.mrf.mxu0
      %v2772 = vpop.f32.mrf.mxu0
      %v2773 = vpop.f32.mrf.mxu0
      %2774 = vdwg.mxu0
      %v2775 = vadd.f32 %v2727, %v2770
      %v2777 = vsel %vm816, %v2645, 0
      %2779 = vmatprep.subr.bf16.mxu0 0
      %2780 = vmatpush1.bf16.msra.mxu0 0
      %2781 = vmatprep.subr.bf16.mxu0 0
      %2782 = vmatpush1.bf16.msra.mxu0 0
      %2783 = vmatprep.subr.bf16.mxu0 0
      %2784 = vmatpush1.bf16.msra.mxu0 0
      %2785 = vmatprep.subr.bf16.mxu0 0
      %2786 = vmatpush1.bf16.msra.mxu0 0
      %2787 = vmatprep.subr.bf16.mxu0 0
      %2788 = vmatpush1.bf16.msra.mxu0 %v532
      %2789 = vmatprep.subr.bf16.mxu0 0
      %2790 = vmatpush1.bf16.msra.mxu0 %v531
      %2791 = vmatprep.subr.bf16.mxu0 0
      %2792 = vmatpush1.bf16.msra.mxu0 %v530
      %2793 = vmatprep.subr.bf16.mxu0 0
      %2794 = vmatpush1.bf16.msra.mxu0 %v529
      %2795 = vmatprep.subr.bf16.mxu0 0
      %2796 = vmatpush2.bf16.msra.mxu0 0
      %2797 = vmatprep.subr.bf16.mxu0 0
      %2798 = vmatpush2.bf16.msra.mxu0 0
      %2799 = vmatprep.subr.bf16.mxu0 0
      %2800 = vmatpush2.bf16.msra.mxu0 0
      %2801 = vmatprep.subr.bf16.mxu0 0
      %2802 = vmatpush2.bf16.msra.mxu0 0
      %2803 = vmatprep.subr.bf16.mxu0 0
      %2804 = vmatpush2.bf16.msra.mxu0 0
      %2805 = vmatprep.subr.bf16.mxu0 0
      %2806 = vmatpush2.bf16.msra.mxu0 0
      %2807 = vmatprep.subr.bf16.mxu0 0
      %2808 = vmatpush2.bf16.msra.mxu0 0
      %2809 = vmatprep.subr.bf16.mxu0 0
      %2810 = vmatpush2.bf16.msra.mxu0 0
      %2811 = vmatprep.mubr.bf16.mxu0 0
      %2812 = vmatmul.mubr.bf16.gmra.mxu0 %v2777
      %v2813 = vpop.f32.mrf.mxu0
      %v2814 = vadd.f32 0.0, %v2813
      %v2815 = vpop.f32.mrf.mxu0
      %v2816 = vpop.f32.mrf.mxu0
      %v2817 = vpop.f32.mrf.mxu0
      %2818 = vdwg.mxu0
      %2819 = vmatprep.subr.bf16.mxu0 0
      %2820 = vmatpush1.bf16.msra.mxu0 0
      %2821 = vmatprep.subr.bf16.mxu0 0
      %2822 = vmatpush1.bf16.msra.mxu0 0
      %2823 = vmatprep.subr.bf16.mxu0 0
      %2824 = vmatpush1.bf16.msra.mxu0 0
      %2825 = vmatprep.subr.bf16.mxu0 0
      %2826 = vmatpush1.bf16.msra.mxu0 0
      %2827 = vmatprep.subr.bf16.mxu0 0
      %2828 = vmatpush1.bf16.msra.mxu0 %v512
      %2829 = vmatprep.subr.bf16.mxu0 0
      %2830 = vmatpush1.bf16.msra.mxu0 %v511
      %2831 = vmatprep.subr.bf16.mxu0 0
      %2832 = vmatpush1.bf16.msra.mxu0 %v510
      %2833 = vmatprep.subr.bf16.mxu0 0
      %2834 = vmatpush1.bf16.msra.mxu0 %v509
      %2835 = vmatprep.subr.bf16.mxu0 0
      %2836 = vmatpush2.bf16.msra.mxu0 0
      %2837 = vmatprep.subr.bf16.mxu0 0
      %2838 = vmatpush2.bf16.msra.mxu0 0
      %2839 = vmatprep.subr.bf16.mxu0 0
      %2840 = vmatpush2.bf16.msra.mxu0 0
      %2841 = vmatprep.subr.bf16.mxu0 0
      %2842 = vmatpush2.bf16.msra.mxu0 0
      %2843 = vmatprep.subr.bf16.mxu0 0
      %2844 = vmatpush2.bf16.msra.mxu0 0
      %2845 = vmatprep.subr.bf16.mxu0 0
      %2846 = vmatpush2.bf16.msra.mxu0 0
      %2847 = vmatprep.subr.bf16.mxu0 0
      %2848 = vmatpush2.bf16.msra.mxu0 0
      %2849 = vmatprep.subr.bf16.mxu0 0
      %2850 = vmatpush2.bf16.msra.mxu0 0
      %2851 = vmatprep.mubr.bf16.mxu0 0
      %2852 = vmatmul.mubr.bf16.gmra.mxu0 %v2777
      %v2853 = vpop.f32.mrf.mxu0
      %v2854 = vadd.f32 %v2814, %v2853
      %v2855 = vpop.f32.mrf.mxu0
      %v2856 = vpop.f32.mrf.mxu0
      %v2857 = vpop.f32.mrf.mxu0
      %2858 = vdwg.mxu0
      %v2860 = vsel %vm816, %v2648, 0
      %2862 = vmatprep.subr.bf16.mxu0 0
      %2863 = vmatpush1.bf16.msra.mxu0 0
      %2864 = vmatprep.subr.bf16.mxu0 0
      %2865 = vmatpush1.bf16.msra.mxu0 0
      %2866 = vmatprep.subr.bf16.mxu0 0
      %2867 = vmatpush1.bf16.msra.mxu0 0
      %2868 = vmatprep.subr.bf16.mxu0 0
      %2869 = vmatpush1.bf16.msra.mxu0 0
      %2870 = vmatprep.subr.bf16.mxu0 0
      %2871 = vmatpush1.bf16.msra.mxu0 %v512
      %2872 = vmatprep.subr.bf16.mxu0 0
      %2873 = vmatpush1.bf16.msra.mxu0 %v511
      %2874 = vmatprep.subr.bf16.mxu0 0
      %2875 = vmatpush1.bf16.msra.mxu0 %v510
      %2876 = vmatprep.subr.bf16.mxu0 0
      %2877 = vmatpush1.bf16.msra.mxu0 %v509
      %2878 = vmatprep.subr.bf16.mxu0 0
      %2879 = vmatpush2.bf16.msra.mxu0 0
      %2880 = vmatprep.subr.bf16.mxu0 0
      %2881 = vmatpush2.bf16.msra.mxu0 0
      %2882 = vmatprep.subr.bf16.mxu0 0
      %2883 = vmatpush2.bf16.msra.mxu0 0
      %2884 = vmatprep.subr.bf16.mxu0 0
      %2885 = vmatpush2.bf16.msra.mxu0 0
      %2886 = vmatprep.subr.bf16.mxu0 0
      %2887 = vmatpush2.bf16.msra.mxu0 0
      %2888 = vmatprep.subr.bf16.mxu0 0
      %2889 = vmatpush2.bf16.msra.mxu0 0
      %2890 = vmatprep.subr.bf16.mxu0 0
      %2891 = vmatpush2.bf16.msra.mxu0 0
      %2892 = vmatprep.subr.bf16.mxu0 0
      %2893 = vmatpush2.bf16.msra.mxu0 0
      %2894 = vmatprep.mubr.bf16.mxu0 0
      %2895 = vmatmul.mubr.bf16.gmra.mxu0 %v2860
      %v2896 = vpop.f32.mrf.mxu0
      %v2897 = vadd.f32 0.0, %v2896
      %v2898 = vpop.f32.mrf.mxu0
      %v2899 = vpop.f32.mrf.mxu0
      %v2900 = vpop.f32.mrf.mxu0
      %2901 = vdwg.mxu0
      %v2902 = vadd.f32 %v2854, %v2897
      %v2903 = vsub.f32 %v2775, %v2902
      %vm2904 = vcmask 261120
      %2905 = vst.msk [vmem:[%s377] sm:$0xff] %vm2904, %v2903
      %p2906 = scmp.lt.s32.totalorder %s21, 1
      %s2907 = scalar_select %p2906, %s21, 1
      %s2908 = smul.addr %s2907, 8
      %s2909 = scalar_lea.vmem %s10, %s2908
      // Predicated region
      $region61: #{conv_projection_pallas.1} parent=59 // pred_check
        %p2910 = pneg %p259
      $region62: #{conv_projection_pallas.1} parent=59 // pred_check_branch
        %2912 = sbr.rel (%p2910) target = $region64
      $region63: #{conv_projection_pallas.1} parent=59 // pred_region
        _
      $region64: #{conv_projection_pallas.1} parent=59 // pred_fallthru
        _
    $region60: #{conv_projection_pallas.1} parent=5 // pred_fallthru
      _
    %p2913 = scmp.le.s32.totalorder 2, %s16
    // Predicated region
    $region65: #{conv_projection_pallas.1} parent=5 // pred_check
      %p2914 = pneg %p2913
    $region66: #{conv_projection_pallas.1} parent=5 // pred_check_branch
      %2916 = sbr.rel (%p2914) target = $region68
    $region67: #{conv_projection_pallas.1} parent=5 // pred_region
      %s2917 = ssub.s32 %s16, 2
      // Predicated region
      $region69: #{conv_projection_pallas.1} parent=67 // pred_check
        %p2918 = pneg %p265
      $region70: #{conv_projection_pallas.1} parent=67 // pred_check_branch
        %2920 = sbr.rel (%p2918) target = $region72
      $region71: #{conv_projection_pallas.1} parent=67 // pred_region
        %p2921 = scmp.lt.s32.totalorder %s22, 1
        %s2922 = scalar_select %p2921, %s22, 1
        %s2923 = smul.addr %s2922, 8
        %s2924 = scalar_lea.vmem %s10, %s2923
      $region72: #{conv_projection_pallas.1} parent=67 // pred_fallthru
        _
    $region68: #{conv_projection_pallas.1} parent=5 // pred_fallthru
      _
  $region6: #{conv_projection_pallas.1} parent=0 // loop_footer
    %s20 = sadd.s32 1, %s16
  $region7: #{conv_projection_pallas.1} parent=0 // loop_footer_branch
    %15 = sbr.rel target = $region3
  $region8: #{conv_projection_pallas.1} parent=0 // loop_exit
    _

</llo_original>
